<compile_context>
chip_gen: v5e
topology: v5e:2x2
jax: 0.10.0
libtpu: 0.0.40
codegen_flags: <defaults>
</compile_context>

<pallas_src>
import functools

import jax
import jax.numpy as jnp
from jax.experimental import pallas as pl
from jax.experimental.pallas import tpu as pltpu


def _round_up(a: int, b: int) -> int:
    return (a + b - 1) // b * b


def _gproj2d_conv_kernel(x_ref, w_ref, b_ref, o_ref, *, kh, kw, ho, wo):
    """One batch-tile of the packed projection conv.

    x_ref : (TB, Hp, Wp, Cin)   zero-padded NHWC input slab
    w_ref : (kH, kW, Cin, O)    conv weight (HWIO)
    b_ref : (1, O)              bias (f32)
    o_ref : (TB, Ho*Wo, O)      flattened NHWC output slab
    """
    tb = x_ref.shape[0]
    cin = x_ref.shape[3]
    out_ch = o_ref.shape[-1]
    n = tb * ho * wo

    # Statically unrolled loop over the kH*kW taps: each tap is one MXU matmul
    # over a shifted view of the input slab, accumulated in float32 registers
    # (first tap assigns, so there is no separate zero-init pass).
    acc = None
    for dy in range(kh):
        for dx in range(kw):
            patch = x_ref[:, dy:dy + ho, dx:dx + wo, :]        # (TB, Ho, Wo, Cin)
            patch = patch.reshape(n, cin)                      # lane dim (Cin) preserved
            contrib = jnp.dot(patch, w_ref[dy, dx],
                              preferred_element_type=jnp.float32)
            acc = contrib if acc is None else acc + contrib

    y = (acc + b_ref[...]).astype(o_ref.dtype)                 # (N, O)
    o_ref[...] = y.reshape(tb, ho * wo, out_ch)                # major-dim split only


def gproj2ds_forward(x, weight, bias=None, *, stride=1, padding=0, batch_tile=None):
    """GProj2dS.forward given the precomputed packed conv weight.

    x      : (B, C, G, H, W)    input group-feature field
    weight : (O, C*G, kH, kW)   packed conv weight (PyTorch OIHW layout)
    bias   : (O,) or None
    returns: (B, O, Ho, Wo)     NCHW, matching F.conv2d + bias
    """
    assert stride == 1  # TODO(synk): strided / dilated / grouped conv not implemented in-kernel.
    B, C, G, H, W = x.shape
    O, Cin, kH, kW = weight.shape
    assert Cin == C * G

    # pack_regular + NCHW -> NHWC + zero padding (one-time layout plumbing).
    xp = x.reshape(B, Cin, H, W).transpose(0, 2, 3, 1)          # (B, H, W, Cin)
    if padding:
        xp = jnp.pad(xp, ((0, 0), (padding, padding), (padding, padding), (0, 0)))
    Hp, Wp = H + 2 * padding, W + 2 * padding
    Ho, Wo = Hp - kH + 1, Wp - kW + 1

    w_hwio = weight.transpose(2, 3, 1, 0)                        # (kH, kW, Cin, O)
    if bias is None:
        bias = jnp.zeros((O,), jnp.float32)
    b2 = bias.reshape(1, O).astype(jnp.float32)

    # Batch-tile sizing: target multi-MiB slabs while staying inside the scoped
    # VMEM limit.  Minor dims are padded to 128 lanes in VMEM, so budget with the
    # padded sizes; inputs/outputs are double-buffered by the pipeline.
    if batch_tile is None:
        itm = xp.dtype.itemsize
        per_img = (2 * Hp * Wp * _round_up(Cin, 128) * itm       # input slab, 2 buffers
                   + 2 * Ho * Wo * _round_up(O, 128) * itm       # output slab, 2 buffers
                   + Ho * Wo * _round_up(O, 128) * 4)            # f32 accumulator spill
        batch_tile = max(1, min(B, (20 * 1024 * 1024) // max(per_img, 1)))
    TB = min(batch_tile, B)
    while B % TB:
        TB -= 1

    kern = functools.partial(_gproj2d_conv_kernel, kh=kH, kw=kW, ho=Ho, wo=Wo)

    out = pl.pallas_call(
        kern,
        out_shape=jax.ShapeDtypeStruct((B, Ho * Wo, O), x.dtype),
        grid_spec=pltpu.PrefetchScalarGridSpec(
            num_scalar_prefetch=0,
            grid=(B // TB,),
            in_specs=[
                pl.BlockSpec((TB, Hp, Wp, Cin), lambda i: (i, 0, 0, 0)),
                pl.BlockSpec((kH, kW, Cin, O), lambda i: (0, 0, 0, 0)),
                pl.BlockSpec((1, O), lambda i: (0, 0)),
            ],
            out_specs=pl.BlockSpec((TB, Ho * Wo, O), lambda i: (i, 0, 0)),
        ),
        compiler_params=pltpu.CompilerParams(
            dimension_semantics=("parallel",),
            vmem_limit_bytes=32 * 1024 * 1024,
        ),
    )(xp, w_hwio, b2)

    # (B, Ho*Wo, O) -> (B, O, Ho, Wo) to match F.conv2d's NCHW output.
    return out.reshape(B, Ho, Wo, O).transpose(0, 3, 1, 2)


if __name__ == "__main__":
    key = jax.random.PRNGKey(0)
    kx, kw, kb = jax.random.split(key, 3)

    # Small deterministic config consistent with GProj2dS:
    # batch=2, in_channels=4, num_gsamples=8, out_channels=8, kernel_size=3,
    # 16x16 spatial, stride=1, padding=1 ("same" output).
    B, C, G, H, W = 2, 4, 8, 16, 16
    O, K = 8, 3
    stride, padding = 1, 1

    x = jax.random.normal(kx, (B, C, G, H, W), dtype=jnp.float32)
    weight = jax.random.normal(kw, (O, C * G, K, K), dtype=jnp.float32) * 0.1
    bias = jax.random.normal(kb, (O,), dtype=jnp.float32)

    out = gproj2ds_forward(x, weight, bias, stride=stride, padding=padding)
    out = jax.block_until_ready(out)

    # Reference: pack_regular + conv2d + bias, exactly GProj2dS.forward.
    xp_nchw = x.reshape(B, C * G, H, W)
    ref = jax.lax.conv_general_dilated(
        xp_nchw, weight, window_strides=(stride, stride),
        padding=[(padding, padding), (padding, padding)],
        dimension_numbers=("NCHW", "OIHW", "NCHW"),
        precision=jax.lax.Precision.HIGHEST)
    ref = ref + bias.reshape(1, O, 1, 1)

    assert out.shape == ref.shape == (B, O, H, W)
    # Tolerance covers MXU default-precision f32 matmul vs HIGHEST-precision ref.
    assert jnp.allclose(out, ref, atol=3e-2, rtol=1e-2)

    print("KERNEL_OK")
</pallas_src>

<mosaic_0001>
module attributes {stable_mosaic.version = 11 : i64} {
  func.func @_gproj2d_conv_kernel(%arg0: i32, %arg1: memref<2x18x18x32xf32, #tpu.memory_space<vmem>>, %arg2: memref<3x3x32x8xf32, #tpu.memory_space<vmem>>, %arg3: memref<1x8xf32, #tpu.memory_space<vmem>>, %arg4: memref<2x256x8xf32, #tpu.memory_space<vmem>>) attributes {dimension_semantics = [#tpu.dimension_semantics<parallel>], iteration_bounds = array<i64: 1>, scalar_prefetch = 0 : i64, scratch_operands = 0 : i64, tpu.core_type = #tpu.core_type<tc>, window_params = [{transform_indices = @transform_0, window_bounds = array<i64: 2, 18, 18, 32>}, {pipeline_mode = #tpu.pipeline_mode<synchronous>, transform_indices = @transform_1, window_bounds = array<i64: 3, 3, 32, 8>}, {pipeline_mode = #tpu.pipeline_mode<synchronous>, transform_indices = @transform_2, window_bounds = array<i64: 1, 8>}, {transform_indices = @transform_3, window_bounds = array<i64: 2, 256, 8>}]} {
    %c0 = arith.constant 0 : index
    %c0_0 = arith.constant 0 : index
    %c0_1 = arith.constant 0 : index
    %c0_2 = arith.constant 0 : index
    %0 = vector.load %arg1[%c0, %c0_0, %c0_1, %c0_2] : memref<2x18x18x32xf32, #tpu.memory_space<vmem>>, vector<2x16x16x32xf32>
    %1 = vector.shape_cast %0 : vector<2x16x16x32xf32> to vector<512x32xf32>
    %c0_3 = arith.constant 0 : index
    %c0_4 = arith.constant 0 : index
    %c0_5 = arith.constant 0 : index
    %c0_6 = arith.constant 0 : index
    %2 = vector.load %arg2[%c0_3, %c0_4, %c0_5, %c0_6] : memref<3x3x32x8xf32, #tpu.memory_space<vmem>>, vector<1x1x32x8xf32>
    %3 = vector.shape_cast %2 : vector<1x1x32x8xf32> to vector<32x8xf32>
    %cst = arith.constant dense<0.000000e+00> : vector<512x8xf32>
    %4 = tpu.matmul %1, %3, %cst {dimension_numbers = #tpu.dot_dimension_numbers<[1], [0], [0], [1], [0, 0, 1, 1], [], []>} : vector<512x32xf32>, vector<32x8xf32>, vector<512x8xf32> -> vector<512x8xf32>
    %c0_7 = arith.constant 0 : index
    %c0_8 = arith.constant 0 : index
    %c1 = arith.constant 1 : index
    %c0_9 = arith.constant 0 : index
    %5 = vector.load %arg1[%c0_7, %c0_8, %c1, %c0_9] : memref<2x18x18x32xf32, #tpu.memory_space<vmem>>, vector<2x16x16x32xf32>
    %6 = vector.shape_cast %5 : vector<2x16x16x32xf32> to vector<512x32xf32>
    %c0_10 = arith.constant 0 : index
    %c1_11 = arith.constant 1 : index
    %c0_12 = arith.constant 0 : index
    %c0_13 = arith.constant 0 : index
    %7 = vector.load %arg2[%c0_10, %c1_11, %c0_12, %c0_13] : memref<3x3x32x8xf32, #tpu.memory_space<vmem>>, vector<1x1x32x8xf32>
    %8 = vector.shape_cast %7 : vector<1x1x32x8xf32> to vector<32x8xf32>
    %cst_14 = arith.constant dense<0.000000e+00> : vector<512x8xf32>
    %9 = tpu.matmul %6, %8, %cst_14 {dimension_numbers = #tpu.dot_dimension_numbers<[1], [0], [0], [1], [0, 0, 1, 1], [], []>} : vector<512x32xf32>, vector<32x8xf32>, vector<512x8xf32> -> vector<512x8xf32>
    %10 = arith.addf %4, %9 : vector<512x8xf32>
    %c0_15 = arith.constant 0 : index
    %c0_16 = arith.constant 0 : index
    %c2 = arith.constant 2 : index
    %c0_17 = arith.constant 0 : index
    %11 = vector.load %arg1[%c0_15, %c0_16, %c2, %c0_17] : memref<2x18x18x32xf32, #tpu.memory_space<vmem>>, vector<2x16x16x32xf32>
    %12 = vector.shape_cast %11 : vector<2x16x16x32xf32> to vector<512x32xf32>
    %c0_18 = arith.constant 0 : index
    %c2_19 = arith.constant 2 : index
    %c0_20 = arith.constant 0 : index
    %c0_21 = arith.constant 0 : index
    %13 = vector.load %arg2[%c0_18, %c2_19, %c0_20, %c0_21] : memref<3x3x32x8xf32, #tpu.memory_space<vmem>>, vector<1x1x32x8xf32>
    %14 = vector.shape_cast %13 : vector<1x1x32x8xf32> to vector<32x8xf32>
    %cst_22 = arith.constant dense<0.000000e+00> : vector<512x8xf32>
    %15 = tpu.matmul %12, %14, %cst_22 {dimension_numbers = #tpu.dot_dimension_numbers<[1], [0], [0], [1], [0, 0, 1, 1], [], []>} : vector<512x32xf32>, vector<32x8xf32>, vector<512x8xf32> -> vector<512x8xf32>
    %16 = arith.addf %10, %15 : vector<512x8xf32>
    %c0_23 = arith.constant 0 : index
    %c1_24 = arith.constant 1 : index
    %c0_25 = arith.constant 0 : index
    %c0_26 = arith.constant 0 : index
    %17 = vector.load %arg1[%c0_23, %c1_24, %c0_25, %c0_26] : memref<2x18x18x32xf32, #tpu.memory_space<vmem>>, vector<2x16x16x32xf32>
    %18 = vector.shape_cast %17 : vector<2x16x16x32xf32> to vector<512x32xf32>
    %c1_27 = arith.constant 1 : index
    %c0_28 = arith.constant 0 : index
    %c0_29 = arith.constant 0 : index
    %c0_30 = arith.constant 0 : index
    %19 = vector.load %arg2[%c1_27, %c0_28, %c0_29, %c0_30] : memref<3x3x32x8xf32, #tpu.memory_space<vmem>>, vector<1x1x32x8xf32>
    %20 = vector.shape_cast %19 : vector<1x1x32x8xf32> to vector<32x8xf32>
    %cst_31 = arith.constant dense<0.000000e+00> : vector<512x8xf32>
    %21 = tpu.matmul %18, %20, %cst_31 {dimension_numbers = #tpu.dot_dimension_numbers<[1], [0], [0], [1], [0, 0, 1, 1], [], []>} : vector<512x32xf32>, vector<32x8xf32>, vector<512x8xf32> -> vector<512x8xf32>
    %22 = arith.addf %16, %21 : vector<512x8xf32>
    %c0_32 = arith.constant 0 : index
    %c1_33 = arith.constant 1 : index
    %c1_34 = arith.constant 1 : index
    %c0_35 = arith.constant 0 : index
    %23 = vector.load %arg1[%c0_32, %c1_33, %c1_34, %c0_35] : memref<2x18x18x32xf32, #tpu.memory_space<vmem>>, vector<2x16x16x32xf32>
    %24 = vector.shape_cast %23 : vector<2x16x16x32xf32> to vector<512x32xf32>
    %c1_36 = arith.constant 1 : index
    %c1_37 = arith.constant 1 : index
    %c0_38 = arith.constant 0 : index
    %c0_39 = arith.constant 0 : index
    %25 = vector.load %arg2[%c1_36, %c1_37, %c0_38, %c0_39] : memref<3x3x32x8xf32, #tpu.memory_space<vmem>>, vector<1x1x32x8xf32>
    %26 = vector.shape_cast %25 : vector<1x1x32x8xf32> to vector<32x8xf32>
    %cst_40 = arith.constant dense<0.000000e+00> : vector<512x8xf32>
    %27 = tpu.matmul %24, %26, %cst_40 {dimension_numbers = #tpu.dot_dimension_numbers<[1], [0], [0], [1], [0, 0, 1, 1], [], []>} : vector<512x32xf32>, vector<32x8xf32>, vector<512x8xf32> -> vector<512x8xf32>
    %28 = arith.addf %22, %27 : vector<512x8xf32>
    %c0_41 = arith.constant 0 : index
    %c1_42 = arith.constant 1 : index
    %c2_43 = arith.constant 2 : index
    %c0_44 = arith.constant 0 : index
    %29 = vector.load %arg1[%c0_41, %c1_42, %c2_43, %c0_44] : memref<2x18x18x32xf32, #tpu.memory_space<vmem>>, vector<2x16x16x32xf32>
    %30 = vector.shape_cast %29 : vector<2x16x16x32xf32> to vector<512x32xf32>
    %c1_45 = arith.constant 1 : index
    %c2_46 = arith.constant 2 : index
    %c0_47 = arith.constant 0 : index
    %c0_48 = arith.constant 0 : index
    %31 = vector.load %arg2[%c1_45, %c2_46, %c0_47, %c0_48] : memref<3x3x32x8xf32, #tpu.memory_space<vmem>>, vector<1x1x32x8xf32>
    %32 = vector.shape_cast %31 : vector<1x1x32x8xf32> to vector<32x8xf32>
    %cst_49 = arith.constant dense<0.000000e+00> : vector<512x8xf32>
    %33 = tpu.matmul %30, %32, %cst_49 {dimension_numbers = #tpu.dot_dimension_numbers<[1], [0], [0], [1], [0, 0, 1, 1], [], []>} : vector<512x32xf32>, vector<32x8xf32>, vector<512x8xf32> -> vector<512x8xf32>
    %34 = arith.addf %28, %33 : vector<512x8xf32>
    %c0_50 = arith.constant 0 : index
    %c2_51 = arith.constant 2 : index
    %c0_52 = arith.constant 0 : index
    %c0_53 = arith.constant 0 : index
    %35 = vector.load %arg1[%c0_50, %c2_51, %c0_52, %c0_53] : memref<2x18x18x32xf32, #tpu.memory_space<vmem>>, vector<2x16x16x32xf32>
    %36 = vector.shape_cast %35 : vector<2x16x16x32xf32> to vector<512x32xf32>
    %c2_54 = arith.constant 2 : index
    %c0_55 = arith.constant 0 : index
    %c0_56 = arith.constant 0 : index
    %c0_57 = arith.constant 0 : index
    %37 = vector.load %arg2[%c2_54, %c0_55, %c0_56, %c0_57] : memref<3x3x32x8xf32, #tpu.memory_space<vmem>>, vector<1x1x32x8xf32>
    %38 = vector.shape_cast %37 : vector<1x1x32x8xf32> to vector<32x8xf32>
    %cst_58 = arith.constant dense<0.000000e+00> : vector<512x8xf32>
    %39 = tpu.matmul %36, %38, %cst_58 {dimension_numbers = #tpu.dot_dimension_numbers<[1], [0], [0], [1], [0, 0, 1, 1], [], []>} : vector<512x32xf32>, vector<32x8xf32>, vector<512x8xf32> -> vector<512x8xf32>
    %40 = arith.addf %34, %39 : vector<512x8xf32>
    %c0_59 = arith.constant 0 : index
    %c2_60 = arith.constant 2 : index
    %c1_61 = arith.constant 1 : index
    %c0_62 = arith.constant 0 : index
    %41 = vector.load %arg1[%c0_59, %c2_60, %c1_61, %c0_62] : memref<2x18x18x32xf32, #tpu.memory_space<vmem>>, vector<2x16x16x32xf32>
    %42 = vector.shape_cast %41 : vector<2x16x16x32xf32> to vector<512x32xf32>
    %c2_63 = arith.constant 2 : index
    %c1_64 = arith.constant 1 : index
    %c0_65 = arith.constant 0 : index
    %c0_66 = arith.constant 0 : index
    %43 = vector.load %arg2[%c2_63, %c1_64, %c0_65, %c0_66] : memref<3x3x32x8xf32, #tpu.memory_space<vmem>>, vector<1x1x32x8xf32>
    %44 = vector.shape_cast %43 : vector<1x1x32x8xf32> to vector<32x8xf32>
    %cst_67 = arith.constant dense<0.000000e+00> : vector<512x8xf32>
    %45 = tpu.matmul %42, %44, %cst_67 {dimension_numbers = #tpu.dot_dimension_numbers<[1], [0], [0], [1], [0, 0, 1, 1], [], []>} : vector<512x32xf32>, vector<32x8xf32>, vector<512x8xf32> -> vector<512x8xf32>
    %46 = arith.addf %40, %45 : vector<512x8xf32>
    %c0_68 = arith.constant 0 : index
    %c2_69 = arith.constant 2 : index
    %c2_70 = arith.constant 2 : index
    %c0_71 = arith.constant 0 : index
    %47 = vector.load %arg1[%c0_68, %c2_69, %c2_70, %c0_71] : memref<2x18x18x32xf32, #tpu.memory_space<vmem>>, vector<2x16x16x32xf32>
    %48 = vector.shape_cast %47 : vector<2x16x16x32xf32> to vector<512x32xf32>
    %c2_72 = arith.constant 2 : index
    %c2_73 = arith.constant 2 : index
    %c0_74 = arith.constant 0 : index
    %c0_75 = arith.constant 0 : index
    %49 = vector.load %arg2[%c2_72, %c2_73, %c0_74, %c0_75] : memref<3x3x32x8xf32, #tpu.memory_space<vmem>>, vector<1x1x32x8xf32>
    %50 = vector.shape_cast %49 : vector<1x1x32x8xf32> to vector<32x8xf32>
    %cst_76 = arith.constant dense<0.000000e+00> : vector<512x8xf32>
    %51 = tpu.matmul %48, %50, %cst_76 {dimension_numbers = #tpu.dot_dimension_numbers<[1], [0], [0], [1], [0, 0, 1, 1], [], []>} : vector<512x32xf32>, vector<32x8xf32>, vector<512x8xf32> -> vector<512x8xf32>
    %52 = arith.addf %46, %51 : vector<512x8xf32>
    %c0_77 = arith.constant 0 : index
    %c0_78 = arith.constant 0 : index
    %53 = vector.load %arg3[%c0_77, %c0_78] : memref<1x8xf32, #tpu.memory_space<vmem>>, vector<1x8xf32>
    %54 = vector.broadcast %53 : vector<1x8xf32> to vector<512x8xf32>
    %55 = arith.addf %52, %54 : vector<512x8xf32>
    %56 = vector.shape_cast %55 : vector<512x8xf32> to vector<2x256x8xf32>
    %c0_79 = arith.constant 0 : index
    %c0_80 = arith.constant 0 : index
    %c0_81 = arith.constant 0 : index
    %57 = vector.load %arg4[%c0_79, %c0_80, %c0_81] : memref<2x256x8xf32, #tpu.memory_space<vmem>>, vector<2x256x8xf32>
    tpu.vector_store %arg4[%c0_79, %c0_80, %c0_81], %56 {strides = array<i32>} : memref<2x256x8xf32, #tpu.memory_space<vmem>>, vector<2x256x8xf32>,
    return
  }
  func.func @transform_0(%arg0: i32) -> (i32, i32, i32, i32) {
    %c0_i32 = arith.constant 0 : i32
    %c0_i32_0 = arith.constant 0 : i32
    %c0_i32_1 = arith.constant 0 : i32
    %c0_i32_2 = arith.constant 0 : i32
    return %arg0, %c0_i32, %c0_i32_0, %c0_i32_1 : i32, i32, i32, i32
  }
  func.func @transform_1(%arg0: i32) -> (i32, i32, i32, i32) {
    %c0_i32 = arith.constant 0 : i32
    %c0_i32_0 = arith.constant 0 : i32
    %c0_i32_1 = arith.constant 0 : i32
    %c0_i32_2 = arith.constant 0 : i32
    %c0_i32_3 = arith.constant 0 : i32
    return %c0_i32, %c0_i32_0, %c0_i32_1, %c0_i32_2 : i32, i32, i32, i32
  }
  func.func @transform_2(%arg0: i32) -> (i32, i32) {
    %c0_i32 = arith.constant 0 : i32
    %c0_i32_0 = arith.constant 0 : i32
    %c0_i32_1 = arith.constant 0 : i32
    return %c0_i32, %c0_i32_0 : i32, i32
  }
  func.func @transform_3(%arg0: i32) -> (i32, i32, i32) {
    %c0_i32 = arith.constant 0 : i32
    %c0_i32_0 = arith.constant 0 : i32
    %c0_i32_1 = arith.constant 0 : i32
    return %arg0, %c0_i32, %c0_i32_0 : i32, i32, i32
  }
}

</mosaic_0001>

<llo_original>
// kernel: tpu_custom_call.1
$region0: #{tpu_custom_call.1}
  #allocation0 [shape = 'u32[]', space=smem, size = 0x4, offset = 0x4, fixed_abs, tag = 'smem constant byte address 0x4 - core index']
  #allocation1 [shape = 'u32[72,128]{1,0:T(1,128)}', space=vmem, size = 0x9000, scoped, tag = 'internal scratch']
  %s0 = inlined_call_operand.vmem [shape: f32[2,18,18,32], index: 0, kind: input, shape index: {}]
  %s1 = inlined_call_operand.vmem [shape: f32[3,3,32,8], index: 1, kind: input, shape index: {}]
  %s2 = inlined_call_operand.vmem [shape: f32[1,8], index: 2, kind: input, shape index: {}]
  %s3 = inlined_call_operand.vmem [shape: f32[2,256,8], index: 3, kind: output, shape index: {}]
  %s4 = sld [smem:[#allocation0]]
  $region22: #{tpu_custom_call.1} parent=0
    _
  %s6 = ssub.s32 1, %s4
  %s7 = scalar_select 0, %s6, %s4
  // Predicated region
  $region2: #{tpu_custom_call.1} parent=0 // pred_check
    _
  $region3: #{tpu_custom_call.1} parent=0 // pred_check_branch
    %9 = sbr.rel (0) target = $region5
  $region4: #{tpu_custom_call.1} parent=0 // pred_region
    _
  $region5: #{tpu_custom_call.1} parent=0 // pred_fallthru
    _
  // Predicated region
  $region6: #{tpu_custom_call.1} parent=0 // pred_check
    _
  $region7: #{tpu_custom_call.1} parent=0 // pred_check_branch
    %11 = sbr.rel (0) target = $region9
  $region8: #{tpu_custom_call.1} parent=0 // pred_region
    _
  $region9: #{tpu_custom_call.1} parent=0 // pred_fallthru
    _
  // Predicated region
  $region10: #{tpu_custom_call.1} parent=0 // pred_check
    _
  $region11: #{tpu_custom_call.1} parent=0 // pred_check_branch
    %13 = sbr.rel (0) target = $region13
  $region12: #{tpu_custom_call.1} parent=0 // pred_region
    _
  $region13: #{tpu_custom_call.1} parent=0 // pred_fallthru
    _
  %v14 = vld [vmem:[%s0] sm:$0xff]
  %v15 = vld [vmem:[%s0 + $0x8] sm:$0xff]
  %v16 = vld [vmem:[%s0 + $0x18] sm:$0xff]
  %v17 = vld [vmem:[%s0 + $0x20] sm:$0xff]
  %v18 = vld [vmem:[%s0 + $0x30] sm:$0xff]
  %v19 = vld [vmem:[%s0 + $0x38] sm:$0xff]
  %v20 = vld [vmem:[%s0 + $0x48] sm:$0xff]
  %v21 = vld [vmem:[%s0 + $0x50] sm:$0xff]
  %v22 = vld [vmem:[%s0 + $0x60] sm:$0xff]
  %v23 = vld [vmem:[%s0 + $0x68] sm:$0xff]
  %v24 = vld [vmem:[%s0 + $0x78] sm:$0xff]
  %v25 = vld [vmem:[%s0 + $0x80] sm:$0xff]
  %v26 = vld [vmem:[%s0 + $0x90] sm:$0xff]
  %v27 = vld [vmem:[%s0 + $0x98] sm:$0xff]
  %v28 = vld [vmem:[%s0 + $0xa8] sm:$0xff]
  %v29 = vld [vmem:[%s0 + $0xb0] sm:$0xff]
  %v30 = vld [vmem:[%s0 + $0xc0] sm:$0xff]
  %v31 = vld [vmem:[%s0 + $0xc8] sm:$0xff]
  %v32 = vld [vmem:[%s0 + $0xd8] sm:$0xff]
  %v33 = vld [vmem:[%s0 + $0xe0] sm:$0xff]
  %v34 = vld [vmem:[%s0 + $0xf0] sm:$0xff]
  %v35 = vld [vmem:[%s0 + $0xf8] sm:$0xff]
  %v36 = vld [vmem:[%s0 + $0x108] sm:$0xff]
  %v37 = vld [vmem:[%s0 + $0x110] sm:$0xff]
  %v38 = vld [vmem:[%s0 + $0x120] sm:$0xff]
  %v39 = vld [vmem:[%s0 + $0x128] sm:$0xff]
  %v40 = vld [vmem:[%s0 + $0x138] sm:$0xff]
  %v41 = vld [vmem:[%s0 + $0x140] sm:$0xff]
  %v42 = vld [vmem:[%s0 + $0x150] sm:$0xff]
  %v43 = vld [vmem:[%s0 + $0x158] sm:$0xff]
  %v44 = vld [vmem:[%s0 + $0x168] sm:$0xff]
  %v45 = vld [vmem:[%s0 + $0x170] sm:$0xff]
  %v46 = vld [vmem:[%s0 + $0x1b0] sm:$0xff]
  %v47 = vld [vmem:[%s0 + $0x1b8] sm:$0xff]
  %v48 = vld [vmem:[%s0 + $0x1c8] sm:$0xff]
  %v49 = vld [vmem:[%s0 + $0x1d0] sm:$0xff]
  %v50 = vld [vmem:[%s0 + $0x1e0] sm:$0xff]
  %v51 = vld [vmem:[%s0 + $0x1e8] sm:$0xff]
  %v52 = vld [vmem:[%s0 + $0x1f8] sm:$0xff]
  %v53 = vld [vmem:[%s0 + $0x200] sm:$0xff]
  %v54 = vld [vmem:[%s0 + $0x210] sm:$0xff]
  %v55 = vld [vmem:[%s0 + $0x218] sm:$0xff]
  %v56 = vld [vmem:[%s0 + $0x228] sm:$0xff]
  %v57 = vld [vmem:[%s0 + $0x230] sm:$0xff]
  %v58 = vld [vmem:[%s0 + $0x240] sm:$0xff]
  %v59 = vld [vmem:[%s0 + $0x248] sm:$0xff]
  %v60 = vld [vmem:[%s0 + $0x258] sm:$0xff]
  %v61 = vld [vmem:[%s0 + $0x260] sm:$0xff]
  %v62 = vld [vmem:[%s0 + $0x270] sm:$0xff]
  %v63 = vld [vmem:[%s0 + $0x278] sm:$0xff]
  %v64 = vld [vmem:[%s0 + $0x288] sm:$0xff]
  %v65 = vld [vmem:[%s0 + $0x290] sm:$0xff]
  %v66 = vld [vmem:[%s0 + $0x2a0] sm:$0xff]
  %v67 = vld [vmem:[%s0 + $0x2a8] sm:$0xff]
  %v68 = vld [vmem:[%s0 + $0x2b8] sm:$0xff]
  %v69 = vld [vmem:[%s0 + $0x2c0] sm:$0xff]
  %v70 = vld [vmem:[%s0 + $0x2d0] sm:$0xff]
  %v71 = vld [vmem:[%s0 + $0x2d8] sm:$0xff]
  %v72 = vld [vmem:[%s0 + $0x2e8] sm:$0xff]
  %v73 = vld [vmem:[%s0 + $0x2f0] sm:$0xff]
  %v74 = vld [vmem:[%s0 + $0x300] sm:$0xff]
  %v75 = vld [vmem:[%s0 + $0x308] sm:$0xff]
  %v76 = vld [vmem:[%s0 + $0x318] sm:$0xff]
  %v77 = vld [vmem:[%s0 + $0x320] sm:$0xff]
  %v78 = vld [vmem:[%s1] sm:$0xff]
  %v79 = vld [vmem:[%s1 + $0x8] sm:$0xff]
  %v80 = vld [vmem:[%s1 + $0x10] sm:$0xff]
  %v81 = vld [vmem:[%s1 + $0x18] sm:$0xff]
  %v82 = vld [vmem:[%s0 + $0x1] sm:$0xff]
  %v83 = vld [vmem:[%s0 + $0x9] sm:$0xff]
  %v84 = vld [vmem:[%s0 + $0x19] sm:$0xff]
  %v85 = vld [vmem:[%s0 + $0x21] sm:$0xff]
  %v86 = vld [vmem:[%s0 + $0x31] sm:$0xff]
  %v87 = vld [vmem:[%s0 + $0x39] sm:$0xff]
  %v88 = vld [vmem:[%s0 + $0x49] sm:$0xff]
  %v89 = vld [vmem:[%s0 + $0x51] sm:$0xff]
  %v90 = vld [vmem:[%s0 + $0x61] sm:$0xff]
  %v91 = vld [vmem:[%s0 + $0x69] sm:$0xff]
  %v92 = vld [vmem:[%s0 + $0x79] sm:$0xff]
  %v93 = vld [vmem:[%s0 + $0x81] sm:$0xff]
  %v94 = vld [vmem:[%s0 + $0x91] sm:$0xff]
  %v95 = vld [vmem:[%s0 + $0x99] sm:$0xff]
  %v96 = vld [vmem:[%s0 + $0xa9] sm:$0xff]
  %v97 = vld [vmem:[%s0 + $0xb1] sm:$0xff]
  %v98 = vld [vmem:[%s0 + $0xc1] sm:$0xff]
  %v99 = vld [vmem:[%s0 + $0xc9] sm:$0xff]
  %v100 = vld [vmem:[%s0 + $0xd9] sm:$0xff]
  %v101 = vld [vmem:[%s0 + $0xe1] sm:$0xff]
  %v102 = vld [vmem:[%s0 + $0xf1] sm:$0xff]
  %v103 = vld [vmem:[%s0 + $0xf9] sm:$0xff]
  %v104 = vld [vmem:[%s0 + $0x109] sm:$0xff]
  %v105 = vld [vmem:[%s0 + $0x111] sm:$0xff]
  %v106 = vld [vmem:[%s0 + $0x121] sm:$0xff]
  %v107 = vld [vmem:[%s0 + $0x129] sm:$0xff]
  %v108 = vld [vmem:[%s0 + $0x139] sm:$0xff]
  %v109 = vld [vmem:[%s0 + $0x141] sm:$0xff]
  %v110 = vld [vmem:[%s0 + $0x151] sm:$0xff]
  %v111 = vld [vmem:[%s0 + $0x159] sm:$0xff]
  %v112 = vld [vmem:[%s0 + $0x169] sm:$0xff]
  %v113 = vld [vmem:[%s0 + $0x171] sm:$0xff]
  %v114 = vld [vmem:[%s0 + $0x1b1] sm:$0xff]
  %v115 = vld [vmem:[%s0 + $0x1b9] sm:$0xff]
  %v116 = vld [vmem:[%s0 + $0x1c9] sm:$0xff]
  %v117 = vld [vmem:[%s0 + $0x1d1] sm:$0xff]
  %v118 = vld [vmem:[%s0 + $0x1e1] sm:$0xff]
  %v119 = vld [vmem:[%s0 + $0x1e9] sm:$0xff]
  %v120 = vld [vmem:[%s0 + $0x1f9] sm:$0xff]
  %v121 = vld [vmem:[%s0 + $0x201] sm:$0xff]
  %v122 = vld [vmem:[%s0 + $0x211] sm:$0xff]
  %v123 = vld [vmem:[%s0 + $0x219] sm:$0xff]
  %v124 = vld [vmem:[%s0 + $0x229] sm:$0xff]
  %v125 = vld [vmem:[%s0 + $0x231] sm:$0xff]
  %v126 = vld [vmem:[%s0 + $0x241] sm:$0xff]
  %v127 = vld [vmem:[%s0 + $0x249] sm:$0xff]
  %v128 = vld [vmem:[%s0 + $0x259] sm:$0xff]
  %v129 = vld [vmem:[%s0 + $0x261] sm:$0xff]
  %v130 = vld [vmem:[%s0 + $0x271] sm:$0xff]
  %v131 = vld [vmem:[%s0 + $0x279] sm:$0xff]
  %v132 = vld [vmem:[%s0 + $0x289] sm:$0xff]
  %v133 = vld [vmem:[%s0 + $0x291] sm:$0xff]
  %v134 = vld [vmem:[%s0 + $0x2a1] sm:$0xff]
  %v135 = vld [vmem:[%s0 + $0x2a9] sm:$0xff]
  %v136 = vld [vmem:[%s0 + $0x2b9] sm:$0xff]
  %v137 = vld [vmem:[%s0 + $0x2c1] sm:$0xff]
  %v138 = vld [vmem:[%s0 + $0x2d1] sm:$0xff]
  %v139 = vld [vmem:[%s0 + $0x2d9] sm:$0xff]
  %v140 = vld [vmem:[%s0 + $0x2e9] sm:$0xff]
  %v141 = vld [vmem:[%s0 + $0x2f1] sm:$0xff]
  %v142 = vld [vmem:[%s0 + $0x301] sm:$0xff]
  %v143 = vld [vmem:[%s0 + $0x309] sm:$0xff]
  %v144 = vld [vmem:[%s0 + $0x319] sm:$0xff]
  %v145 = vld [vmem:[%s0 + $0x321] sm:$0xff]
  %s146 = scalar_lea.vmem %s1, 32
  %v147 = vld [vmem:[%s146] sm:$0xff]
  %v148 = vld [vmem:[%s146 + $0x8] sm:$0xff]
  %v149 = vld [vmem:[%s146 + $0x10] sm:$0xff]
  %v150 = vld [vmem:[%s146 + $0x18] sm:$0xff]
  %vm151 = vcmask 261120
  %v153 = vsel %vm151, %v82, 0
  %v156 = vsel %vm151, %v83, 0
  %v159 = vsel %vm151, %v84, 0
  %v162 = vsel %vm151, %v85, 0
  %v165 = vsel %vm151, %v86, 0
  %v168 = vsel %vm151, %v87, 0
  %v171 = vsel %vm151, %v88, 0
  %v174 = vsel %vm151, %v89, 0
  %v177 = vsel %vm151, %v90, 0
  %v180 = vsel %vm151, %v91, 0
  %v183 = vsel %vm151, %v92, 0
  %v186 = vsel %vm151, %v93, 0
  %v189 = vsel %vm151, %v94, 0
  %v192 = vsel %vm151, %v95, 0
  %v195 = vsel %vm151, %v96, 0
  %v198 = vsel %vm151, %v97, 0
  %v201 = vsel %vm151, %v98, 0
  %v204 = vsel %vm151, %v99, 0
  %v207 = vsel %vm151, %v100, 0
  %v210 = vsel %vm151, %v101, 0
  %v213 = vsel %vm151, %v102, 0
  %v216 = vsel %vm151, %v103, 0
  %v219 = vsel %vm151, %v104, 0
  %v222 = vsel %vm151, %v105, 0
  %v225 = vsel %vm151, %v106, 0
  %v228 = vsel %vm151, %v107, 0
  %v231 = vsel %vm151, %v108, 0
  %v234 = vsel %vm151, %v109, 0
  %v237 = vsel %vm151, %v110, 0
  %v240 = vsel %vm151, %v111, 0
  %v243 = vsel %vm151, %v112, 0
  %v246 = vsel %vm151, %v113, 0
  %v249 = vsel %vm151, %v114, 0
  %v252 = vsel %vm151, %v115, 0
  %v255 = vsel %vm151, %v116, 0
  %v258 = vsel %vm151, %v117, 0
  %v261 = vsel %vm151, %v118, 0
  %v264 = vsel %vm151, %v119, 0
  %v267 = vsel %vm151, %v120, 0
  %v270 = vsel %vm151, %v121, 0
  %v273 = vsel %vm151, %v122, 0
  %v276 = vsel %vm151, %v123, 0
  %v279 = vsel %vm151, %v124, 0
  %v282 = vsel %vm151, %v125, 0
  %v285 = vsel %vm151, %v126, 0
  %v288 = vsel %vm151, %v127, 0
  %v291 = vsel %vm151, %v128, 0
  %v294 = vsel %vm151, %v129, 0
  %v297 = vsel %vm151, %v130, 0
  %v300 = vsel %vm151, %v131, 0
  %v303 = vsel %vm151, %v132, 0
  %v306 = vsel %vm151, %v133, 0
  %v309 = vsel %vm151, %v134, 0
  %v312 = vsel %vm151, %v135, 0
  %v315 = vsel %vm151, %v136, 0
  %v318 = vsel %vm151, %v137, 0
  %v321 = vsel %vm151, %v138, 0
  %v324 = vsel %vm151, %v139, 0
  %v327 = vsel %vm151, %v140, 0
  %v330 = vsel %vm151, %v141, 0
  %v333 = vsel %vm151, %v142, 0
  %v336 = vsel %vm151, %v143, 0
  %v339 = vsel %vm151, %v144, 0
  %v342 = vsel %vm151, %v145, 0
  %344 = vmatpush.msra.mxu0 0.0
  %345 = vmatpush.msra.mxu0 0.0
  %346 = vmatpush.msra.mxu0 0.0
  %347 = vmatpush.msra.mxu0 0.0
  %348 = vmatpush.msra.mxu0 0.0
  %349 = vmatpush.msra.mxu0 0.0
  %350 = vmatpush.msra.mxu0 0.0
  %351 = vmatpush.msra.mxu0 0.0
  %352 = vmatpush.msra.mxu0 0.0
  %353 = vmatpush.msra.mxu0 0.0
  %354 = vmatpush.msra.mxu0 0.0
  %355 = vmatpush.msra.mxu0 0.0
  %356 = vmatpush.msra.mxu0 %v150
  %357 = vmatpush.msra.mxu0 %v149
  %358 = vmatpush.msra.mxu0 %v148
  %359 = vmatpush.msra.mxu0 %v147
  %360 = vmatmul.f32.gmra.mxu0 %v153
  %v361 = vpop.f32.mrf.mxu0
  %v362 = vadd.f32 0.0, %v361
  %363 = vmatmul.f32.gmra.mxu0 %v156
  %v364 = vpop.f32.mrf.mxu0
  %v365 = vadd.f32 0.0, %v364
  %366 = vmatmul.f32.gmra.mxu0 %v159
  %v367 = vpop.f32.mrf.mxu0
  %v368 = vadd.f32 0.0, %v367
  %369 = vmatmul.f32.gmra.mxu0 %v162
  %v370 = vpop.f32.mrf.mxu0
  %v371 = vadd.f32 0.0, %v370
  %372 = vmatmul.f32.gmra.mxu0 %v165
  %v373 = vpop.f32.mrf.mxu0
  %v374 = vadd.f32 0.0, %v373
  %375 = vmatmul.f32.gmra.mxu0 %v168
  %v376 = vpop.f32.mrf.mxu0
  %v377 = vadd.f32 0.0, %v376
  %378 = vmatmul.f32.gmra.mxu0 %v171
  %v379 = vpop.f32.mrf.mxu0
  %v380 = vadd.f32 0.0, %v379
  %381 = vmatmul.f32.gmra.mxu0 %v174
  %v382 = vpop.f32.mrf.mxu0
  %v383 = vadd.f32 0.0, %v382
  %384 = vmatmul.f32.gmra.mxu0 %v177
  %v385 = vpop.f32.mrf.mxu0
  %v386 = vadd.f32 0.0, %v385
  %387 = vmatmul.f32.gmra.mxu0 %v180
  %v388 = vpop.f32.mrf.mxu0
  %v389 = vadd.f32 0.0, %v388
  %390 = vmatmul.f32.gmra.mxu0 %v183
  %v391 = vpop.f32.mrf.mxu0
  %v392 = vadd.f32 0.0, %v391
  %393 = vmatmul.f32.gmra.mxu0 %v186
  %v394 = vpop.f32.mrf.mxu0
  %v395 = vadd.f32 0.0, %v394
  %396 = vmatmul.f32.gmra.mxu0 %v189
  %v397 = vpop.f32.mrf.mxu0
  %v398 = vadd.f32 0.0, %v397
  %399 = vmatmul.f32.gmra.mxu0 %v192
  %v400 = vpop.f32.mrf.mxu0
  %v401 = vadd.f32 0.0, %v400
  %402 = vmatmul.f32.gmra.mxu0 %v195
  %v403 = vpop.f32.mrf.mxu0
  %v404 = vadd.f32 0.0, %v403
  %405 = vmatmul.f32.gmra.mxu0 %v198
  %v406 = vpop.f32.mrf.mxu0
  %v407 = vadd.f32 0.0, %v406
  %408 = vmatmul.f32.gmra.mxu0 %v201
  %v409 = vpop.f32.mrf.mxu0
  %v410 = vadd.f32 0.0, %v409
  %411 = vmatmul.f32.gmra.mxu0 %v204
  %v412 = vpop.f32.mrf.mxu0
  %v413 = vadd.f32 0.0, %v412
  %414 = vmatmul.f32.gmra.mxu0 %v207
  %v415 = vpop.f32.mrf.mxu0
  %v416 = vadd.f32 0.0, %v415
  %417 = vmatmul.f32.gmra.mxu0 %v210
  %v418 = vpop.f32.mrf.mxu0
  %v419 = vadd.f32 0.0, %v418
  %420 = vmatmul.f32.gmra.mxu0 %v213
  %v421 = vpop.f32.mrf.mxu0
  %v422 = vadd.f32 0.0, %v421
  %423 = vmatmul.f32.gmra.mxu0 %v216
  %v424 = vpop.f32.mrf.mxu0
  %v425 = vadd.f32 0.0, %v424
  %426 = vmatmul.f32.gmra.mxu0 %v219
  %v427 = vpop.f32.mrf.mxu0
  %v428 = vadd.f32 0.0, %v427
  %429 = vmatmul.f32.gmra.mxu0 %v222
  %v430 = vpop.f32.mrf.mxu0
  %v431 = vadd.f32 0.0, %v430
  %432 = vmatmul.f32.gmra.mxu0 %v225
  %v433 = vpop.f32.mrf.mxu0
  %v434 = vadd.f32 0.0, %v433
  %435 = vmatmul.f32.gmra.mxu0 %v228
  %v436 = vpop.f32.mrf.mxu0
  %v437 = vadd.f32 0.0, %v436
  %438 = vmatmul.f32.gmra.mxu0 %v231
  %v439 = vpop.f32.mrf.mxu0
  %v440 = vadd.f32 0.0, %v439
  %441 = vmatmul.f32.gmra.mxu0 %v234
  %v442 = vpop.f32.mrf.mxu0
  %v443 = vadd.f32 0.0, %v442
  %444 = vmatmul.f32.gmra.mxu0 %v237
  %v445 = vpop.f32.mrf.mxu0
  %v446 = vadd.f32 0.0, %v445
  %447 = vmatmul.f32.gmra.mxu0 %v240
  %v448 = vpop.f32.mrf.mxu0
  %v449 = vadd.f32 0.0, %v448
  %450 = vmatmul.f32.gmra.mxu0 %v243
  %v451 = vpop.f32.mrf.mxu0
  %v452 = vadd.f32 0.0, %v451
  %453 = vmatmul.f32.gmra.mxu0 %v246
  %v454 = vpop.f32.mrf.mxu0
  %v455 = vadd.f32 0.0, %v454
  %456 = vmatmul.f32.gmra.mxu0 %v249
  %v457 = vpop.f32.mrf.mxu0
  %v458 = vadd.f32 0.0, %v457
  %459 = vmatmul.f32.gmra.mxu0 %v252
  %v460 = vpop.f32.mrf.mxu0
  %v461 = vadd.f32 0.0, %v460
  %462 = vmatmul.f32.gmra.mxu0 %v255
  %v463 = vpop.f32.mrf.mxu0
  %v464 = vadd.f32 0.0, %v463
  %465 = vmatmul.f32.gmra.mxu0 %v258
  %v466 = vpop.f32.mrf.mxu0
  %v467 = vadd.f32 0.0, %v466
  %468 = vmatmul.f32.gmra.mxu0 %v261
  %v469 = vpop.f32.mrf.mxu0
  %v470 = vadd.f32 0.0, %v469
  %471 = vmatmul.f32.gmra.mxu0 %v264
  %v472 = vpop.f32.mrf.mxu0
  %v473 = vadd.f32 0.0, %v472
  %474 = vmatmul.f32.gmra.mxu0 %v267
  %v475 = vpop.f32.mrf.mxu0
  %v476 = vadd.f32 0.0, %v475
  %477 = vmatmul.f32.gmra.mxu0 %v270
  %v478 = vpop.f32.mrf.mxu0
  %v479 = vadd.f32 0.0, %v478
  %480 = vmatmul.f32.gmra.mxu0 %v273
  %v481 = vpop.f32.mrf.mxu0
  %v482 = vadd.f32 0.0, %v481
  %483 = vmatmul.f32.gmra.mxu0 %v276
  %v484 = vpop.f32.mrf.mxu0
  %v485 = vadd.f32 0.0, %v484
  %486 = vmatmul.f32.gmra.mxu0 %v279
  %v487 = vpop.f32.mrf.mxu0
  %v488 = vadd.f32 0.0, %v487
  %489 = vmatmul.f32.gmra.mxu0 %v282
  %v490 = vpop.f32.mrf.mxu0
  %v491 = vadd.f32 0.0, %v490
  %492 = vmatmul.f32.gmra.mxu0 %v285
  %v493 = vpop.f32.mrf.mxu0
  %v494 = vadd.f32 0.0, %v493
  %495 = vmatmul.f32.gmra.mxu0 %v288
  %v496 = vpop.f32.mrf.mxu0
  %v497 = vadd.f32 0.0, %v496
  %498 = vmatmul.f32.gmra.mxu0 %v291
  %v499 = vpop.f32.mrf.mxu0
  %v500 = vadd.f32 0.0, %v499
  %501 = vmatmul.f32.gmra.mxu0 %v294
  %v502 = vpop.f32.mrf.mxu0
  %v503 = vadd.f32 0.0, %v502
  %504 = vmatmul.f32.gmra.mxu0 %v297
  %v505 = vpop.f32.mrf.mxu0
  %v506 = vadd.f32 0.0, %v505
  %507 = vmatmul.f32.gmra.mxu0 %v300
  %v508 = vpop.f32.mrf.mxu0
  %v509 = vadd.f32 0.0, %v508
  %510 = vmatmul.f32.gmra.mxu0 %v303
  %v511 = vpop.f32.mrf.mxu0
  %v512 = vadd.f32 0.0, %v511
  %513 = vmatmul.f32.gmra.mxu0 %v306
  %v514 = vpop.f32.mrf.mxu0
  %v515 = vadd.f32 0.0, %v514
  %516 = vmatmul.f32.gmra.mxu0 %v309
  %v517 = vpop.f32.mrf.mxu0
  %v518 = vadd.f32 0.0, %v517
  %519 = vmatmul.f32.gmra.mxu0 %v312
  %v520 = vpop.f32.mrf.mxu0
  %v521 = vadd.f32 0.0, %v520
  %522 = vmatmul.f32.gmra.mxu0 %v315
  %v523 = vpop.f32.mrf.mxu0
  %v524 = vadd.f32 0.0, %v523
  %525 = vmatmul.f32.gmra.mxu0 %v318
  %v526 = vpop.f32.mrf.mxu0
  %v527 = vadd.f32 0.0, %v526
  %528 = vmatmul.f32.gmra.mxu0 %v321
  %v529 = vpop.f32.mrf.mxu0
  %v530 = vadd.f32 0.0, %v529
  %531 = vmatmul.f32.gmra.mxu0 %v324
  %v532 = vpop.f32.mrf.mxu0
  %v533 = vadd.f32 0.0, %v532
  %534 = vmatmul.f32.gmra.mxu0 %v327
  %v535 = vpop.f32.mrf.mxu0
  %v536 = vadd.f32 0.0, %v535
  %537 = vmatmul.f32.gmra.mxu0 %v330
  %v538 = vpop.f32.mrf.mxu0
  %v539 = vadd.f32 0.0, %v538
  %540 = vmatmul.f32.gmra.mxu0 %v333
  %v541 = vpop.f32.mrf.mxu0
  %v542 = vadd.f32 0.0, %v541
  %543 = vmatmul.f32.gmra.mxu0 %v336
  %v544 = vpop.f32.mrf.mxu0
  %v545 = vadd.f32 0.0, %v544
  %546 = vmatmul.f32.gmra.mxu0 %v339
  %v547 = vpop.f32.mrf.mxu0
  %v548 = vadd.f32 0.0, %v547
  %549 = vmatmul.f32.gmra.mxu0 %v342
  %v550 = vpop.f32.mrf.mxu0
  %v551 = vadd.f32 0.0, %v550
  %552 = vdwg.mxu0
  %v554 = vsel %vm151, %v14, 0
  %v557 = vsel %vm151, %v15, 0
  %v560 = vsel %vm151, %v16, 0
  %v563 = vsel %vm151, %v17, 0
  %v566 = vsel %vm151, %v18, 0
  %v569 = vsel %vm151, %v19, 0
  %v572 = vsel %vm151, %v20, 0
  %v575 = vsel %vm151, %v21, 0
  %v578 = vsel %vm151, %v22, 0
  %v581 = vsel %vm151, %v23, 0
  %v584 = vsel %vm151, %v24, 0
  %v587 = vsel %vm151, %v25, 0
  %v590 = vsel %vm151, %v26, 0
  %v593 = vsel %vm151, %v27, 0
  %v596 = vsel %vm151, %v28, 0
  %v599 = vsel %vm151, %v29, 0
  %v602 = vsel %vm151, %v30, 0
  %v605 = vsel %vm151, %v31, 0
  %v608 = vsel %vm151, %v32, 0
  %v611 = vsel %vm151, %v33, 0
  %v614 = vsel %vm151, %v34, 0
  %v617 = vsel %vm151, %v35, 0
  %v620 = vsel %vm151, %v36, 0
  %v623 = vsel %vm151, %v37, 0
  %v626 = vsel %vm151, %v38, 0
  %v629 = vsel %vm151, %v39, 0
  %v632 = vsel %vm151, %v40, 0
  %v635 = vsel %vm151, %v41, 0
  %v638 = vsel %vm151, %v42, 0
  %v641 = vsel %vm151, %v43, 0
  %v644 = vsel %vm151, %v44, 0
  %v647 = vsel %vm151, %v45, 0
  %v650 = vsel %vm151, %v46, 0
  %v653 = vsel %vm151, %v47, 0
  %v656 = vsel %vm151, %v48, 0
  %v659 = vsel %vm151, %v49, 0
  %v662 = vsel %vm151, %v50, 0
  %v665 = vsel %vm151, %v51, 0
  %v668 = vsel %vm151, %v52, 0
  %v671 = vsel %vm151, %v53, 0
  %v674 = vsel %vm151, %v54, 0
  %v677 = vsel %vm151, %v55, 0
  %v680 = vsel %vm151, %v56, 0
  %v683 = vsel %vm151, %v57, 0
  %v686 = vsel %vm151, %v58, 0
  %v689 = vsel %vm151, %v59, 0
  %v692 = vsel %vm151, %v60, 0
  %v695 = vsel %vm151, %v61, 0
  %v698 = vsel %vm151, %v62, 0
  %v701 = vsel %vm151, %v63, 0
  %v704 = vsel %vm151, %v64, 0
  %v707 = vsel %vm151, %v65, 0
  %v710 = vsel %vm151, %v66, 0
  %v713 = vsel %vm151, %v67, 0
  %v716 = vsel %vm151, %v68, 0
  %v719 = vsel %vm151, %v69, 0
  %v722 = vsel %vm151, %v70, 0
  %v725 = vsel %vm151, %v71, 0
  %v728 = vsel %vm151, %v72, 0
  %v731 = vsel %vm151, %v73, 0
  %v734 = vsel %vm151, %v74, 0
  %v737 = vsel %vm151, %v75, 0
  %v740 = vsel %vm151, %v76, 0
  %v743 = vsel %vm151, %v77, 0
  %745 = vmatpush.msra.mxu0 0.0
  %746 = vmatpush.msra.mxu0 0.0
  %747 = vmatpush.msra.mxu0 0.0
  %748 = vmatpush.msra.mxu0 0.0
  %749 = vmatpush.msra.mxu0 0.0
  %750 = vmatpush.msra.mxu0 0.0
  %751 = vmatpush.msra.mxu0 0.0
  %752 = vmatpush.msra.mxu0 0.0
  %753 = vmatpush.msra.mxu0 0.0
  %754 = vmatpush.msra.mxu0 0.0
  %755 = vmatpush.msra.mxu0 0.0
  %756 = vmatpush.msra.mxu0 0.0
  %757 = vmatpush.msra.mxu0 %v81
  %758 = vmatpush.msra.mxu0 %v80
  %759 = vmatpush.msra.mxu0 %v79
  %760 = vmatpush.msra.mxu0 %v78
  %761 = vmatmul.f32.gmra.mxu0 %v554
  %v762 = vpop.f32.mrf.mxu0
  %v763 = vadd.f32 %v362, %v762
  %764 = vmatmul.f32.gmra.mxu0 %v557
  %v765 = vpop.f32.mrf.mxu0
  %v766 = vadd.f32 %v365, %v765
  %767 = vmatmul.f32.gmra.mxu0 %v560
  %v768 = vpop.f32.mrf.mxu0
  %v769 = vadd.f32 %v368, %v768
  %770 = vmatmul.f32.gmra.mxu0 %v563
  %v771 = vpop.f32.mrf.mxu0
  %v772 = vadd.f32 %v371, %v771
  %773 = vmatmul.f32.gmra.mxu0 %v566
  %v774 = vpop.f32.mrf.mxu0
  %v775 = vadd.f32 %v374, %v774
  %776 = vmatmul.f32.gmra.mxu0 %v569
  %v777 = vpop.f32.mrf.mxu0
  %v778 = vadd.f32 %v377, %v777
  %779 = vmatmul.f32.gmra.mxu0 %v572
  %v780 = vpop.f32.mrf.mxu0
  %v781 = vadd.f32 %v380, %v780
  %782 = vmatmul.f32.gmra.mxu0 %v575
  %v783 = vpop.f32.mrf.mxu0
  %v784 = vadd.f32 %v383, %v783
  %785 = vmatmul.f32.gmra.mxu0 %v578
  %v786 = vpop.f32.mrf.mxu0
  %v787 = vadd.f32 %v386, %v786
  %788 = vmatmul.f32.gmra.mxu0 %v581
  %v789 = vpop.f32.mrf.mxu0
  %v790 = vadd.f32 %v389, %v789
  %791 = vmatmul.f32.gmra.mxu0 %v584
  %v792 = vpop.f32.mrf.mxu0
  %v793 = vadd.f32 %v392, %v792
  %794 = vmatmul.f32.gmra.mxu0 %v587
  %v795 = vpop.f32.mrf.mxu0
  %v796 = vadd.f32 %v395, %v795
  %797 = vmatmul.f32.gmra.mxu0 %v590
  %v798 = vpop.f32.mrf.mxu0
  %v799 = vadd.f32 %v398, %v798
  %800 = vmatmul.f32.gmra.mxu0 %v593
  %v801 = vpop.f32.mrf.mxu0
  %v802 = vadd.f32 %v401, %v801
  %803 = vmatmul.f32.gmra.mxu0 %v596
  %v804 = vpop.f32.mrf.mxu0
  %v805 = vadd.f32 %v404, %v804
  %806 = vmatmul.f32.gmra.mxu0 %v599
  %v807 = vpop.f32.mrf.mxu0
  %v808 = vadd.f32 %v407, %v807
  %809 = vmatmul.f32.gmra.mxu0 %v602
  %v810 = vpop.f32.mrf.mxu0
  %v811 = vadd.f32 %v410, %v810
  %812 = vmatmul.f32.gmra.mxu0 %v605
  %v813 = vpop.f32.mrf.mxu0
  %v814 = vadd.f32 %v413, %v813
  %815 = vmatmul.f32.gmra.mxu0 %v608
  %v816 = vpop.f32.mrf.mxu0
  %v817 = vadd.f32 %v416, %v816
  %818 = vmatmul.f32.gmra.mxu0 %v611
  %v819 = vpop.f32.mrf.mxu0
  %v820 = vadd.f32 %v419, %v819
  %821 = vmatmul.f32.gmra.mxu0 %v614
  %v822 = vpop.f32.mrf.mxu0
  %v823 = vadd.f32 %v422, %v822
  %824 = vmatmul.f32.gmra.mxu0 %v617
  %v825 = vpop.f32.mrf.mxu0
  %v826 = vadd.f32 %v425, %v825
  %827 = vmatmul.f32.gmra.mxu0 %v620
  %v828 = vpop.f32.mrf.mxu0
  %v829 = vadd.f32 %v428, %v828
  %830 = vmatmul.f32.gmra.mxu0 %v623
  %v831 = vpop.f32.mrf.mxu0
  %v832 = vadd.f32 %v431, %v831
  %833 = vmatmul.f32.gmra.mxu0 %v626
  %v834 = vpop.f32.mrf.mxu0
  %v835 = vadd.f32 %v434, %v834
  %836 = vmatmul.f32.gmra.mxu0 %v629
  %v837 = vpop.f32.mrf.mxu0
  %v838 = vadd.f32 %v437, %v837
  %839 = vmatmul.f32.gmra.mxu0 %v632
  %v840 = vpop.f32.mrf.mxu0
  %v841 = vadd.f32 %v440, %v840
  %842 = vmatmul.f32.gmra.mxu0 %v635
  %v843 = vpop.f32.mrf.mxu0
  %v844 = vadd.f32 %v443, %v843
  %845 = vmatmul.f32.gmra.mxu0 %v638
  %v846 = vpop.f32.mrf.mxu0
  %v847 = vadd.f32 %v446, %v846
  %848 = vmatmul.f32.gmra.mxu0 %v641
  %v849 = vpop.f32.mrf.mxu0
  %v850 = vadd.f32 %v449, %v849
  %851 = vmatmul.f32.gmra.mxu0 %v644
  %v852 = vpop.f32.mrf.mxu0
  %v853 = vadd.f32 %v452, %v852
  %854 = vmatmul.f32.gmra.mxu0 %v647
  %v855 = vpop.f32.mrf.mxu0
  %v856 = vadd.f32 %v455, %v855
  %857 = vmatmul.f32.gmra.mxu0 %v650
  %v858 = vpop.f32.mrf.mxu0
  %v859 = vadd.f32 %v458, %v858
  %860 = vmatmul.f32.gmra.mxu0 %v653
  %v861 = vpop.f32.mrf.mxu0
  %v862 = vadd.f32 %v461, %v861
  %863 = vmatmul.f32.gmra.mxu0 %v656
  %v864 = vpop.f32.mrf.mxu0
  %v865 = vadd.f32 %v464, %v864
  %866 = vmatmul.f32.gmra.mxu0 %v659
  %v867 = vpop.f32.mrf.mxu0
  %v868 = vadd.f32 %v467, %v867
  %869 = vmatmul.f32.gmra.mxu0 %v662
  %v870 = vpop.f32.mrf.mxu0
  %v871 = vadd.f32 %v470, %v870
  %872 = vmatmul.f32.gmra.mxu0 %v665
  %v873 = vpop.f32.mrf.mxu0
  %v874 = vadd.f32 %v473, %v873
  %875 = vmatmul.f32.gmra.mxu0 %v668
  %v876 = vpop.f32.mrf.mxu0
  %v877 = vadd.f32 %v476, %v876
  %878 = vmatmul.f32.gmra.mxu0 %v671
  %v879 = vpop.f32.mrf.mxu0
  %v880 = vadd.f32 %v479, %v879
  %881 = vmatmul.f32.gmra.mxu0 %v674
  %v882 = vpop.f32.mrf.mxu0
  %v883 = vadd.f32 %v482, %v882
  %884 = vmatmul.f32.gmra.mxu0 %v677
  %v885 = vpop.f32.mrf.mxu0
  %v886 = vadd.f32 %v485, %v885
  %887 = vmatmul.f32.gmra.mxu0 %v680
  %v888 = vpop.f32.mrf.mxu0
  %v889 = vadd.f32 %v488, %v888
  %890 = vmatmul.f32.gmra.mxu0 %v683
  %v891 = vpop.f32.mrf.mxu0
  %v892 = vadd.f32 %v491, %v891
  %893 = vmatmul.f32.gmra.mxu0 %v686
  %v894 = vpop.f32.mrf.mxu0
  %v895 = vadd.f32 %v494, %v894
  %896 = vmatmul.f32.gmra.mxu0 %v689
  %v897 = vpop.f32.mrf.mxu0
  %v898 = vadd.f32 %v497, %v897
  %899 = vmatmul.f32.gmra.mxu0 %v692
  %v900 = vpop.f32.mrf.mxu0
  %v901 = vadd.f32 %v500, %v900
  %902 = vmatmul.f32.gmra.mxu0 %v695
  %v903 = vpop.f32.mrf.mxu0
  %v904 = vadd.f32 %v503, %v903
  %905 = vmatmul.f32.gmra.mxu0 %v698
  %v906 = vpop.f32.mrf.mxu0
  %v907 = vadd.f32 %v506, %v906
  %908 = vmatmul.f32.gmra.mxu0 %v701
  %v909 = vpop.f32.mrf.mxu0
  %v910 = vadd.f32 %v509, %v909
  %911 = vmatmul.f32.gmra.mxu0 %v704
  %v912 = vpop.f32.mrf.mxu0
  %v913 = vadd.f32 %v512, %v912
  %914 = vmatmul.f32.gmra.mxu0 %v707
  %v915 = vpop.f32.mrf.mxu0
  %v916 = vadd.f32 %v515, %v915
  %917 = vmatmul.f32.gmra.mxu0 %v710
  %v918 = vpop.f32.mrf.mxu0
  %v919 = vadd.f32 %v518, %v918
  %920 = vmatmul.f32.gmra.mxu0 %v713
  %v921 = vpop.f32.mrf.mxu0
  %v922 = vadd.f32 %v521, %v921
  %923 = vmatmul.f32.gmra.mxu0 %v716
  %v924 = vpop.f32.mrf.mxu0
  %v925 = vadd.f32 %v524, %v924
  %926 = vmatmul.f32.gmra.mxu0 %v719
  %v927 = vpop.f32.mrf.mxu0
  %v928 = vadd.f32 %v527, %v927
  %929 = vmatmul.f32.gmra.mxu0 %v722
  %v930 = vpop.f32.mrf.mxu0
  %v931 = vadd.f32 %v530, %v930
  %932 = vmatmul.f32.gmra.mxu0 %v725
  %v933 = vpop.f32.mrf.mxu0
  %v934 = vadd.f32 %v533, %v933
  %935 = vmatmul.f32.gmra.mxu0 %v728
  %v936 = vpop.f32.mrf.mxu0
  %v937 = vadd.f32 %v536, %v936
  %938 = vmatmul.f32.gmra.mxu0 %v731
  %v939 = vpop.f32.mrf.mxu0
  %v940 = vadd.f32 %v539, %v939
  %941 = vmatmul.f32.gmra.mxu0 %v734
  %v942 = vpop.f32.mrf.mxu0
  %v943 = vadd.f32 %v542, %v942
  %944 = vmatmul.f32.gmra.mxu0 %v737
  %v945 = vpop.f32.mrf.mxu0
  %v946 = vadd.f32 %v545, %v945
  %947 = vmatmul.f32.gmra.mxu0 %v740
  %v948 = vpop.f32.mrf.mxu0
  %v949 = vadd.f32 %v548, %v948
  %950 = vmatmul.f32.gmra.mxu0 %v743
  %v951 = vpop.f32.mrf.mxu0
  %v952 = vadd.f32 %v551, %v951
  %953 = vdwg.mxu0
  %v954 = vld [vmem:[%s0 + $0x2] sm:$0xff]
  %v955 = vld [vmem:[%s0 + $0xa] sm:$0xff]
  %v956 = vld [vmem:[%s0 + $0x1a] sm:$0xff]
  %v957 = vld [vmem:[%s0 + $0x22] sm:$0xff]
  %v958 = vld [vmem:[%s0 + $0x32] sm:$0xff]
  %v959 = vld [vmem:[%s0 + $0x3a] sm:$0xff]
  %v960 = vld [vmem:[%s0 + $0x4a] sm:$0xff]
  %v961 = vld [vmem:[%s0 + $0x52] sm:$0xff]
  %v962 = vld [vmem:[%s0 + $0x62] sm:$0xff]
  %v963 = vld [vmem:[%s0 + $0x6a] sm:$0xff]
  %v964 = vld [vmem:[%s0 + $0x7a] sm:$0xff]
  %v965 = vld [vmem:[%s0 + $0x82] sm:$0xff]
  %v966 = vld [vmem:[%s0 + $0x92] sm:$0xff]
  %v967 = vld [vmem:[%s0 + $0x9a] sm:$0xff]
  %v968 = vld [vmem:[%s0 + $0xaa] sm:$0xff]
  %v969 = vld [vmem:[%s0 + $0xb2] sm:$0xff]
  %v970 = vld [vmem:[%s0 + $0xc2] sm:$0xff]
  %v971 = vld [vmem:[%s0 + $0xca] sm:$0xff]
  %v972 = vld [vmem:[%s0 + $0xda] sm:$0xff]
  %v973 = vld [vmem:[%s0 + $0xe2] sm:$0xff]
  %v974 = vld [vmem:[%s0 + $0xf2] sm:$0xff]
  %v975 = vld [vmem:[%s0 + $0xfa] sm:$0xff]
  %v976 = vld [vmem:[%s0 + $0x10a] sm:$0xff]
  %v977 = vld [vmem:[%s0 + $0x112] sm:$0xff]
  %v978 = vld [vmem:[%s0 + $0x122] sm:$0xff]
  %v979 = vld [vmem:[%s0 + $0x12a] sm:$0xff]
  %v980 = vld [vmem:[%s0 + $0x13a] sm:$0xff]
  %v981 = vld [vmem:[%s0 + $0x142] sm:$0xff]
  %v982 = vld [vmem:[%s0 + $0x152] sm:$0xff]
  %v983 = vld [vmem:[%s0 + $0x15a] sm:$0xff]
  %v984 = vld [vmem:[%s0 + $0x16a] sm:$0xff]
  %v985 = vld [vmem:[%s0 + $0x172] sm:$0xff]
  %v986 = vld [vmem:[%s0 + $0x1b2] sm:$0xff]
  %v987 = vld [vmem:[%s0 + $0x1ba] sm:$0xff]
  %v988 = vld [vmem:[%s0 + $0x1ca] sm:$0xff]
  %v989 = vld [vmem:[%s0 + $0x1d2] sm:$0xff]
  %v990 = vld [vmem:[%s0 + $0x1e2] sm:$0xff]
  %v991 = vld [vmem:[%s0 + $0x1ea] sm:$0xff]
  %v992 = vld [vmem:[%s0 + $0x1fa] sm:$0xff]
  %v993 = vld [vmem:[%s0 + $0x202] sm:$0xff]
  %v994 = vld [vmem:[%s0 + $0x212] sm:$0xff]
  %v995 = vld [vmem:[%s0 + $0x21a] sm:$0xff]
  %v996 = vld [vmem:[%s0 + $0x22a] sm:$0xff]
  %v997 = vld [vmem:[%s0 + $0x232] sm:$0xff]
  %v998 = vld [vmem:[%s0 + $0x242] sm:$0xff]
  %v999 = vld [vmem:[%s0 + $0x24a] sm:$0xff]
  %v1000 = vld [vmem:[%s0 + $0x25a] sm:$0xff]
  %v1001 = vld [vmem:[%s0 + $0x262] sm:$0xff]
  %v1002 = vld [vmem:[%s0 + $0x272] sm:$0xff]
  %v1003 = vld [vmem:[%s0 + $0x27a] sm:$0xff]
  %v1004 = vld [vmem:[%s0 + $0x28a] sm:$0xff]
  %v1005 = vld [vmem:[%s0 + $0x292] sm:$0xff]
  %v1006 = vld [vmem:[%s0 + $0x2a2] sm:$0xff]
  %v1007 = vld [vmem:[%s0 + $0x2aa] sm:$0xff]
  %v1008 = vld [vmem:[%s0 + $0x2ba] sm:$0xff]
  %v1009 = vld [vmem:[%s0 + $0x2c2] sm:$0xff]
  %v1010 = vld [vmem:[%s0 + $0x2d2] sm:$0xff]
  %v1011 = vld [vmem:[%s0 + $0x2da] sm:$0xff]
  %v1012 = vld [vmem:[%s0 + $0x2ea] sm:$0xff]
  %v1013 = vld [vmem:[%s0 + $0x2f2] sm:$0xff]
  %v1014 = vld [vmem:[%s0 + $0x302] sm:$0xff]
  %v1015 = vld [vmem:[%s0 + $0x30a] sm:$0xff]
  %v1016 = vld [vmem:[%s0 + $0x31a] sm:$0xff]
  %v1017 = vld [vmem:[%s0 + $0x322] sm:$0xff]
  %s1018 = scalar_lea.vmem %s1, 64
  %v1019 = vld [vmem:[%s1018] sm:$0xff]
  %v1020 = vld [vmem:[%s1018 + $0x8] sm:$0xff]
  %v1021 = vld [vmem:[%s1018 + $0x10] sm:$0xff]
  %v1022 = vld [vmem:[%s1018 + $0x18] sm:$0xff]
  %v1024 = vsel %vm151, %v954, 0
  %v1027 = vsel %vm151, %v955, 0
  %v1030 = vsel %vm151, %v956, 0
  %v1033 = vsel %vm151, %v957, 0
  %v1036 = vsel %vm151, %v958, 0
  %v1039 = vsel %vm151, %v959, 0
  %v1042 = vsel %vm151, %v960, 0
  %v1045 = vsel %vm151, %v961, 0
  %v1048 = vsel %vm151, %v962, 0
  %v1051 = vsel %vm151, %v963, 0
  %v1054 = vsel %vm151, %v964, 0
  %v1057 = vsel %vm151, %v965, 0
  %v1060 = vsel %vm151, %v966, 0
  %v1063 = vsel %vm151, %v967, 0
  %v1066 = vsel %vm151, %v968, 0
  %v1069 = vsel %vm151, %v969, 0
  %v1072 = vsel %vm151, %v970, 0
  %v1075 = vsel %vm151, %v971, 0
  %v1078 = vsel %vm151, %v972, 0
  %v1081 = vsel %vm151, %v973, 0
  %v1084 = vsel %vm151, %v974, 0
  %v1087 = vsel %vm151, %v975, 0
  %v1090 = vsel %vm151, %v976, 0
  %v1093 = vsel %vm151, %v977, 0
  %v1096 = vsel %vm151, %v978, 0
  %v1099 = vsel %vm151, %v979, 0
  %v1102 = vsel %vm151, %v980, 0
  %v1105 = vsel %vm151, %v981, 0
  %v1108 = vsel %vm151, %v982, 0
  %v1111 = vsel %vm151, %v983, 0
  %v1114 = vsel %vm151, %v984, 0
  %v1117 = vsel %vm151, %v985, 0
  %v1120 = vsel %vm151, %v986, 0
  %v1123 = vsel %vm151, %v987, 0
  %v1126 = vsel %vm151, %v988, 0
  %v1129 = vsel %vm151, %v989, 0
  %v1132 = vsel %vm151, %v990, 0
  %v1135 = vsel %vm151, %v991, 0
  %v1138 = vsel %vm151, %v992, 0
  %v1141 = vsel %vm151, %v993, 0
  %v1144 = vsel %vm151, %v994, 0
  %v1147 = vsel %vm151, %v995, 0
  %v1150 = vsel %vm151, %v996, 0
  %v1153 = vsel %vm151, %v997, 0
  %v1156 = vsel %vm151, %v998, 0
  %v1159 = vsel %vm151, %v999, 0
  %v1162 = vsel %vm151, %v1000, 0
  %v1165 = vsel %vm151, %v1001, 0
  %v1168 = vsel %vm151, %v1002, 0
  %v1171 = vsel %vm151, %v1003, 0
  %v1174 = vsel %vm151, %v1004, 0
  %v1177 = vsel %vm151, %v1005, 0
  %v1180 = vsel %vm151, %v1006, 0
  %v1183 = vsel %vm151, %v1007, 0
  %v1186 = vsel %vm151, %v1008, 0
  %v1189 = vsel %vm151, %v1009, 0
  %v1192 = vsel %vm151, %v1010, 0
  %v1195 = vsel %vm151, %v1011, 0
  %v1198 = vsel %vm151, %v1012, 0
  %v1201 = vsel %vm151, %v1013, 0
  %v1204 = vsel %vm151, %v1014, 0
  %v1207 = vsel %vm151, %v1015, 0
  %v1210 = vsel %vm151, %v1016, 0
  %v1213 = vsel %vm151, %v1017, 0
  %1215 = vmatpush.msra.mxu0 0.0
  %1216 = vmatpush.msra.mxu0 0.0
  %1217 = vmatpush.msra.mxu0 0.0
  %1218 = vmatpush.msra.mxu0 0.0
  %1219 = vmatpush.msra.mxu0 0.0
  %1220 = vmatpush.msra.mxu0 0.0
  %1221 = vmatpush.msra.mxu0 0.0
  %1222 = vmatpush.msra.mxu0 0.0
  %1223 = vmatpush.msra.mxu0 0.0
  %1224 = vmatpush.msra.mxu0 0.0
  %1225 = vmatpush.msra.mxu0 0.0
  %1226 = vmatpush.msra.mxu0 0.0
  %1227 = vmatpush.msra.mxu0 %v1022
  %1228 = vmatpush.msra.mxu0 %v1021
  %1229 = vmatpush.msra.mxu0 %v1020
  %1230 = vmatpush.msra.mxu0 %v1019
  %1231 = vmatmul.f32.gmra.mxu0 %v1024
  %v1232 = vpop.f32.mrf.mxu0
  %v1233 = vadd.f32 0.0, %v1232
  %1234 = vmatmul.f32.gmra.mxu0 %v1027
  %v1235 = vpop.f32.mrf.mxu0
  %v1236 = vadd.f32 0.0, %v1235
  %1237 = vmatmul.f32.gmra.mxu0 %v1030
  %v1238 = vpop.f32.mrf.mxu0
  %v1239 = vadd.f32 0.0, %v1238
  %1240 = vmatmul.f32.gmra.mxu0 %v1033
  %v1241 = vpop.f32.mrf.mxu0
  %v1242 = vadd.f32 0.0, %v1241
  %1243 = vmatmul.f32.gmra.mxu0 %v1036
  %v1244 = vpop.f32.mrf.mxu0
  %v1245 = vadd.f32 0.0, %v1244
  %1246 = vmatmul.f32.gmra.mxu0 %v1039
  %v1247 = vpop.f32.mrf.mxu0
  %v1248 = vadd.f32 0.0, %v1247
  %1249 = vmatmul.f32.gmra.mxu0 %v1042
  %v1250 = vpop.f32.mrf.mxu0
  %v1251 = vadd.f32 0.0, %v1250
  %1252 = vmatmul.f32.gmra.mxu0 %v1045
  %v1253 = vpop.f32.mrf.mxu0
  %v1254 = vadd.f32 0.0, %v1253
  %1255 = vmatmul.f32.gmra.mxu0 %v1048
  %v1256 = vpop.f32.mrf.mxu0
  %v1257 = vadd.f32 0.0, %v1256
  %1258 = vmatmul.f32.gmra.mxu0 %v1051
  %v1259 = vpop.f32.mrf.mxu0
  %v1260 = vadd.f32 0.0, %v1259
  %1261 = vmatmul.f32.gmra.mxu0 %v1054
  %v1262 = vpop.f32.mrf.mxu0
  %v1263 = vadd.f32 0.0, %v1262
  %1264 = vmatmul.f32.gmra.mxu0 %v1057
  %v1265 = vpop.f32.mrf.mxu0
  %v1266 = vadd.f32 0.0, %v1265
  %1267 = vmatmul.f32.gmra.mxu0 %v1060
  %v1268 = vpop.f32.mrf.mxu0
  %v1269 = vadd.f32 0.0, %v1268
  %1270 = vmatmul.f32.gmra.mxu0 %v1063
  %v1271 = vpop.f32.mrf.mxu0
  %v1272 = vadd.f32 0.0, %v1271
  %1273 = vmatmul.f32.gmra.mxu0 %v1066
  %v1274 = vpop.f32.mrf.mxu0
  %v1275 = vadd.f32 0.0, %v1274
  %1276 = vmatmul.f32.gmra.mxu0 %v1069
  %v1277 = vpop.f32.mrf.mxu0
  %v1278 = vadd.f32 0.0, %v1277
  %1279 = vmatmul.f32.gmra.mxu0 %v1072
  %v1280 = vpop.f32.mrf.mxu0
  %v1281 = vadd.f32 0.0, %v1280
  %1282 = vmatmul.f32.gmra.mxu0 %v1075
  %v1283 = vpop.f32.mrf.mxu0
  %v1284 = vadd.f32 0.0, %v1283
  %1285 = vmatmul.f32.gmra.mxu0 %v1078
  %v1286 = vpop.f32.mrf.mxu0
  %v1287 = vadd.f32 0.0, %v1286
  %1288 = vmatmul.f32.gmra.mxu0 %v1081
  %v1289 = vpop.f32.mrf.mxu0
  %v1290 = vadd.f32 0.0, %v1289
  %1291 = vmatmul.f32.gmra.mxu0 %v1084
  %v1292 = vpop.f32.mrf.mxu0
  %v1293 = vadd.f32 0.0, %v1292
  %1294 = vmatmul.f32.gmra.mxu0 %v1087
  %v1295 = vpop.f32.mrf.mxu0
  %v1296 = vadd.f32 0.0, %v1295
  %1297 = vmatmul.f32.gmra.mxu0 %v1090
  %v1298 = vpop.f32.mrf.mxu0
  %v1299 = vadd.f32 0.0, %v1298
  %1300 = vmatmul.f32.gmra.mxu0 %v1093
  %v1301 = vpop.f32.mrf.mxu0
  %v1302 = vadd.f32 0.0, %v1301
  %1303 = vmatmul.f32.gmra.mxu0 %v1096
  %v1304 = vpop.f32.mrf.mxu0
  %v1305 = vadd.f32 0.0, %v1304
  %1306 = vmatmul.f32.gmra.mxu0 %v1099
  %v1307 = vpop.f32.mrf.mxu0
  %v1308 = vadd.f32 0.0, %v1307
  %1309 = vmatmul.f32.gmra.mxu0 %v1102
  %v1310 = vpop.f32.mrf.mxu0
  %v1311 = vadd.f32 0.0, %v1310
  %1312 = vmatmul.f32.gmra.mxu0 %v1105
  %v1313 = vpop.f32.mrf.mxu0
  %v1314 = vadd.f32 0.0, %v1313
  %1315 = vmatmul.f32.gmra.mxu0 %v1108
  %v1316 = vpop.f32.mrf.mxu0
  %v1317 = vadd.f32 0.0, %v1316
  %1318 = vmatmul.f32.gmra.mxu0 %v1111
  %v1319 = vpop.f32.mrf.mxu0
  %v1320 = vadd.f32 0.0, %v1319
  %1321 = vmatmul.f32.gmra.mxu0 %v1114
  %v1322 = vpop.f32.mrf.mxu0
  %v1323 = vadd.f32 0.0, %v1322
  %1324 = vmatmul.f32.gmra.mxu0 %v1117
  %v1325 = vpop.f32.mrf.mxu0
  %v1326 = vadd.f32 0.0, %v1325
  %1327 = vmatmul.f32.gmra.mxu0 %v1120
  %v1328 = vpop.f32.mrf.mxu0
  %v1329 = vadd.f32 0.0, %v1328
  %1330 = vmatmul.f32.gmra.mxu0 %v1123
  %v1331 = vpop.f32.mrf.mxu0
  %v1332 = vadd.f32 0.0, %v1331
  %1333 = vmatmul.f32.gmra.mxu0 %v1126
  %v1334 = vpop.f32.mrf.mxu0
  %v1335 = vadd.f32 0.0, %v1334
  %1336 = vmatmul.f32.gmra.mxu0 %v1129
  %v1337 = vpop.f32.mrf.mxu0
  %v1338 = vadd.f32 0.0, %v1337
  %1339 = vmatmul.f32.gmra.mxu0 %v1132
  %v1340 = vpop.f32.mrf.mxu0
  %v1341 = vadd.f32 0.0, %v1340
  %1342 = vmatmul.f32.gmra.mxu0 %v1135
  %v1343 = vpop.f32.mrf.mxu0
  %v1344 = vadd.f32 0.0, %v1343
  %1345 = vmatmul.f32.gmra.mxu0 %v1138
  %v1346 = vpop.f32.mrf.mxu0
  %v1347 = vadd.f32 0.0, %v1346
  %1348 = vmatmul.f32.gmra.mxu0 %v1141
  %v1349 = vpop.f32.mrf.mxu0
  %v1350 = vadd.f32 0.0, %v1349
  %1351 = vmatmul.f32.gmra.mxu0 %v1144
  %v1352 = vpop.f32.mrf.mxu0
  %v1353 = vadd.f32 0.0, %v1352
  %1354 = vmatmul.f32.gmra.mxu0 %v1147
  %v1355 = vpop.f32.mrf.mxu0
  %v1356 = vadd.f32 0.0, %v1355
  %1357 = vmatmul.f32.gmra.mxu0 %v1150
  %v1358 = vpop.f32.mrf.mxu0
  %v1359 = vadd.f32 0.0, %v1358
  %1360 = vmatmul.f32.gmra.mxu0 %v1153
  %v1361 = vpop.f32.mrf.mxu0
  %v1362 = vadd.f32 0.0, %v1361
  %1363 = vmatmul.f32.gmra.mxu0 %v1156
  %v1364 = vpop.f32.mrf.mxu0
  %v1365 = vadd.f32 0.0, %v1364
  %1366 = vmatmul.f32.gmra.mxu0 %v1159
  %v1367 = vpop.f32.mrf.mxu0
  %v1368 = vadd.f32 0.0, %v1367
  %1369 = vmatmul.f32.gmra.mxu0 %v1162
  %v1370 = vpop.f32.mrf.mxu0
  %v1371 = vadd.f32 0.0, %v1370
  %1372 = vmatmul.f32.gmra.mxu0 %v1165
  %v1373 = vpop.f32.mrf.mxu0
  %v1374 = vadd.f32 0.0, %v1373
  %1375 = vmatmul.f32.gmra.mxu0 %v1168
  %v1376 = vpop.f32.mrf.mxu0
  %v1377 = vadd.f32 0.0, %v1376
  %1378 = vmatmul.f32.gmra.mxu0 %v1171
  %v1379 = vpop.f32.mrf.mxu0
  %v1380 = vadd.f32 0.0, %v1379
  %1381 = vmatmul.f32.gmra.mxu0 %v1174
  %v1382 = vpop.f32.mrf.mxu0
  %v1383 = vadd.f32 0.0, %v1382
  %1384 = vmatmul.f32.gmra.mxu0 %v1177
  %v1385 = vpop.f32.mrf.mxu0
  %v1386 = vadd.f32 0.0, %v1385
  %1387 = vmatmul.f32.gmra.mxu0 %v1180
  %v1388 = vpop.f32.mrf.mxu0
  %v1389 = vadd.f32 0.0, %v1388
  %1390 = vmatmul.f32.gmra.mxu0 %v1183
  %v1391 = vpop.f32.mrf.mxu0
  %v1392 = vadd.f32 0.0, %v1391
  %1393 = vmatmul.f32.gmra.mxu0 %v1186
  %v1394 = vpop.f32.mrf.mxu0
  %v1395 = vadd.f32 0.0, %v1394
  %1396 = vmatmul.f32.gmra.mxu0 %v1189
  %v1397 = vpop.f32.mrf.mxu0
  %v1398 = vadd.f32 0.0, %v1397
  %1399 = vmatmul.f32.gmra.mxu0 %v1192
  %v1400 = vpop.f32.mrf.mxu0
  %v1401 = vadd.f32 0.0, %v1400
  %1402 = vmatmul.f32.gmra.mxu0 %v1195
  %v1403 = vpop.f32.mrf.mxu0
  %v1404 = vadd.f32 0.0, %v1403
  %1405 = vmatmul.f32.gmra.mxu0 %v1198
  %v1406 = vpop.f32.mrf.mxu0
  %v1407 = vadd.f32 0.0, %v1406
  %1408 = vmatmul.f32.gmra.mxu0 %v1201
  %v1409 = vpop.f32.mrf.mxu0
  %v1410 = vadd.f32 0.0, %v1409
  %1411 = vmatmul.f32.gmra.mxu0 %v1204
  %v1412 = vpop.f32.mrf.mxu0
  %v1413 = vadd.f32 0.0, %v1412
  %1414 = vmatmul.f32.gmra.mxu0 %v1207
  %v1415 = vpop.f32.mrf.mxu0
  %v1416 = vadd.f32 0.0, %v1415
  %1417 = vmatmul.f32.gmra.mxu0 %v1210
  %v1418 = vpop.f32.mrf.mxu0
  %v1419 = vadd.f32 0.0, %v1418
  %1420 = vmatmul.f32.gmra.mxu0 %v1213
  %v1421 = vpop.f32.mrf.mxu0
  %v1422 = vadd.f32 0.0, %v1421
  %1423 = vdwg.mxu0
  %v1424 = vadd.f32 %v763, %v1233
  %v1425 = vadd.f32 %v766, %v1236
  %v1426 = vadd.f32 %v769, %v1239
  %v1427 = vadd.f32 %v772, %v1242
  %v1428 = vadd.f32 %v775, %v1245
  %v1429 = vadd.f32 %v778, %v1248
  %v1430 = vadd.f32 %v781, %v1251
  %v1431 = vadd.f32 %v784, %v1254
  %v1432 = vadd.f32 %v787, %v1257
  %v1433 = vadd.f32 %v790, %v1260
  %v1434 = vadd.f32 %v793, %v1263
  %v1435 = vadd.f32 %v796, %v1266
  %v1436 = vadd.f32 %v799, %v1269
  %v1437 = vadd.f32 %v802, %v1272
  %v1438 = vadd.f32 %v805, %v1275
  %v1439 = vadd.f32 %v808, %v1278
  %v1440 = vadd.f32 %v811, %v1281
  %v1441 = vadd.f32 %v814, %v1284
  %v1442 = vadd.f32 %v817, %v1287
  %v1443 = vadd.f32 %v820, %v1290
  %v1444 = vadd.f32 %v823, %v1293
  %v1445 = vadd.f32 %v826, %v1296
  %v1446 = vadd.f32 %v829, %v1299
  %v1447 = vadd.f32 %v832, %v1302
  %v1448 = vadd.f32 %v835, %v1305
  %v1449 = vadd.f32 %v838, %v1308
  %v1450 = vadd.f32 %v841, %v1311
  %v1451 = vadd.f32 %v844, %v1314
  %v1452 = vadd.f32 %v847, %v1317
  %v1453 = vadd.f32 %v850, %v1320
  %v1454 = vadd.f32 %v853, %v1323
  %v1455 = vadd.f32 %v856, %v1326
  %v1456 = vadd.f32 %v859, %v1329
  %v1457 = vadd.f32 %v862, %v1332
  %v1458 = vadd.f32 %v865, %v1335
  %v1459 = vadd.f32 %v868, %v1338
  %v1460 = vadd.f32 %v871, %v1341
  %v1461 = vadd.f32 %v874, %v1344
  %v1462 = vadd.f32 %v877, %v1347
  %v1463 = vadd.f32 %v880, %v1350
  %v1464 = vadd.f32 %v883, %v1353
  %v1465 = vadd.f32 %v886, %v1356
  %v1466 = vadd.f32 %v889, %v1359
  %v1467 = vadd.f32 %v892, %v1362
  %v1468 = vadd.f32 %v895, %v1365
  %v1469 = vadd.f32 %v898, %v1368
  %v1470 = vadd.f32 %v901, %v1371
  %v1471 = vadd.f32 %v904, %v1374
  %v1472 = vadd.f32 %v907, %v1377
  %v1473 = vadd.f32 %v910, %v1380
  %v1474 = vadd.f32 %v913, %v1383
  %v1475 = vadd.f32 %v916, %v1386
  %v1476 = vadd.f32 %v919, %v1389
  %v1477 = vadd.f32 %v922, %v1392
  %v1478 = vadd.f32 %v925, %v1395
  %v1479 = vadd.f32 %v928, %v1398
  %v1480 = vadd.f32 %v931, %v1401
  %v1481 = vadd.f32 %v934, %v1404
  %v1482 = vadd.f32 %v937, %v1407
  %v1483 = vadd.f32 %v940, %v1410
  %v1484 = vadd.f32 %v943, %v1413
  %v1485 = vadd.f32 %v946, %v1416
  %v1486 = vadd.f32 %v949, %v1419
  %v1487 = vadd.f32 %v952, %v1422
  %s1488 = scalar_lea.vmem %s0, 24
  %v1489 = vld [vmem:[%s1488] sm:$0xff]
  %v1490 = vld [vmem:[%s1488 + $0x8] sm:$0xff]
  %v1491 = vld [vmem:[%s1488 + $0x18] sm:$0xff]
  %v1492 = vld [vmem:[%s1488 + $0x20] sm:$0xff]
  %v1493 = vld [vmem:[%s1488 + $0x30] sm:$0xff]
  %v1494 = vld [vmem:[%s1488 + $0x38] sm:$0xff]
  %v1495 = vld [vmem:[%s1488 + $0x48] sm:$0xff]
  %v1496 = vld [vmem:[%s1488 + $0x50] sm:$0xff]
  %v1497 = vld [vmem:[%s1488 + $0x60] sm:$0xff]
  %v1498 = vld [vmem:[%s1488 + $0x68] sm:$0xff]
  %v1499 = vld [vmem:[%s1488 + $0x78] sm:$0xff]
  %v1500 = vld [vmem:[%s1488 + $0x80] sm:$0xff]
  %v1501 = vld [vmem:[%s1488 + $0x90] sm:$0xff]
  %v1502 = vld [vmem:[%s1488 + $0x98] sm:$0xff]
  %v1503 = vld [vmem:[%s1488 + $0xa8] sm:$0xff]
  %v1504 = vld [vmem:[%s1488 + $0xb0] sm:$0xff]
  %v1505 = vld [vmem:[%s1488 + $0xc0] sm:$0xff]
  %v1506 = vld [vmem:[%s1488 + $0xc8] sm:$0xff]
  %v1507 = vld [vmem:[%s1488 + $0xd8] sm:$0xff]
  %v1508 = vld [vmem:[%s1488 + $0xe0] sm:$0xff]
  %v1509 = vld [vmem:[%s1488 + $0xf0] sm:$0xff]
  %v1510 = vld [vmem:[%s1488 + $0xf8] sm:$0xff]
  %v1511 = vld [vmem:[%s1488 + $0x108] sm:$0xff]
  %v1512 = vld [vmem:[%s1488 + $0x110] sm:$0xff]
  %v1513 = vld [vmem:[%s1488 + $0x120] sm:$0xff]
  %v1514 = vld [vmem:[%s1488 + $0x128] sm:$0xff]
  %v1515 = vld [vmem:[%s1488 + $0x138] sm:$0xff]
  %v1516 = vld [vmem:[%s1488 + $0x140] sm:$0xff]
  %v1517 = vld [vmem:[%s1488 + $0x150] sm:$0xff]
  %v1518 = vld [vmem:[%s1488 + $0x158] sm:$0xff]
  %v1519 = vld [vmem:[%s1488 + $0x168] sm:$0xff]
  %v1520 = vld [vmem:[%s1488 + $0x170] sm:$0xff]
  %v1521 = vld [vmem:[%s1488 + $0x1b0] sm:$0xff]
  %v1522 = vld [vmem:[%s1488 + $0x1b8] sm:$0xff]
  %v1523 = vld [vmem:[%s1488 + $0x1c8] sm:$0xff]
  %v1524 = vld [vmem:[%s1488 + $0x1d0] sm:$0xff]
  %v1525 = vld [vmem:[%s1488 + $0x1e0] sm:$0xff]
  %v1526 = vld [vmem:[%s1488 + $0x1e8] sm:$0xff]
  %v1527 = vld [vmem:[%s1488 + $0x1f8] sm:$0xff]
  %v1528 = vld [vmem:[%s1488 + $0x200] sm:$0xff]
  %v1529 = vld [vmem:[%s1488 + $0x210] sm:$0xff]
  %v1530 = vld [vmem:[%s1488 + $0x218] sm:$0xff]
  %v1531 = vld [vmem:[%s1488 + $0x228] sm:$0xff]
  %v1532 = vld [vmem:[%s1488 + $0x230] sm:$0xff]
  %v1533 = vld [vmem:[%s1488 + $0x240] sm:$0xff]
  %v1534 = vld [vmem:[%s1488 + $0x248] sm:$0xff]
  %v1535 = vld [vmem:[%s1488 + $0x258] sm:$0xff]
  %v1536 = vld [vmem:[%s1488 + $0x260] sm:$0xff]
  %v1537 = vld [vmem:[%s1488 + $0x270] sm:$0xff]
  %v1538 = vld [vmem:[%s1488 + $0x278] sm:$0xff]
  %v1539 = vld [vmem:[%s1488 + $0x288] sm:$0xff]
  %v1540 = vld [vmem:[%s1488 + $0x290] sm:$0xff]
  %v1541 = vld [vmem:[%s1488 + $0x2a0] sm:$0xff]
  %v1542 = vld [vmem:[%s1488 + $0x2a8] sm:$0xff]
  %v1543 = vld [vmem:[%s1488 + $0x2b8] sm:$0xff]
  %v1544 = vld [vmem:[%s1488 + $0x2c0] sm:$0xff]
  %v1545 = vld [vmem:[%s1488 + $0x2d0] sm:$0xff]
  %v1546 = vld [vmem:[%s1488 + $0x2d8] sm:$0xff]
  %v1547 = vld [vmem:[%s1488 + $0x2e8] sm:$0xff]
  %v1548 = vld [vmem:[%s1488 + $0x2f0] sm:$0xff]
  %v1549 = vld [vmem:[%s1488 + $0x300] sm:$0xff]
  %v1550 = vld [vmem:[%s1488 + $0x308] sm:$0xff]
  %v1551 = vld [vmem:[%s1488 + $0x318] sm:$0xff]
  %v1552 = vld [vmem:[%s1488 + $0x320] sm:$0xff]
  %s1553 = scalar_lea.vmem %s1, 96
  %v1554 = vld [vmem:[%s1553] sm:$0xff]
  %v1555 = vld [vmem:[%s1553 + $0x8] sm:$0xff]
  %v1556 = vld [vmem:[%s1553 + $0x10] sm:$0xff]
  %v1557 = vld [vmem:[%s1553 + $0x18] sm:$0xff]
  %v1559 = vsel %vm151, %v1489, 0
  %v1562 = vsel %vm151, %v1490, 0
  %v1565 = vsel %vm151, %v1491, 0
  %v1568 = vsel %vm151, %v1492, 0
  %v1571 = vsel %vm151, %v1493, 0
  %v1574 = vsel %vm151, %v1494, 0
  %v1577 = vsel %vm151, %v1495, 0
  %v1580 = vsel %vm151, %v1496, 0
  %v1583 = vsel %vm151, %v1497, 0
  %v1586 = vsel %vm151, %v1498, 0
  %v1589 = vsel %vm151, %v1499, 0
  %v1592 = vsel %vm151, %v1500, 0
  %v1595 = vsel %vm151, %v1501, 0
  %v1598 = vsel %vm151, %v1502, 0
  %v1601 = vsel %vm151, %v1503, 0
  %v1604 = vsel %vm151, %v1504, 0
  %v1607 = vsel %vm151, %v1505, 0
  %v1610 = vsel %vm151, %v1506, 0
  %v1613 = vsel %vm151, %v1507, 0
  %v1616 = vsel %vm151, %v1508, 0
  %v1619 = vsel %vm151, %v1509, 0
  %v1622 = vsel %vm151, %v1510, 0
  %v1625 = vsel %vm151, %v1511, 0
  %v1628 = vsel %vm151, %v1512, 0
  %v1631 = vsel %vm151, %v1513, 0
  %v1634 = vsel %vm151, %v1514, 0
  %v1637 = vsel %vm151, %v1515, 0
  %v1640 = vsel %vm151, %v1516, 0
  %v1643 = vsel %vm151, %v1517, 0
  %v1646 = vsel %vm151, %v1518, 0
  %v1649 = vsel %vm151, %v1519, 0
  %v1652 = vsel %vm151, %v1520, 0
  %v1655 = vsel %vm151, %v1521, 0
  %v1658 = vsel %vm151, %v1522, 0
  %v1661 = vsel %vm151, %v1523, 0
  %v1664 = vsel %vm151, %v1524, 0
  %v1667 = vsel %vm151, %v1525, 0
  %v1670 = vsel %vm151, %v1526, 0
  %v1673 = vsel %vm151, %v1527, 0
  %v1676 = vsel %vm151, %v1528, 0
  %v1679 = vsel %vm151, %v1529, 0
  %v1682 = vsel %vm151, %v1530, 0
  %v1685 = vsel %vm151, %v1531, 0
  %v1688 = vsel %vm151, %v1532, 0
  %v1691 = vsel %vm151, %v1533, 0
  %v1694 = vsel %vm151, %v1534, 0
  %v1697 = vsel %vm151, %v1535, 0
  %v1700 = vsel %vm151, %v1536, 0
  %v1703 = vsel %vm151, %v1537, 0
  %v1706 = vsel %vm151, %v1538, 0
  %v1709 = vsel %vm151, %v1539, 0
  %v1712 = vsel %vm151, %v1540, 0
  %v1715 = vsel %vm151, %v1541, 0
  %v1718 = vsel %vm151, %v1542, 0
  %v1721 = vsel %vm151, %v1543, 0
  %v1724 = vsel %vm151, %v1544, 0
  %v1727 = vsel %vm151, %v1545, 0
  %v1730 = vsel %vm151, %v1546, 0
  %v1733 = vsel %vm151, %v1547, 0
  %v1736 = vsel %vm151, %v1548, 0
  %v1739 = vsel %vm151, %v1549, 0
  %v1742 = vsel %vm151, %v1550, 0
  %v1745 = vsel %vm151, %v1551, 0
  %v1748 = vsel %vm151, %v1552, 0
  %1750 = vmatpush.msra.mxu0 0.0
  %1751 = vmatpush.msra.mxu0 0.0
  %1752 = vmatpush.msra.mxu0 0.0
  %1753 = vmatpush.msra.mxu0 0.0
  %1754 = vmatpush.msra.mxu0 0.0
  %1755 = vmatpush.msra.mxu0 0.0
  %1756 = vmatpush.msra.mxu0 0.0
  %1757 = vmatpush.msra.mxu0 0.0
  %1758 = vmatpush.msra.mxu0 0.0
  %1759 = vmatpush.msra.mxu0 0.0
  %1760 = vmatpush.msra.mxu0 0.0
  %1761 = vmatpush.msra.mxu0 0.0
  %1762 = vmatpush.msra.mxu0 %v1557
  %1763 = vmatpush.msra.mxu0 %v1556
  %1764 = vmatpush.msra.mxu0 %v1555
  %1765 = vmatpush.msra.mxu0 %v1554
  %1766 = vmatmul.f32.gmra.mxu0 %v1559
  %v1767 = vpop.f32.mrf.mxu0
  %v1768 = vadd.f32 0.0, %v1767
  %1769 = vmatmul.f32.gmra.mxu0 %v1562
  %v1770 = vpop.f32.mrf.mxu0
  %v1771 = vadd.f32 0.0, %v1770
  %1772 = vmatmul.f32.gmra.mxu0 %v1565
  %v1773 = vpop.f32.mrf.mxu0
  %v1774 = vadd.f32 0.0, %v1773
  %1775 = vmatmul.f32.gmra.mxu0 %v1568
  %v1776 = vpop.f32.mrf.mxu0
  %v1777 = vadd.f32 0.0, %v1776
  %1778 = vmatmul.f32.gmra.mxu0 %v1571
  %v1779 = vpop.f32.mrf.mxu0
  %v1780 = vadd.f32 0.0, %v1779
  %1781 = vmatmul.f32.gmra.mxu0 %v1574
  %v1782 = vpop.f32.mrf.mxu0
  %v1783 = vadd.f32 0.0, %v1782
  %1784 = vmatmul.f32.gmra.mxu0 %v1577
  %v1785 = vpop.f32.mrf.mxu0
  %v1786 = vadd.f32 0.0, %v1785
  %1787 = vmatmul.f32.gmra.mxu0 %v1580
  %v1788 = vpop.f32.mrf.mxu0
  %v1789 = vadd.f32 0.0, %v1788
  %1790 = vmatmul.f32.gmra.mxu0 %v1583
  %v1791 = vpop.f32.mrf.mxu0
  %v1792 = vadd.f32 0.0, %v1791
  %1793 = vmatmul.f32.gmra.mxu0 %v1586
  %v1794 = vpop.f32.mrf.mxu0
  %v1795 = vadd.f32 0.0, %v1794
  %1796 = vmatmul.f32.gmra.mxu0 %v1589
  %v1797 = vpop.f32.mrf.mxu0
  %v1798 = vadd.f32 0.0, %v1797
  %1799 = vmatmul.f32.gmra.mxu0 %v1592
  %v1800 = vpop.f32.mrf.mxu0
  %v1801 = vadd.f32 0.0, %v1800
  %1802 = vmatmul.f32.gmra.mxu0 %v1595
  %v1803 = vpop.f32.mrf.mxu0
  %v1804 = vadd.f32 0.0, %v1803
  %1805 = vmatmul.f32.gmra.mxu0 %v1598
  %v1806 = vpop.f32.mrf.mxu0
  %v1807 = vadd.f32 0.0, %v1806
  %1808 = vmatmul.f32.gmra.mxu0 %v1601
  %v1809 = vpop.f32.mrf.mxu0
  %v1810 = vadd.f32 0.0, %v1809
  %1811 = vmatmul.f32.gmra.mxu0 %v1604
  %v1812 = vpop.f32.mrf.mxu0
  %v1813 = vadd.f32 0.0, %v1812
  %1814 = vmatmul.f32.gmra.mxu0 %v1607
  %v1815 = vpop.f32.mrf.mxu0
  %v1816 = vadd.f32 0.0, %v1815
  %1817 = vmatmul.f32.gmra.mxu0 %v1610
  %v1818 = vpop.f32.mrf.mxu0
  %v1819 = vadd.f32 0.0, %v1818
  %1820 = vmatmul.f32.gmra.mxu0 %v1613
  %v1821 = vpop.f32.mrf.mxu0
  %v1822 = vadd.f32 0.0, %v1821
  %1823 = vmatmul.f32.gmra.mxu0 %v1616
  %v1824 = vpop.f32.mrf.mxu0
  %v1825 = vadd.f32 0.0, %v1824
  %1826 = vmatmul.f32.gmra.mxu0 %v1619
  %v1827 = vpop.f32.mrf.mxu0
  %v1828 = vadd.f32 0.0, %v1827
  %1829 = vmatmul.f32.gmra.mxu0 %v1622
  %v1830 = vpop.f32.mrf.mxu0
  %v1831 = vadd.f32 0.0, %v1830
  %1832 = vmatmul.f32.gmra.mxu0 %v1625
  %v1833 = vpop.f32.mrf.mxu0
  %v1834 = vadd.f32 0.0, %v1833
  %1835 = vmatmul.f32.gmra.mxu0 %v1628
  %v1836 = vpop.f32.mrf.mxu0
  %v1837 = vadd.f32 0.0, %v1836
  %1838 = vmatmul.f32.gmra.mxu0 %v1631
  %v1839 = vpop.f32.mrf.mxu0
  %v1840 = vadd.f32 0.0, %v1839
  %1841 = vmatmul.f32.gmra.mxu0 %v1634
  %v1842 = vpop.f32.mrf.mxu0
  %v1843 = vadd.f32 0.0, %v1842
  %1844 = vmatmul.f32.gmra.mxu0 %v1637
  %v1845 = vpop.f32.mrf.mxu0
  %v1846 = vadd.f32 0.0, %v1845
  %1847 = vmatmul.f32.gmra.mxu0 %v1640
  %v1848 = vpop.f32.mrf.mxu0
  %v1849 = vadd.f32 0.0, %v1848
  %1850 = vmatmul.f32.gmra.mxu0 %v1643
  %v1851 = vpop.f32.mrf.mxu0
  %v1852 = vadd.f32 0.0, %v1851
  %1853 = vmatmul.f32.gmra.mxu0 %v1646
  %v1854 = vpop.f32.mrf.mxu0
  %v1855 = vadd.f32 0.0, %v1854
  %1856 = vmatmul.f32.gmra.mxu0 %v1649
  %v1857 = vpop.f32.mrf.mxu0
  %v1858 = vadd.f32 0.0, %v1857
  %1859 = vmatmul.f32.gmra.mxu0 %v1652
  %v1860 = vpop.f32.mrf.mxu0
  %v1861 = vadd.f32 0.0, %v1860
  %1862 = vmatmul.f32.gmra.mxu0 %v1655
  %v1863 = vpop.f32.mrf.mxu0
  %v1864 = vadd.f32 0.0, %v1863
  %1865 = vmatmul.f32.gmra.mxu0 %v1658
  %v1866 = vpop.f32.mrf.mxu0
  %v1867 = vadd.f32 0.0, %v1866
  %1868 = vmatmul.f32.gmra.mxu0 %v1661
  %v1869 = vpop.f32.mrf.mxu0
  %v1870 = vadd.f32 0.0, %v1869
  %1871 = vmatmul.f32.gmra.mxu0 %v1664
  %v1872 = vpop.f32.mrf.mxu0
  %v1873 = vadd.f32 0.0, %v1872
  %1874 = vmatmul.f32.gmra.mxu0 %v1667
  %v1875 = vpop.f32.mrf.mxu0
  %v1876 = vadd.f32 0.0, %v1875
  %1877 = vmatmul.f32.gmra.mxu0 %v1670
  %v1878 = vpop.f32.mrf.mxu0
  %v1879 = vadd.f32 0.0, %v1878
  %1880 = vmatmul.f32.gmra.mxu0 %v1673
  %v1881 = vpop.f32.mrf.mxu0
  %v1882 = vadd.f32 0.0, %v1881
  %1883 = vmatmul.f32.gmra.mxu0 %v1676
  %v1884 = vpop.f32.mrf.mxu0
  %v1885 = vadd.f32 0.0, %v1884
  %1886 = vmatmul.f32.gmra.mxu0 %v1679
  %v1887 = vpop.f32.mrf.mxu0
  %v1888 = vadd.f32 0.0, %v1887
  %1889 = vmatmul.f32.gmra.mxu0 %v1682
  %v1890 = vpop.f32.mrf.mxu0
  %v1891 = vadd.f32 0.0, %v1890
  %1892 = vmatmul.f32.gmra.mxu0 %v1685
  %v1893 = vpop.f32.mrf.mxu0
  %v1894 = vadd.f32 0.0, %v1893
  %1895 = vmatmul.f32.gmra.mxu0 %v1688
  %v1896 = vpop.f32.mrf.mxu0
  %v1897 = vadd.f32 0.0, %v1896
  %1898 = vmatmul.f32.gmra.mxu0 %v1691
  %v1899 = vpop.f32.mrf.mxu0
  %v1900 = vadd.f32 0.0, %v1899
  %1901 = vmatmul.f32.gmra.mxu0 %v1694
  %v1902 = vpop.f32.mrf.mxu0
  %v1903 = vadd.f32 0.0, %v1902
  %1904 = vmatmul.f32.gmra.mxu0 %v1697
  %v1905 = vpop.f32.mrf.mxu0
  %v1906 = vadd.f32 0.0, %v1905
  %1907 = vmatmul.f32.gmra.mxu0 %v1700
  %v1908 = vpop.f32.mrf.mxu0
  %v1909 = vadd.f32 0.0, %v1908
  %1910 = vmatmul.f32.gmra.mxu0 %v1703
  %v1911 = vpop.f32.mrf.mxu0
  %v1912 = vadd.f32 0.0, %v1911
  %1913 = vmatmul.f32.gmra.mxu0 %v1706
  %v1914 = vpop.f32.mrf.mxu0
  %v1915 = vadd.f32 0.0, %v1914
  %1916 = vmatmul.f32.gmra.mxu0 %v1709
  %v1917 = vpop.f32.mrf.mxu0
  %v1918 = vadd.f32 0.0, %v1917
  %1919 = vmatmul.f32.gmra.mxu0 %v1712
  %v1920 = vpop.f32.mrf.mxu0
  %v1921 = vadd.f32 0.0, %v1920
  %1922 = vmatmul.f32.gmra.mxu0 %v1715
  %v1923 = vpop.f32.mrf.mxu0
  %v1924 = vadd.f32 0.0, %v1923
  %1925 = vmatmul.f32.gmra.mxu0 %v1718
  %v1926 = vpop.f32.mrf.mxu0
  %v1927 = vadd.f32 0.0, %v1926
  %1928 = vmatmul.f32.gmra.mxu0 %v1721
  %v1929 = vpop.f32.mrf.mxu0
  %v1930 = vadd.f32 0.0, %v1929
  %1931 = vmatmul.f32.gmra.mxu0 %v1724
  %v1932 = vpop.f32.mrf.mxu0
  %v1933 = vadd.f32 0.0, %v1932
  %1934 = vmatmul.f32.gmra.mxu0 %v1727
  %v1935 = vpop.f32.mrf.mxu0
  %v1936 = vadd.f32 0.0, %v1935
  %1937 = vmatmul.f32.gmra.mxu0 %v1730
  %v1938 = vpop.f32.mrf.mxu0
  %v1939 = vadd.f32 0.0, %v1938
  %1940 = vmatmul.f32.gmra.mxu0 %v1733
  %v1941 = vpop.f32.mrf.mxu0
  %v1942 = vadd.f32 0.0, %v1941
  %1943 = vmatmul.f32.gmra.mxu0 %v1736
  %v1944 = vpop.f32.mrf.mxu0
  %v1945 = vadd.f32 0.0, %v1944
  %1946 = vmatmul.f32.gmra.mxu0 %v1739
  %v1947 = vpop.f32.mrf.mxu0
  %v1948 = vadd.f32 0.0, %v1947
  %1949 = vmatmul.f32.gmra.mxu0 %v1742
  %v1950 = vpop.f32.mrf.mxu0
  %v1951 = vadd.f32 0.0, %v1950
  %1952 = vmatmul.f32.gmra.mxu0 %v1745
  %v1953 = vpop.f32.mrf.mxu0
  %v1954 = vadd.f32 0.0, %v1953
  %1955 = vmatmul.f32.gmra.mxu0 %v1748
  %v1956 = vpop.f32.mrf.mxu0
  %v1957 = vadd.f32 0.0, %v1956
  %1958 = vdwg.mxu0
  %v1959 = vadd.f32 %v1424, %v1768
  %v1960 = vadd.f32 %v1425, %v1771
  %v1961 = vadd.f32 %v1426, %v1774
  %v1962 = vadd.f32 %v1427, %v1777
  %v1963 = vadd.f32 %v1428, %v1780
  %v1964 = vadd.f32 %v1429, %v1783
  %v1965 = vadd.f32 %v1430, %v1786
  %v1966 = vadd.f32 %v1431, %v1789
  %v1967 = vadd.f32 %v1432, %v1792
  %v1968 = vadd.f32 %v1433, %v1795
  %v1969 = vadd.f32 %v1434, %v1798
  %v1970 = vadd.f32 %v1435, %v1801
  %v1971 = vadd.f32 %v1436, %v1804
  %v1972 = vadd.f32 %v1437, %v1807
  %v1973 = vadd.f32 %v1438, %v1810
  %v1974 = vadd.f32 %v1439, %v1813
  %v1975 = vadd.f32 %v1440, %v1816
  %v1976 = vadd.f32 %v1441, %v1819
  %v1977 = vadd.f32 %v1442, %v1822
  %v1978 = vadd.f32 %v1443, %v1825
  %v1979 = vadd.f32 %v1444, %v1828
  %v1980 = vadd.f32 %v1445, %v1831
  %v1981 = vadd.f32 %v1446, %v1834
  %v1982 = vadd.f32 %v1447, %v1837
  %v1983 = vadd.f32 %v1448, %v1840
  %v1984 = vadd.f32 %v1449, %v1843
  %v1985 = vadd.f32 %v1450, %v1846
  %v1986 = vadd.f32 %v1451, %v1849
  %v1987 = vadd.f32 %v1452, %v1852
  %v1988 = vadd.f32 %v1453, %v1855
  %v1989 = vadd.f32 %v1454, %v1858
  %v1990 = vadd.f32 %v1455, %v1861
  %v1991 = vadd.f32 %v1456, %v1864
  %v1992 = vadd.f32 %v1457, %v1867
  %v1993 = vadd.f32 %v1458, %v1870
  %v1994 = vadd.f32 %v1459, %v1873
  %v1995 = vadd.f32 %v1460, %v1876
  %v1996 = vadd.f32 %v1461, %v1879
  %v1997 = vadd.f32 %v1462, %v1882
  %v1998 = vadd.f32 %v1463, %v1885
  %v1999 = vadd.f32 %v1464, %v1888
  %v2000 = vadd.f32 %v1465, %v1891
  %v2001 = vadd.f32 %v1466, %v1894
  %v2002 = vadd.f32 %v1467, %v1897
  %v2003 = vadd.f32 %v1468, %v1900
  %v2004 = vadd.f32 %v1469, %v1903
  %v2005 = vadd.f32 %v1470, %v1906
  %v2006 = vadd.f32 %v1471, %v1909
  %v2007 = vadd.f32 %v1472, %v1912
  %v2008 = vadd.f32 %v1473, %v1915
  %v2009 = vadd.f32 %v1474, %v1918
  %v2010 = vadd.f32 %v1475, %v1921
  %v2011 = vadd.f32 %v1476, %v1924
  %v2012 = vadd.f32 %v1477, %v1927
  %v2013 = vadd.f32 %v1478, %v1930
  %v2014 = vadd.f32 %v1479, %v1933
  %v2015 = vadd.f32 %v1480, %v1936
  %v2016 = vadd.f32 %v1481, %v1939
  %v2017 = vadd.f32 %v1482, %v1942
  %v2018 = vadd.f32 %v1483, %v1945
  %v2019 = vadd.f32 %v1484, %v1948
  %v2020 = vadd.f32 %v1485, %v1951
  %v2021 = vadd.f32 %v1486, %v1954
  %v2022 = vadd.f32 %v1487, %v1957
  %v2023 = vld [vmem:[%s1488 + $0x1] sm:$0xff]
  %v2024 = vld [vmem:[%s1488 + $0x9] sm:$0xff]
  %v2025 = vld [vmem:[%s1488 + $0x19] sm:$0xff]
  %v2026 = vld [vmem:[%s1488 + $0x21] sm:$0xff]
  %v2027 = vld [vmem:[%s1488 + $0x31] sm:$0xff]
  %v2028 = vld [vmem:[%s1488 + $0x39] sm:$0xff]
  %v2029 = vld [vmem:[%s1488 + $0x49] sm:$0xff]
  %v2030 = vld [vmem:[%s1488 + $0x51] sm:$0xff]
  %v2031 = vld [vmem:[%s1488 + $0x61] sm:$0xff]
  %v2032 = vld [vmem:[%s1488 + $0x69] sm:$0xff]
  %v2033 = vld [vmem:[%s1488 + $0x79] sm:$0xff]
  %v2034 = vld [vmem:[%s1488 + $0x81] sm:$0xff]
  %v2035 = vld [vmem:[%s1488 + $0x91] sm:$0xff]
  %v2036 = vld [vmem:[%s1488 + $0x99] sm:$0xff]
  %v2037 = vld [vmem:[%s1488 + $0xa9] sm:$0xff]
  %v2038 = vld [vmem:[%s1488 + $0xb1] sm:$0xff]
  %v2039 = vld [vmem:[%s1488 + $0xc1] sm:$0xff]
  %v2040 = vld [vmem:[%s1488 + $0xc9] sm:$0xff]
  %v2041 = vld [vmem:[%s1488 + $0xd9] sm:$0xff]
  %v2042 = vld [vmem:[%s1488 + $0xe1] sm:$0xff]
  %v2043 = vld [vmem:[%s1488 + $0xf1] sm:$0xff]
  %v2044 = vld [vmem:[%s1488 + $0xf9] sm:$0xff]
  %v2045 = vld [vmem:[%s1488 + $0x109] sm:$0xff]
  %v2046 = vld [vmem:[%s1488 + $0x111] sm:$0xff]
  %v2047 = vld [vmem:[%s1488 + $0x121] sm:$0xff]
  %v2048 = vld [vmem:[%s1488 + $0x129] sm:$0xff]
  %v2049 = vld [vmem:[%s1488 + $0x139] sm:$0xff]
  %v2050 = vld [vmem:[%s1488 + $0x141] sm:$0xff]
  %v2051 = vld [vmem:[%s1488 + $0x151] sm:$0xff]
  %v2052 = vld [vmem:[%s1488 + $0x159] sm:$0xff]
  %v2053 = vld [vmem:[%s1488 + $0x169] sm:$0xff]
  %v2054 = vld [vmem:[%s1488 + $0x171] sm:$0xff]
  %v2055 = vld [vmem:[%s1488 + $0x1b1] sm:$0xff]
  %v2056 = vld [vmem:[%s1488 + $0x1b9] sm:$0xff]
  %v2057 = vld [vmem:[%s1488 + $0x1c9] sm:$0xff]
  %v2058 = vld [vmem:[%s1488 + $0x1d1] sm:$0xff]
  %v2059 = vld [vmem:[%s1488 + $0x1e1] sm:$0xff]
  %v2060 = vld [vmem:[%s1488 + $0x1e9] sm:$0xff]
  %v2061 = vld [vmem:[%s1488 + $0x1f9] sm:$0xff]
  %v2062 = vld [vmem:[%s1488 + $0x201] sm:$0xff]
  %v2063 = vld [vmem:[%s1488 + $0x211] sm:$0xff]
  %v2064 = vld [vmem:[%s1488 + $0x219] sm:$0xff]
  %v2065 = vld [vmem:[%s1488 + $0x229] sm:$0xff]
  %v2066 = vld [vmem:[%s1488 + $0x231] sm:$0xff]
  %v2067 = vld [vmem:[%s1488 + $0x241] sm:$0xff]
  %v2068 = vld [vmem:[%s1488 + $0x249] sm:$0xff]
  %v2069 = vld [vmem:[%s1488 + $0x259] sm:$0xff]
  %v2070 = vld [vmem:[%s1488 + $0x261] sm:$0xff]
  %v2071 = vld [vmem:[%s1488 + $0x271] sm:$0xff]
  %v2072 = vld [vmem:[%s1488 + $0x279] sm:$0xff]
  %v2073 = vld [vmem:[%s1488 + $0x289] sm:$0xff]
  %v2074 = vld [vmem:[%s1488 + $0x291] sm:$0xff]
  %v2075 = vld [vmem:[%s1488 + $0x2a1] sm:$0xff]
  %v2076 = vld [vmem:[%s1488 + $0x2a9] sm:$0xff]
  %v2077 = vld [vmem:[%s1488 + $0x2b9] sm:$0xff]
  %v2078 = vld [vmem:[%s1488 + $0x2c1] sm:$0xff]
  %v2079 = vld [vmem:[%s1488 + $0x2d1] sm:$0xff]
  %v2080 = vld [vmem:[%s1488 + $0x2d9] sm:$0xff]
  %v2081 = vld [vmem:[%s1488 + $0x2e9] sm:$0xff]
  %v2082 = vld [vmem:[%s1488 + $0x2f1] sm:$0xff]
  %v2083 = vld [vmem:[%s1488 + $0x301] sm:$0xff]
  %v2084 = vld [vmem:[%s1488 + $0x309] sm:$0xff]
  %v2085 = vld [vmem:[%s1488 + $0x319] sm:$0xff]
  %v2086 = vld [vmem:[%s1488 + $0x321] sm:$0xff]
  %s2087 = scalar_lea.vmem %s1, 128
  %v2088 = vld [vmem:[%s2087] sm:$0xff]
  %v2089 = vld [vmem:[%s2087 + $0x8] sm:$0xff]
  %v2090 = vld [vmem:[%s2087 + $0x10] sm:$0xff]
  %v2091 = vld [vmem:[%s2087 + $0x18] sm:$0xff]
  %v2093 = vsel %vm151, %v2023, 0
  %v2096 = vsel %vm151, %v2024, 0
  %v2099 = vsel %vm151, %v2025, 0
  %v2102 = vsel %vm151, %v2026, 0
  %v2105 = vsel %vm151, %v2027, 0
  %v2108 = vsel %vm151, %v2028, 0
  %v2111 = vsel %vm151, %v2029, 0
  %v2114 = vsel %vm151, %v2030, 0
  %v2117 = vsel %vm151, %v2031, 0
  %v2120 = vsel %vm151, %v2032, 0
  %v2123 = vsel %vm151, %v2033, 0
  %v2126 = vsel %vm151, %v2034, 0
  %v2129 = vsel %vm151, %v2035, 0
  %v2132 = vsel %vm151, %v2036, 0
  %v2135 = vsel %vm151, %v2037, 0
  %v2138 = vsel %vm151, %v2038, 0
  %v2141 = vsel %vm151, %v2039, 0
  %v2144 = vsel %vm151, %v2040, 0
  %v2147 = vsel %vm151, %v2041, 0
  %v2150 = vsel %vm151, %v2042, 0
  %v2153 = vsel %vm151, %v2043, 0
  %v2156 = vsel %vm151, %v2044, 0
  %v2159 = vsel %vm151, %v2045, 0
  %v2162 = vsel %vm151, %v2046, 0
  %v2165 = vsel %vm151, %v2047, 0
  %v2168 = vsel %vm151, %v2048, 0
  %v2171 = vsel %vm151, %v2049, 0
  %v2174 = vsel %vm151, %v2050, 0
  %v2177 = vsel %vm151, %v2051, 0
  %v2180 = vsel %vm151, %v2052, 0
  %v2183 = vsel %vm151, %v2053, 0
  %v2186 = vsel %vm151, %v2054, 0
  %v2189 = vsel %vm151, %v2055, 0
  %v2192 = vsel %vm151, %v2056, 0
  %v2195 = vsel %vm151, %v2057, 0
  %v2198 = vsel %vm151, %v2058, 0
  %v2201 = vsel %vm151, %v2059, 0
  %v2204 = vsel %vm151, %v2060, 0
  %v2207 = vsel %vm151, %v2061, 0
  %v2210 = vsel %vm151, %v2062, 0
  %v2213 = vsel %vm151, %v2063, 0
  %v2216 = vsel %vm151, %v2064, 0
  %v2219 = vsel %vm151, %v2065, 0
  %v2222 = vsel %vm151, %v2066, 0
  %v2225 = vsel %vm151, %v2067, 0
  %v2228 = vsel %vm151, %v2068, 0
  %v2231 = vsel %vm151, %v2069, 0
  %v2234 = vsel %vm151, %v2070, 0
  %v2237 = vsel %vm151, %v2071, 0
  %v2240 = vsel %vm151, %v2072, 0
  %v2243 = vsel %vm151, %v2073, 0
  %v2246 = vsel %vm151, %v2074, 0
  %v2249 = vsel %vm151, %v2075, 0
  %v2252 = vsel %vm151, %v2076, 0
  %v2255 = vsel %vm151, %v2077, 0
  %v2258 = vsel %vm151, %v2078, 0
  %v2261 = vsel %vm151, %v2079, 0
  %v2264 = vsel %vm151, %v2080, 0
  %v2267 = vsel %vm151, %v2081, 0
  %v2270 = vsel %vm151, %v2082, 0
  %v2273 = vsel %vm151, %v2083, 0
  %v2276 = vsel %vm151, %v2084, 0
  %v2279 = vsel %vm151, %v2085, 0
  %v2282 = vsel %vm151, %v2086, 0
  %2284 = vmatpush.msra.mxu0 0.0
  %2285 = vmatpush.msra.mxu0 0.0
  %2286 = vmatpush.msra.mxu0 0.0
  %2287 = vmatpush.msra.mxu0 0.0
  %2288 = vmatpush.msra.mxu0 0.0
  %2289 = vmatpush.msra.mxu0 0.0
  %2290 = vmatpush.msra.mxu0 0.0
  %2291 = vmatpush.msra.mxu0 0.0
  %2292 = vmatpush.msra.mxu0 0.0
  %2293 = vmatpush.msra.mxu0 0.0
  %2294 = vmatpush.msra.mxu0 0.0
  %2295 = vmatpush.msra.mxu0 0.0
  %2296 = vmatpush.msra.mxu0 %v2091
  %2297 = vmatpush.msra.mxu0 %v2090
  %2298 = vmatpush.msra.mxu0 %v2089
  %2299 = vmatpush.msra.mxu0 %v2088
  %2300 = vmatmul.f32.gmra.mxu0 %v2093
  %v2301 = vpop.f32.mrf.mxu0
  %v2302 = vadd.f32 0.0, %v2301
  %2303 = vmatmul.f32.gmra.mxu0 %v2096
  %v2304 = vpop.f32.mrf.mxu0
  %v2305 = vadd.f32 0.0, %v2304
  %2306 = vmatmul.f32.gmra.mxu0 %v2099
  %v2307 = vpop.f32.mrf.mxu0
  %v2308 = vadd.f32 0.0, %v2307
  %2309 = vmatmul.f32.gmra.mxu0 %v2102
  %v2310 = vpop.f32.mrf.mxu0
  %v2311 = vadd.f32 0.0, %v2310
  %2312 = vmatmul.f32.gmra.mxu0 %v2105
  %v2313 = vpop.f32.mrf.mxu0
  %v2314 = vadd.f32 0.0, %v2313
  %2315 = vmatmul.f32.gmra.mxu0 %v2108
  %v2316 = vpop.f32.mrf.mxu0
  %v2317 = vadd.f32 0.0, %v2316
  %2318 = vmatmul.f32.gmra.mxu0 %v2111
  %v2319 = vpop.f32.mrf.mxu0
  %v2320 = vadd.f32 0.0, %v2319
  %2321 = vmatmul.f32.gmra.mxu0 %v2114
  %v2322 = vpop.f32.mrf.mxu0
  %v2323 = vadd.f32 0.0, %v2322
  %2324 = vmatmul.f32.gmra.mxu0 %v2117
  %v2325 = vpop.f32.mrf.mxu0
  %v2326 = vadd.f32 0.0, %v2325
  %2327 = vmatmul.f32.gmra.mxu0 %v2120
  %v2328 = vpop.f32.mrf.mxu0
  %v2329 = vadd.f32 0.0, %v2328
  %2330 = vmatmul.f32.gmra.mxu0 %v2123
  %v2331 = vpop.f32.mrf.mxu0
  %v2332 = vadd.f32 0.0, %v2331
  %2333 = vmatmul.f32.gmra.mxu0 %v2126
  %v2334 = vpop.f32.mrf.mxu0
  %v2335 = vadd.f32 0.0, %v2334
  %2336 = vmatmul.f32.gmra.mxu0 %v2129
  %v2337 = vpop.f32.mrf.mxu0
  %v2338 = vadd.f32 0.0, %v2337
  %2339 = vmatmul.f32.gmra.mxu0 %v2132
  %v2340 = vpop.f32.mrf.mxu0
  %v2341 = vadd.f32 0.0, %v2340
  %2342 = vmatmul.f32.gmra.mxu0 %v2135
  %v2343 = vpop.f32.mrf.mxu0
  %v2344 = vadd.f32 0.0, %v2343
  %2345 = vmatmul.f32.gmra.mxu0 %v2138
  %v2346 = vpop.f32.mrf.mxu0
  %v2347 = vadd.f32 0.0, %v2346
  %2348 = vmatmul.f32.gmra.mxu0 %v2141
  %v2349 = vpop.f32.mrf.mxu0
  %v2350 = vadd.f32 0.0, %v2349
  %2351 = vmatmul.f32.gmra.mxu0 %v2144
  %v2352 = vpop.f32.mrf.mxu0
  %v2353 = vadd.f32 0.0, %v2352
  %2354 = vmatmul.f32.gmra.mxu0 %v2147
  %v2355 = vpop.f32.mrf.mxu0
  %v2356 = vadd.f32 0.0, %v2355
  %2357 = vmatmul.f32.gmra.mxu0 %v2150
  %v2358 = vpop.f32.mrf.mxu0
  %v2359 = vadd.f32 0.0, %v2358
  %2360 = vmatmul.f32.gmra.mxu0 %v2153
  %v2361 = vpop.f32.mrf.mxu0
  %v2362 = vadd.f32 0.0, %v2361
  %2363 = vmatmul.f32.gmra.mxu0 %v2156
  %v2364 = vpop.f32.mrf.mxu0
  %v2365 = vadd.f32 0.0, %v2364
  %2366 = vmatmul.f32.gmra.mxu0 %v2159
  %v2367 = vpop.f32.mrf.mxu0
  %v2368 = vadd.f32 0.0, %v2367
  %2369 = vmatmul.f32.gmra.mxu0 %v2162
  %v2370 = vpop.f32.mrf.mxu0
  %v2371 = vadd.f32 0.0, %v2370
  %2372 = vmatmul.f32.gmra.mxu0 %v2165
  %v2373 = vpop.f32.mrf.mxu0
  %v2374 = vadd.f32 0.0, %v2373
  %2375 = vmatmul.f32.gmra.mxu0 %v2168
  %v2376 = vpop.f32.mrf.mxu0
  %v2377 = vadd.f32 0.0, %v2376
  %2378 = vmatmul.f32.gmra.mxu0 %v2171
  %v2379 = vpop.f32.mrf.mxu0
  %v2380 = vadd.f32 0.0, %v2379
  %2381 = vmatmul.f32.gmra.mxu0 %v2174
  %v2382 = vpop.f32.mrf.mxu0
  %v2383 = vadd.f32 0.0, %v2382
  %2384 = vmatmul.f32.gmra.mxu0 %v2177
  %v2385 = vpop.f32.mrf.mxu0
  %v2386 = vadd.f32 0.0, %v2385
  %2387 = vmatmul.f32.gmra.mxu0 %v2180
  %v2388 = vpop.f32.mrf.mxu0
  %v2389 = vadd.f32 0.0, %v2388
  %2390 = vmatmul.f32.gmra.mxu0 %v2183
  %v2391 = vpop.f32.mrf.mxu0
  %v2392 = vadd.f32 0.0, %v2391
  %2393 = vmatmul.f32.gmra.mxu0 %v2186
  %v2394 = vpop.f32.mrf.mxu0
  %v2395 = vadd.f32 0.0, %v2394
  %2396 = vmatmul.f32.gmra.mxu0 %v2189
  %v2397 = vpop.f32.mrf.mxu0
  %v2398 = vadd.f32 0.0, %v2397
  %2399 = vmatmul.f32.gmra.mxu0 %v2192
  %v2400 = vpop.f32.mrf.mxu0
  %v2401 = vadd.f32 0.0, %v2400
  %2402 = vmatmul.f32.gmra.mxu0 %v2195
  %v2403 = vpop.f32.mrf.mxu0
  %v2404 = vadd.f32 0.0, %v2403
  %2405 = vmatmul.f32.gmra.mxu0 %v2198
  %v2406 = vpop.f32.mrf.mxu0
  %v2407 = vadd.f32 0.0, %v2406
  %2408 = vmatmul.f32.gmra.mxu0 %v2201
  %v2409 = vpop.f32.mrf.mxu0
  %v2410 = vadd.f32 0.0, %v2409
  %2411 = vmatmul.f32.gmra.mxu0 %v2204
  %v2412 = vpop.f32.mrf.mxu0
  %v2413 = vadd.f32 0.0, %v2412
  %2414 = vmatmul.f32.gmra.mxu0 %v2207
  %v2415 = vpop.f32.mrf.mxu0
  %v2416 = vadd.f32 0.0, %v2415
  %2417 = vmatmul.f32.gmra.mxu0 %v2210
  %v2418 = vpop.f32.mrf.mxu0
  %v2419 = vadd.f32 0.0, %v2418
  %2420 = vmatmul.f32.gmra.mxu0 %v2213
  %v2421 = vpop.f32.mrf.mxu0
  %v2422 = vadd.f32 0.0, %v2421
  %2423 = vmatmul.f32.gmra.mxu0 %v2216
  %v2424 = vpop.f32.mrf.mxu0
  %v2425 = vadd.f32 0.0, %v2424
  %2426 = vmatmul.f32.gmra.mxu0 %v2219
  %v2427 = vpop.f32.mrf.mxu0
  %v2428 = vadd.f32 0.0, %v2427
  %2429 = vmatmul.f32.gmra.mxu0 %v2222
  %v2430 = vpop.f32.mrf.mxu0
  %v2431 = vadd.f32 0.0, %v2430
  %2432 = vmatmul.f32.gmra.mxu0 %v2225
  %v2433 = vpop.f32.mrf.mxu0
  %v2434 = vadd.f32 0.0, %v2433
  %2435 = vmatmul.f32.gmra.mxu0 %v2228
  %v2436 = vpop.f32.mrf.mxu0
  %v2437 = vadd.f32 0.0, %v2436
  %2438 = vmatmul.f32.gmra.mxu0 %v2231
  %v2439 = vpop.f32.mrf.mxu0
  %v2440 = vadd.f32 0.0, %v2439
  %2441 = vmatmul.f32.gmra.mxu0 %v2234
  %v2442 = vpop.f32.mrf.mxu0
  %v2443 = vadd.f32 0.0, %v2442
  %2444 = vmatmul.f32.gmra.mxu0 %v2237
  %v2445 = vpop.f32.mrf.mxu0
  %v2446 = vadd.f32 0.0, %v2445
  %2447 = vmatmul.f32.gmra.mxu0 %v2240
  %v2448 = vpop.f32.mrf.mxu0
  %v2449 = vadd.f32 0.0, %v2448
  %2450 = vmatmul.f32.gmra.mxu0 %v2243
  %v2451 = vpop.f32.mrf.mxu0
  %v2452 = vadd.f32 0.0, %v2451
  %2453 = vmatmul.f32.gmra.mxu0 %v2246
  %v2454 = vpop.f32.mrf.mxu0
  %v2455 = vadd.f32 0.0, %v2454
  %2456 = vmatmul.f32.gmra.mxu0 %v2249
  %v2457 = vpop.f32.mrf.mxu0
  %v2458 = vadd.f32 0.0, %v2457
  %2459 = vmatmul.f32.gmra.mxu0 %v2252
  %v2460 = vpop.f32.mrf.mxu0
  %v2461 = vadd.f32 0.0, %v2460
  %2462 = vmatmul.f32.gmra.mxu0 %v2255
  %v2463 = vpop.f32.mrf.mxu0
  %v2464 = vadd.f32 0.0, %v2463
  %2465 = vmatmul.f32.gmra.mxu0 %v2258
  %v2466 = vpop.f32.mrf.mxu0
  %v2467 = vadd.f32 0.0, %v2466
  %2468 = vmatmul.f32.gmra.mxu0 %v2261
  %v2469 = vpop.f32.mrf.mxu0
  %v2470 = vadd.f32 0.0, %v2469
  %2471 = vmatmul.f32.gmra.mxu0 %v2264
  %v2472 = vpop.f32.mrf.mxu0
  %v2473 = vadd.f32 0.0, %v2472
  %2474 = vmatmul.f32.gmra.mxu0 %v2267
  %v2475 = vpop.f32.mrf.mxu0
  %v2476 = vadd.f32 0.0, %v2475
  %2477 = vmatmul.f32.gmra.mxu0 %v2270
  %v2478 = vpop.f32.mrf.mxu0
  %v2479 = vadd.f32 0.0, %v2478
  %2480 = vmatmul.f32.gmra.mxu0 %v2273
  %v2481 = vpop.f32.mrf.mxu0
  %v2482 = vadd.f32 0.0, %v2481
  %2483 = vmatmul.f32.gmra.mxu0 %v2276
  %v2484 = vpop.f32.mrf.mxu0
  %v2485 = vadd.f32 0.0, %v2484
  %2486 = vmatmul.f32.gmra.mxu0 %v2279
  %v2487 = vpop.f32.mrf.mxu0
  %v2488 = vadd.f32 0.0, %v2487
  %2489 = vmatmul.f32.gmra.mxu0 %v2282
  %v2490 = vpop.f32.mrf.mxu0
  %v2491 = vadd.f32 0.0, %v2490
  %2492 = vdwg.mxu0
  %v2493 = vadd.f32 %v1959, %v2302
  %v2494 = vadd.f32 %v1960, %v2305
  %v2495 = vadd.f32 %v1961, %v2308
  %v2496 = vadd.f32 %v1962, %v2311
  %v2497 = vadd.f32 %v1963, %v2314
  %v2498 = vadd.f32 %v1964, %v2317
  %v2499 = vadd.f32 %v1965, %v2320
  %v2500 = vadd.f32 %v1966, %v2323
  %v2501 = vadd.f32 %v1967, %v2326
  %v2502 = vadd.f32 %v1968, %v2329
  %v2503 = vadd.f32 %v1969, %v2332
  %v2504 = vadd.f32 %v1970, %v2335
  %v2505 = vadd.f32 %v1971, %v2338
  %v2506 = vadd.f32 %v1972, %v2341
  %v2507 = vadd.f32 %v1973, %v2344
  %v2508 = vadd.f32 %v1974, %v2347
  %v2509 = vadd.f32 %v1975, %v2350
  %v2510 = vadd.f32 %v1976, %v2353
  %v2511 = vadd.f32 %v1977, %v2356
  %v2512 = vadd.f32 %v1978, %v2359
  %v2513 = vadd.f32 %v1979, %v2362
  %v2514 = vadd.f32 %v1980, %v2365
  %v2515 = vadd.f32 %v1981, %v2368
  %v2516 = vadd.f32 %v1982, %v2371
  %v2517 = vadd.f32 %v1983, %v2374
  %v2518 = vadd.f32 %v1984, %v2377
  %v2519 = vadd.f32 %v1985, %v2380
  %v2520 = vadd.f32 %v1986, %v2383
  %v2521 = vadd.f32 %v1987, %v2386
  %v2522 = vadd.f32 %v1988, %v2389
  %v2523 = vadd.f32 %v1989, %v2392
  %v2524 = vadd.f32 %v1990, %v2395
  %v2525 = vadd.f32 %v1991, %v2398
  %v2526 = vadd.f32 %v1992, %v2401
  %v2527 = vadd.f32 %v1993, %v2404
  %v2528 = vadd.f32 %v1994, %v2407
  %v2529 = vadd.f32 %v1995, %v2410
  %v2530 = vadd.f32 %v1996, %v2413
  %v2531 = vadd.f32 %v1997, %v2416
  %v2532 = vadd.f32 %v1998, %v2419
  %v2533 = vadd.f32 %v1999, %v2422
  %v2534 = vadd.f32 %v2000, %v2425
  %v2535 = vadd.f32 %v2001, %v2428
  %v2536 = vadd.f32 %v2002, %v2431
  %v2537 = vadd.f32 %v2003, %v2434
  %v2538 = vadd.f32 %v2004, %v2437
  %v2539 = vadd.f32 %v2005, %v2440
  %v2540 = vadd.f32 %v2006, %v2443
  %v2541 = vadd.f32 %v2007, %v2446
  %v2542 = vadd.f32 %v2008, %v2449
  %v2543 = vadd.f32 %v2009, %v2452
  %v2544 = vadd.f32 %v2010, %v2455
  %v2545 = vadd.f32 %v2011, %v2458
  %v2546 = vadd.f32 %v2012, %v2461
  %v2547 = vadd.f32 %v2013, %v2464
  %v2548 = vadd.f32 %v2014, %v2467
  %v2549 = vadd.f32 %v2015, %v2470
  %v2550 = vadd.f32 %v2016, %v2473
  %v2551 = vadd.f32 %v2017, %v2476
  %v2552 = vadd.f32 %v2018, %v2479
  %v2553 = vadd.f32 %v2019, %v2482
  %v2554 = vadd.f32 %v2020, %v2485
  %v2555 = vadd.f32 %v2021, %v2488
  %v2556 = vadd.f32 %v2022, %v2491
  %v2557 = vld [vmem:[%s1488 + $0x2] sm:$0xff]
  %v2558 = vld [vmem:[%s1488 + $0xa] sm:$0xff]
  %v2559 = vld [vmem:[%s1488 + $0x1a] sm:$0xff]
  %v2560 = vld [vmem:[%s1488 + $0x22] sm:$0xff]
  %v2561 = vld [vmem:[%s1488 + $0x32] sm:$0xff]
  %v2562 = vld [vmem:[%s1488 + $0x3a] sm:$0xff]
  %v2563 = vld [vmem:[%s1488 + $0x4a] sm:$0xff]
  %v2564 = vld [vmem:[%s1488 + $0x52] sm:$0xff]
  %v2565 = vld [vmem:[%s1488 + $0x62] sm:$0xff]
  %v2566 = vld [vmem:[%s1488 + $0x6a] sm:$0xff]
  %v2567 = vld [vmem:[%s1488 + $0x7a] sm:$0xff]
  %v2568 = vld [vmem:[%s1488 + $0x82] sm:$0xff]
  %v2569 = vld [vmem:[%s1488 + $0x92] sm:$0xff]
  %v2570 = vld [vmem:[%s1488 + $0x9a] sm:$0xff]
  %v2571 = vld [vmem:[%s1488 + $0xaa] sm:$0xff]
  %v2572 = vld [vmem:[%s1488 + $0xb2] sm:$0xff]
  %v2573 = vld [vmem:[%s1488 + $0xc2] sm:$0xff]
  %v2574 = vld [vmem:[%s1488 + $0xca] sm:$0xff]
  %v2575 = vld [vmem:[%s1488 + $0xda] sm:$0xff]
  %v2576 = vld [vmem:[%s1488 + $0xe2] sm:$0xff]
  %v2577 = vld [vmem:[%s1488 + $0xf2] sm:$0xff]
  %v2578 = vld [vmem:[%s1488 + $0xfa] sm:$0xff]
  %v2579 = vld [vmem:[%s1488 + $0x10a] sm:$0xff]
  %v2580 = vld [vmem:[%s1488 + $0x112] sm:$0xff]
  %v2581 = vld [vmem:[%s1488 + $0x122] sm:$0xff]
  %v2582 = vld [vmem:[%s1488 + $0x12a] sm:$0xff]
  %v2583 = vld [vmem:[%s1488 + $0x13a] sm:$0xff]
  %v2584 = vld [vmem:[%s1488 + $0x142] sm:$0xff]
  %v2585 = vld [vmem:[%s1488 + $0x152] sm:$0xff]
  %v2586 = vld [vmem:[%s1488 + $0x15a] sm:$0xff]
  %v2587 = vld [vmem:[%s1488 + $0x16a] sm:$0xff]
  %v2588 = vld [vmem:[%s1488 + $0x172] sm:$0xff]
  %v2589 = vld [vmem:[%s1488 + $0x1b2] sm:$0xff]
  %v2590 = vld [vmem:[%s1488 + $0x1ba] sm:$0xff]
  %v2591 = vld [vmem:[%s1488 + $0x1ca] sm:$0xff]
  %v2592 = vld [vmem:[%s1488 + $0x1d2] sm:$0xff]
  %v2593 = vld [vmem:[%s1488 + $0x1e2] sm:$0xff]
  %v2594 = vld [vmem:[%s1488 + $0x1ea] sm:$0xff]
  %v2595 = vld [vmem:[%s1488 + $0x1fa] sm:$0xff]
  %v2596 = vld [vmem:[%s1488 + $0x202] sm:$0xff]
  %v2597 = vld [vmem:[%s1488 + $0x212] sm:$0xff]
  %v2598 = vld [vmem:[%s1488 + $0x21a] sm:$0xff]
  %v2599 = vld [vmem:[%s1488 + $0x22a] sm:$0xff]
  %v2600 = vld [vmem:[%s1488 + $0x232] sm:$0xff]
  %v2601 = vld [vmem:[%s1488 + $0x242] sm:$0xff]
  %v2602 = vld [vmem:[%s1488 + $0x24a] sm:$0xff]
  %v2603 = vld [vmem:[%s1488 + $0x25a] sm:$0xff]
  %v2604 = vld [vmem:[%s1488 + $0x262] sm:$0xff]
  %v2605 = vld [vmem:[%s1488 + $0x272] sm:$0xff]
  %v2606 = vld [vmem:[%s1488 + $0x27a] sm:$0xff]
  %v2607 = vld [vmem:[%s1488 + $0x28a] sm:$0xff]
  %v2608 = vld [vmem:[%s1488 + $0x292] sm:$0xff]
  %v2609 = vld [vmem:[%s1488 + $0x2a2] sm:$0xff]
  %v2610 = vld [vmem:[%s1488 + $0x2aa] sm:$0xff]
  %v2611 = vld [vmem:[%s1488 + $0x2ba] sm:$0xff]
  %v2612 = vld [vmem:[%s1488 + $0x2c2] sm:$0xff]
  %v2613 = vld [vmem:[%s1488 + $0x2d2] sm:$0xff]
  %v2614 = vld [vmem:[%s1488 + $0x2da] sm:$0xff]
  %v2615 = vld [vmem:[%s1488 + $0x2ea] sm:$0xff]
  %v2616 = vld [vmem:[%s1488 + $0x2f2] sm:$0xff]
  %v2617 = vld [vmem:[%s1488 + $0x302] sm:$0xff]
  %v2618 = vld [vmem:[%s1488 + $0x30a] sm:$0xff]
  %v2619 = vld [vmem:[%s1488 + $0x31a] sm:$0xff]
  %v2620 = vld [vmem:[%s1488 + $0x322] sm:$0xff]
  %s2621 = scalar_lea.vmem %s1, 160
  %v2622 = vld [vmem:[%s2621] sm:$0xff]
  %v2623 = vld [vmem:[%s2621 + $0x8] sm:$0xff]
  %v2624 = vld [vmem:[%s2621 + $0x10] sm:$0xff]
  %v2625 = vld [vmem:[%s2621 + $0x18] sm:$0xff]
  %v2627 = vsel %vm151, %v2557, 0
  %v2630 = vsel %vm151, %v2558, 0
  %v2633 = vsel %vm151, %v2559, 0
  %v2636 = vsel %vm151, %v2560, 0
  %v2639 = vsel %vm151, %v2561, 0
  %v2642 = vsel %vm151, %v2562, 0
  %v2645 = vsel %vm151, %v2563, 0
  %v2648 = vsel %vm151, %v2564, 0
  %v2651 = vsel %vm151, %v2565, 0
  %v2654 = vsel %vm151, %v2566, 0
  %v2657 = vsel %vm151, %v2567, 0
  %v2660 = vsel %vm151, %v2568, 0
  %v2663 = vsel %vm151, %v2569, 0
  %v2666 = vsel %vm151, %v2570, 0
  %v2669 = vsel %vm151, %v2571, 0
  %v2672 = vsel %vm151, %v2572, 0
  %v2675 = vsel %vm151, %v2573, 0
  %v2678 = vsel %vm151, %v2574, 0
  %v2681 = vsel %vm151, %v2575, 0
  %v2684 = vsel %vm151, %v2576, 0
  %v2687 = vsel %vm151, %v2577, 0
  %v2690 = vsel %vm151, %v2578, 0
  %v2693 = vsel %vm151, %v2579, 0
  %v2696 = vsel %vm151, %v2580, 0
  %v2699 = vsel %vm151, %v2581, 0
  %v2702 = vsel %vm151, %v2582, 0
  %v2705 = vsel %vm151, %v2583, 0
  %v2708 = vsel %vm151, %v2584, 0
  %v2711 = vsel %vm151, %v2585, 0
  %v2714 = vsel %vm151, %v2586, 0
  %v2717 = vsel %vm151, %v2587, 0
  %v2720 = vsel %vm151, %v2588, 0
  %v2723 = vsel %vm151, %v2589, 0
  %v2726 = vsel %vm151, %v2590, 0
  %v2729 = vsel %vm151, %v2591, 0
  %v2732 = vsel %vm151, %v2592, 0
  %v2735 = vsel %vm151, %v2593, 0
  %v2738 = vsel %vm151, %v2594, 0
  %v2741 = vsel %vm151, %v2595, 0
  %v2744 = vsel %vm151, %v2596, 0
  %v2747 = vsel %vm151, %v2597, 0
  %v2750 = vsel %vm151, %v2598, 0
  %v2753 = vsel %vm151, %v2599, 0
  %v2756 = vsel %vm151, %v2600, 0
  %v2759 = vsel %vm151, %v2601, 0
  %v2762 = vsel %vm151, %v2602, 0
  %v2765 = vsel %vm151, %v2603, 0
  %v2768 = vsel %vm151, %v2604, 0
  %v2771 = vsel %vm151, %v2605, 0
  %v2774 = vsel %vm151, %v2606, 0
  %v2777 = vsel %vm151, %v2607, 0
  %v2780 = vsel %vm151, %v2608, 0
  %v2783 = vsel %vm151, %v2609, 0
  %v2786 = vsel %vm151, %v2610, 0
  %v2789 = vsel %vm151, %v2611, 0
  %v2792 = vsel %vm151, %v2612, 0
  %v2795 = vsel %vm151, %v2613, 0
  %v2798 = vsel %vm151, %v2614, 0
  %v2801 = vsel %vm151, %v2615, 0
  %v2804 = vsel %vm151, %v2616, 0
  %v2807 = vsel %vm151, %v2617, 0
  %v2810 = vsel %vm151, %v2618, 0
  %v2813 = vsel %vm151, %v2619, 0
  %v2816 = vsel %vm151, %v2620, 0
  %2818 = vmatpush.msra.mxu0 0.0
  %2819 = vmatpush.msra.mxu0 0.0
  %2820 = vmatpush.msra.mxu0 0.0
  %2821 = vmatpush.msra.mxu0 0.0
  %2822 = vmatpush.msra.mxu0 0.0
  %2823 = vmatpush.msra.mxu0 0.0
  %2824 = vmatpush.msra.mxu0 0.0
  %2825 = vmatpush.msra.mxu0 0.0
  %2826 = vmatpush.msra.mxu0 0.0
  %2827 = vmatpush.msra.mxu0 0.0
  %2828 = vmatpush.msra.mxu0 0.0
  %2829 = vmatpush.msra.mxu0 0.0
  %2830 = vmatpush.msra.mxu0 %v2625
  %2831 = vmatpush.msra.mxu0 %v2624
  %2832 = vmatpush.msra.mxu0 %v2623
  %2833 = vmatpush.msra.mxu0 %v2622
  %2834 = vmatmul.f32.gmra.mxu0 %v2627
  %v2835 = vpop.f32.mrf.mxu0
  %v2836 = vadd.f32 0.0, %v2835
  %2837 = vmatmul.f32.gmra.mxu0 %v2630
  %v2838 = vpop.f32.mrf.mxu0
  %v2839 = vadd.f32 0.0, %v2838
  %2840 = vmatmul.f32.gmra.mxu0 %v2633
  %v2841 = vpop.f32.mrf.mxu0
  %v2842 = vadd.f32 0.0, %v2841
  %2843 = vmatmul.f32.gmra.mxu0 %v2636
  %v2844 = vpop.f32.mrf.mxu0
  %v2845 = vadd.f32 0.0, %v2844
  %2846 = vmatmul.f32.gmra.mxu0 %v2639
  %v2847 = vpop.f32.mrf.mxu0
  %v2848 = vadd.f32 0.0, %v2847
  %2849 = vmatmul.f32.gmra.mxu0 %v2642
  %v2850 = vpop.f32.mrf.mxu0
  %v2851 = vadd.f32 0.0, %v2850
  %2852 = vmatmul.f32.gmra.mxu0 %v2645
  %v2853 = vpop.f32.mrf.mxu0
  %v2854 = vadd.f32 0.0, %v2853
  %2855 = vmatmul.f32.gmra.mxu0 %v2648
  %v2856 = vpop.f32.mrf.mxu0
  %v2857 = vadd.f32 0.0, %v2856
  %2858 = vmatmul.f32.gmra.mxu0 %v2651
  %v2859 = vpop.f32.mrf.mxu0
  %v2860 = vadd.f32 0.0, %v2859
  %2861 = vmatmul.f32.gmra.mxu0 %v2654
  %v2862 = vpop.f32.mrf.mxu0
  %v2863 = vadd.f32 0.0, %v2862
  %2864 = vmatmul.f32.gmra.mxu0 %v2657
  %v2865 = vpop.f32.mrf.mxu0
  %v2866 = vadd.f32 0.0, %v2865
  %2867 = vmatmul.f32.gmra.mxu0 %v2660
  %v2868 = vpop.f32.mrf.mxu0
  %v2869 = vadd.f32 0.0, %v2868
  %2870 = vmatmul.f32.gmra.mxu0 %v2663
  %v2871 = vpop.f32.mrf.mxu0
  %v2872 = vadd.f32 0.0, %v2871
  %2873 = vmatmul.f32.gmra.mxu0 %v2666
  %v2874 = vpop.f32.mrf.mxu0
  %v2875 = vadd.f32 0.0, %v2874
  %2876 = vmatmul.f32.gmra.mxu0 %v2669
  %v2877 = vpop.f32.mrf.mxu0
  %v2878 = vadd.f32 0.0, %v2877
  %2879 = vmatmul.f32.gmra.mxu0 %v2672
  %v2880 = vpop.f32.mrf.mxu0
  %v2881 = vadd.f32 0.0, %v2880
  %2882 = vmatmul.f32.gmra.mxu0 %v2675
  %v2883 = vpop.f32.mrf.mxu0
  %v2884 = vadd.f32 0.0, %v2883
  %2885 = vmatmul.f32.gmra.mxu0 %v2678
  %v2886 = vpop.f32.mrf.mxu0
  %v2887 = vadd.f32 0.0, %v2886
  %2888 = vmatmul.f32.gmra.mxu0 %v2681
  %v2889 = vpop.f32.mrf.mxu0
  %v2890 = vadd.f32 0.0, %v2889
  %2891 = vmatmul.f32.gmra.mxu0 %v2684
  %v2892 = vpop.f32.mrf.mxu0
  %v2893 = vadd.f32 0.0, %v2892
  %2894 = vmatmul.f32.gmra.mxu0 %v2687
  %v2895 = vpop.f32.mrf.mxu0
  %v2896 = vadd.f32 0.0, %v2895
  %2897 = vmatmul.f32.gmra.mxu0 %v2690
  %v2898 = vpop.f32.mrf.mxu0
  %v2899 = vadd.f32 0.0, %v2898
  %2900 = vmatmul.f32.gmra.mxu0 %v2693
  %v2901 = vpop.f32.mrf.mxu0
  %v2902 = vadd.f32 0.0, %v2901
  %2903 = vmatmul.f32.gmra.mxu0 %v2696
  %v2904 = vpop.f32.mrf.mxu0
  %v2905 = vadd.f32 0.0, %v2904
  %2906 = vmatmul.f32.gmra.mxu0 %v2699
  %v2907 = vpop.f32.mrf.mxu0
  %v2908 = vadd.f32 0.0, %v2907
  %2909 = vmatmul.f32.gmra.mxu0 %v2702
  %v2910 = vpop.f32.mrf.mxu0
  %v2911 = vadd.f32 0.0, %v2910
  %2912 = vmatmul.f32.gmra.mxu0 %v2705
  %v2913 = vpop.f32.mrf.mxu0
  %v2914 = vadd.f32 0.0, %v2913
  %2915 = vmatmul.f32.gmra.mxu0 %v2708
  %v2916 = vpop.f32.mrf.mxu0
  %v2917 = vadd.f32 0.0, %v2916
  %2918 = vmatmul.f32.gmra.mxu0 %v2711
  %v2919 = vpop.f32.mrf.mxu0
  %v2920 = vadd.f32 0.0, %v2919
  %2921 = vmatmul.f32.gmra.mxu0 %v2714
  %v2922 = vpop.f32.mrf.mxu0
  %v2923 = vadd.f32 0.0, %v2922
  %2924 = vmatmul.f32.gmra.mxu0 %v2717
  %v2925 = vpop.f32.mrf.mxu0
  %v2926 = vadd.f32 0.0, %v2925
  %2927 = vmatmul.f32.gmra.mxu0 %v2720
  %v2928 = vpop.f32.mrf.mxu0
  %v2929 = vadd.f32 0.0, %v2928
  %2930 = vmatmul.f32.gmra.mxu0 %v2723
  %v2931 = vpop.f32.mrf.mxu0
  %v2932 = vadd.f32 0.0, %v2931
  %2933 = vmatmul.f32.gmra.mxu0 %v2726
  %v2934 = vpop.f32.mrf.mxu0
  %v2935 = vadd.f32 0.0, %v2934
  %2936 = vmatmul.f32.gmra.mxu0 %v2729
  %v2937 = vpop.f32.mrf.mxu0
  %v2938 = vadd.f32 0.0, %v2937
  %2939 = vmatmul.f32.gmra.mxu0 %v2732
  %v2940 = vpop.f32.mrf.mxu0
  %v2941 = vadd.f32 0.0, %v2940
  %2942 = vmatmul.f32.gmra.mxu0 %v2735
  %v2943 = vpop.f32.mrf.mxu0
  %v2944 = vadd.f32 0.0, %v2943
  %2945 = vmatmul.f32.gmra.mxu0 %v2738
  %v2946 = vpop.f32.mrf.mxu0
  %v2947 = vadd.f32 0.0, %v2946
  %2948 = vmatmul.f32.gmra.mxu0 %v2741
  %v2949 = vpop.f32.mrf.mxu0
  %v2950 = vadd.f32 0.0, %v2949
  %2951 = vmatmul.f32.gmra.mxu0 %v2744
  %v2952 = vpop.f32.mrf.mxu0
  %v2953 = vadd.f32 0.0, %v2952
  %2954 = vmatmul.f32.gmra.mxu0 %v2747
  %v2955 = vpop.f32.mrf.mxu0
  %v2956 = vadd.f32 0.0, %v2955
  %2957 = vmatmul.f32.gmra.mxu0 %v2750
  %v2958 = vpop.f32.mrf.mxu0
  %v2959 = vadd.f32 0.0, %v2958
  %2960 = vmatmul.f32.gmra.mxu0 %v2753
  %v2961 = vpop.f32.mrf.mxu0
  %v2962 = vadd.f32 0.0, %v2961
  %2963 = vmatmul.f32.gmra.mxu0 %v2756
  %v2964 = vpop.f32.mrf.mxu0
  %v2965 = vadd.f32 0.0, %v2964
  %2966 = vmatmul.f32.gmra.mxu0 %v2759
  %v2967 = vpop.f32.mrf.mxu0
  %v2968 = vadd.f32 0.0, %v2967
  %2969 = vmatmul.f32.gmra.mxu0 %v2762
  %v2970 = vpop.f32.mrf.mxu0
  %v2971 = vadd.f32 0.0, %v2970
  %2972 = vmatmul.f32.gmra.mxu0 %v2765
  %v2973 = vpop.f32.mrf.mxu0
  %v2974 = vadd.f32 0.0, %v2973
  %2975 = vmatmul.f32.gmra.mxu0 %v2768
  %v2976 = vpop.f32.mrf.mxu0
  %v2977 = vadd.f32 0.0, %v2976
  %2978 = vmatmul.f32.gmra.mxu0 %v2771
  %v2979 = vpop.f32.mrf.mxu0
  %v2980 = vadd.f32 0.0, %v2979
  %2981 = vmatmul.f32.gmra.mxu0 %v2774
  %v2982 = vpop.f32.mrf.mxu0
  %v2983 = vadd.f32 0.0, %v2982
  %2984 = vmatmul.f32.gmra.mxu0 %v2777
  %v2985 = vpop.f32.mrf.mxu0
  %v2986 = vadd.f32 0.0, %v2985
  %2987 = vmatmul.f32.gmra.mxu0 %v2780
  %v2988 = vpop.f32.mrf.mxu0
  %v2989 = vadd.f32 0.0, %v2988
  %2990 = vmatmul.f32.gmra.mxu0 %v2783
  %v2991 = vpop.f32.mrf.mxu0
  %v2992 = vadd.f32 0.0, %v2991
  %2993 = vmatmul.f32.gmra.mxu0 %v2786
  %v2994 = vpop.f32.mrf.mxu0
  %v2995 = vadd.f32 0.0, %v2994
  %2996 = vmatmul.f32.gmra.mxu0 %v2789
  %v2997 = vpop.f32.mrf.mxu0
  %v2998 = vadd.f32 0.0, %v2997
  %2999 = vmatmul.f32.gmra.mxu0 %v2792
  %v3000 = vpop.f32.mrf.mxu0
  %v3001 = vadd.f32 0.0, %v3000
  %3002 = vmatmul.f32.gmra.mxu0 %v2795
  %v3003 = vpop.f32.mrf.mxu0
  %v3004 = vadd.f32 0.0, %v3003
  %3005 = vmatmul.f32.gmra.mxu0 %v2798
  %v3006 = vpop.f32.mrf.mxu0
  %v3007 = vadd.f32 0.0, %v3006
  %3008 = vmatmul.f32.gmra.mxu0 %v2801
  %v3009 = vpop.f32.mrf.mxu0
  %v3010 = vadd.f32 0.0, %v3009
  %3011 = vmatmul.f32.gmra.mxu0 %v2804
  %v3012 = vpop.f32.mrf.mxu0
  %v3013 = vadd.f32 0.0, %v3012
  %3014 = vmatmul.f32.gmra.mxu0 %v2807
  %v3015 = vpop.f32.mrf.mxu0
  %v3016 = vadd.f32 0.0, %v3015
  %3017 = vmatmul.f32.gmra.mxu0 %v2810
  %v3018 = vpop.f32.mrf.mxu0
  %v3019 = vadd.f32 0.0, %v3018
  %3020 = vmatmul.f32.gmra.mxu0 %v2813
  %v3021 = vpop.f32.mrf.mxu0
  %v3022 = vadd.f32 0.0, %v3021
  %3023 = vmatmul.f32.gmra.mxu0 %v2816
  %v3024 = vpop.f32.mrf.mxu0
  %v3025 = vadd.f32 0.0, %v3024
  %3026 = vdwg.mxu0
  %v3027 = vadd.f32 %v2493, %v2836
  %v3028 = vadd.f32 %v2494, %v2839
  %v3029 = vadd.f32 %v2495, %v2842
  %v3030 = vadd.f32 %v2496, %v2845
  %v3031 = vadd.f32 %v2497, %v2848
  %v3032 = vadd.f32 %v2498, %v2851
  %v3033 = vadd.f32 %v2499, %v2854
  %v3034 = vadd.f32 %v2500, %v2857
  %v3035 = vadd.f32 %v2501, %v2860
  %v3036 = vadd.f32 %v2502, %v2863
  %v3037 = vadd.f32 %v2503, %v2866
  %v3038 = vadd.f32 %v2504, %v2869
  %v3039 = vadd.f32 %v2505, %v2872
  %v3040 = vadd.f32 %v2506, %v2875
  %v3041 = vadd.f32 %v2507, %v2878
  %v3042 = vadd.f32 %v2508, %v2881
  %v3043 = vadd.f32 %v2509, %v2884
  %v3044 = vadd.f32 %v2510, %v2887
  %v3045 = vadd.f32 %v2511, %v2890
  %v3046 = vadd.f32 %v2512, %v2893
  %v3047 = vadd.f32 %v2513, %v2896
  %v3048 = vadd.f32 %v2514, %v2899
  %v3049 = vadd.f32 %v2515, %v2902
  %v3050 = vadd.f32 %v2516, %v2905
  %v3051 = vadd.f32 %v2517, %v2908
  %v3052 = vadd.f32 %v2518, %v2911
  %v3053 = vadd.f32 %v2519, %v2914
  %v3054 = vadd.f32 %v2520, %v2917
  %v3055 = vadd.f32 %v2521, %v2920
  %v3056 = vadd.f32 %v2522, %v2923
  %v3057 = vadd.f32 %v2523, %v2926
  %v3058 = vadd.f32 %v2524, %v2929
  %v3059 = vadd.f32 %v2525, %v2932
  %v3060 = vadd.f32 %v2526, %v2935
  %v3061 = vadd.f32 %v2527, %v2938
  %v3062 = vadd.f32 %v2528, %v2941
  %v3063 = vadd.f32 %v2529, %v2944
  %v3064 = vadd.f32 %v2530, %v2947
  %v3065 = vadd.f32 %v2531, %v2950
  %v3066 = vadd.f32 %v2532, %v2953
  %v3067 = vadd.f32 %v2533, %v2956
  %v3068 = vadd.f32 %v2534, %v2959
  %v3069 = vadd.f32 %v2535, %v2962
  %v3070 = vadd.f32 %v2536, %v2965
  %v3071 = vadd.f32 %v2537, %v2968
  %v3072 = vadd.f32 %v2538, %v2971
  %v3073 = vadd.f32 %v2539, %v2974
  %v3074 = vadd.f32 %v2540, %v2977
  %v3075 = vadd.f32 %v2541, %v2980
  %v3076 = vadd.f32 %v2542, %v2983
  %v3077 = vadd.f32 %v2543, %v2986
  %v3078 = vadd.f32 %v2544, %v2989
  %v3079 = vadd.f32 %v2545, %v2992
  %v3080 = vadd.f32 %v2546, %v2995
  %v3081 = vadd.f32 %v2547, %v2998
  %v3082 = vadd.f32 %v2548, %v3001
  %v3083 = vadd.f32 %v2549, %v3004
  %v3084 = vadd.f32 %v2550, %v3007
  %v3085 = vadd.f32 %v2551, %v3010
  %v3086 = vadd.f32 %v2552, %v3013
  %v3087 = vadd.f32 %v2553, %v3016
  %v3088 = vadd.f32 %v2554, %v3019
  %v3089 = vadd.f32 %v2555, %v3022
  %v3090 = vadd.f32 %v2556, %v3025
  %s3091 = scalar_lea.vmem %s0, 48
  %v3092 = vld [vmem:[%s3091] sm:$0xff]
  %v3093 = vld [vmem:[%s3091 + $0x8] sm:$0xff]
  %v3094 = vld [vmem:[%s3091 + $0x18] sm:$0xff]
  %v3095 = vld [vmem:[%s3091 + $0x20] sm:$0xff]
  %v3096 = vld [vmem:[%s3091 + $0x30] sm:$0xff]
  %v3097 = vld [vmem:[%s3091 + $0x38] sm:$0xff]
  %v3098 = vld [vmem:[%s3091 + $0x48] sm:$0xff]
  %v3099 = vld [vmem:[%s3091 + $0x50] sm:$0xff]
  %v3100 = vld [vmem:[%s3091 + $0x60] sm:$0xff]
  %v3101 = vld [vmem:[%s3091 + $0x68] sm:$0xff]
  %v3102 = vld [vmem:[%s3091 + $0x78] sm:$0xff]
  %v3103 = vld [vmem:[%s3091 + $0x80] sm:$0xff]
  %v3104 = vld [vmem:[%s3091 + $0x90] sm:$0xff]
  %v3105 = vld [vmem:[%s3091 + $0x98] sm:$0xff]
  %v3106 = vld [vmem:[%s3091 + $0xa8] sm:$0xff]
  %v3107 = vld [vmem:[%s3091 + $0xb0] sm:$0xff]
  %v3108 = vld [vmem:[%s3091 + $0xc0] sm:$0xff]
  %v3109 = vld [vmem:[%s3091 + $0xc8] sm:$0xff]
  %v3110 = vld [vmem:[%s3091 + $0xd8] sm:$0xff]
  %v3111 = vld [vmem:[%s3091 + $0xe0] sm:$0xff]
  %v3112 = vld [vmem:[%s3091 + $0xf0] sm:$0xff]
  %v3113 = vld [vmem:[%s3091 + $0xf8] sm:$0xff]
  %v3114 = vld [vmem:[%s3091 + $0x108] sm:$0xff]
  %v3115 = vld [vmem:[%s3091 + $0x110] sm:$0xff]
  %v3116 = vld [vmem:[%s3091 + $0x120] sm:$0xff]
  %v3117 = vld [vmem:[%s3091 + $0x128] sm:$0xff]
  %v3118 = vld [vmem:[%s3091 + $0x138] sm:$0xff]
  %v3119 = vld [vmem:[%s3091 + $0x140] sm:$0xff]
  %v3120 = vld [vmem:[%s3091 + $0x150] sm:$0xff]
  %v3121 = vld [vmem:[%s3091 + $0x158] sm:$0xff]
  %v3122 = vld [vmem:[%s3091 + $0x168] sm:$0xff]
  %v3123 = vld [vmem:[%s3091 + $0x170] sm:$0xff]
  %v3124 = vld [vmem:[%s3091 + $0x1b0] sm:$0xff]
  %v3125 = vld [vmem:[%s3091 + $0x1b8] sm:$0xff]
  %v3126 = vld [vmem:[%s3091 + $0x1c8] sm:$0xff]
  %v3127 = vld [vmem:[%s3091 + $0x1d0] sm:$0xff]
  %v3128 = vld [vmem:[%s3091 + $0x1e0] sm:$0xff]
  %v3129 = vld [vmem:[%s3091 + $0x1e8] sm:$0xff]
  %v3130 = vld [vmem:[%s3091 + $0x1f8] sm:$0xff]
  %v3131 = vld [vmem:[%s3091 + $0x200] sm:$0xff]
  %v3132 = vld [vmem:[%s3091 + $0x210] sm:$0xff]
  %v3133 = vld [vmem:[%s3091 + $0x218] sm:$0xff]
  %v3134 = vld [vmem:[%s3091 + $0x228] sm:$0xff]
  %v3135 = vld [vmem:[%s3091 + $0x230] sm:$0xff]
  %v3136 = vld [vmem:[%s3091 + $0x240] sm:$0xff]
  %v3137 = vld [vmem:[%s3091 + $0x248] sm:$0xff]
  %v3138 = vld [vmem:[%s3091 + $0x258] sm:$0xff]
  %v3139 = vld [vmem:[%s3091 + $0x260] sm:$0xff]
  %v3140 = vld [vmem:[%s3091 + $0x270] sm:$0xff]
  %v3141 = vld [vmem:[%s3091 + $0x278] sm:$0xff]
  %v3142 = vld [vmem:[%s3091 + $0x288] sm:$0xff]
  %v3143 = vld [vmem:[%s3091 + $0x290] sm:$0xff]
  %v3144 = vld [vmem:[%s3091 + $0x2a0] sm:$0xff]
  %v3145 = vld [vmem:[%s3091 + $0x2a8] sm:$0xff]
  %v3146 = vld [vmem:[%s3091 + $0x2b8] sm:$0xff]
  %v3147 = vld [vmem:[%s3091 + $0x2c0] sm:$0xff]
  %v3148 = vld [vmem:[%s3091 + $0x2d0] sm:$0xff]
  %v3149 = vld [vmem:[%s3091 + $0x2d8] sm:$0xff]
  %v3150 = vld [vmem:[%s3091 + $0x2e8] sm:$0xff]
  %v3151 = vld [vmem:[%s3091 + $0x2f0] sm:$0xff]
  %v3152 = vld [vmem:[%s3091 + $0x300] sm:$0xff]
  %v3153 = vld [vmem:[%s3091 + $0x308] sm:$0xff]
  %v3154 = vld [vmem:[%s3091 + $0x318] sm:$0xff]
  %v3155 = vld [vmem:[%s3091 + $0x320] sm:$0xff]
  %s3156 = scalar_lea.vmem %s1, 192
  %v3157 = vld [vmem:[%s3156] sm:$0xff]
  %v3158 = vld [vmem:[%s3156 + $0x8] sm:$0xff]
  %v3159 = vld [vmem:[%s3156 + $0x10] sm:$0xff]
  %v3160 = vld [vmem:[%s3156 + $0x18] sm:$0xff]
  %v3162 = vsel %vm151, %v3092, 0
  %v3165 = vsel %vm151, %v3093, 0
  %v3168 = vsel %vm151, %v3094, 0
  %v3171 = vsel %vm151, %v3095, 0
  %v3174 = vsel %vm151, %v3096, 0
  %v3177 = vsel %vm151, %v3097, 0
  %v3180 = vsel %vm151, %v3098, 0
  %v3183 = vsel %vm151, %v3099, 0
  %v3186 = vsel %vm151, %v3100, 0
  %v3189 = vsel %vm151, %v3101, 0
  %v3192 = vsel %vm151, %v3102, 0
  %v3195 = vsel %vm151, %v3103, 0
  %v3198 = vsel %vm151, %v3104, 0
  %v3201 = vsel %vm151, %v3105, 0
  %v3204 = vsel %vm151, %v3106, 0
  %v3207 = vsel %vm151, %v3107, 0
  %v3210 = vsel %vm151, %v3108, 0
  %v3213 = vsel %vm151, %v3109, 0
  %v3216 = vsel %vm151, %v3110, 0
  %v3219 = vsel %vm151, %v3111, 0
  %v3222 = vsel %vm151, %v3112, 0
  %v3225 = vsel %vm151, %v3113, 0
  %v3228 = vsel %vm151, %v3114, 0
  %v3231 = vsel %vm151, %v3115, 0
  %v3234 = vsel %vm151, %v3116, 0
  %v3237 = vsel %vm151, %v3117, 0
  %v3240 = vsel %vm151, %v3118, 0
  %v3243 = vsel %vm151, %v3119, 0
  %v3246 = vsel %vm151, %v3120, 0
  %v3249 = vsel %vm151, %v3121, 0
  %v3252 = vsel %vm151, %v3122, 0
  %v3255 = vsel %vm151, %v3123, 0
  %v3258 = vsel %vm151, %v3124, 0
  %v3261 = vsel %vm151, %v3125, 0
  %v3264 = vsel %vm151, %v3126, 0
  %v3267 = vsel %vm151, %v3127, 0
  %v3270 = vsel %vm151, %v3128, 0
  %v3273 = vsel %vm151, %v3129, 0
  %v3276 = vsel %vm151, %v3130, 0
  %v3279 = vsel %vm151, %v3131, 0
  %v3282 = vsel %vm151, %v3132, 0
  %v3285 = vsel %vm151, %v3133, 0
  %v3288 = vsel %vm151, %v3134, 0
  %v3291 = vsel %vm151, %v3135, 0
  %v3294 = vsel %vm151, %v3136, 0
  %v3297 = vsel %vm151, %v3137, 0
  %v3300 = vsel %vm151, %v3138, 0
  %v3303 = vsel %vm151, %v3139, 0
  %v3306 = vsel %vm151, %v3140, 0
  %v3309 = vsel %vm151, %v3141, 0
  %v3312 = vsel %vm151, %v3142, 0
  %v3315 = vsel %vm151, %v3143, 0
  %v3318 = vsel %vm151, %v3144, 0
  %v3321 = vsel %vm151, %v3145, 0
  %v3324 = vsel %vm151, %v3146, 0
  %v3327 = vsel %vm151, %v3147, 0
  %v3330 = vsel %vm151, %v3148, 0
  %v3333 = vsel %vm151, %v3149, 0
  %v3336 = vsel %vm151, %v3150, 0
  %v3339 = vsel %vm151, %v3151, 0
  %v3342 = vsel %vm151, %v3152, 0
  %v3345 = vsel %vm151, %v3153, 0
  %v3348 = vsel %vm151, %v3154, 0
  %v3351 = vsel %vm151, %v3155, 0
  %3353 = vmatpush.msra.mxu0 0.0
  %3354 = vmatpush.msra.mxu0 0.0
  %3355 = vmatpush.msra.mxu0 0.0
  %3356 = vmatpush.msra.mxu0 0.0
  %3357 = vmatpush.msra.mxu0 0.0
  %3358 = vmatpush.msra.mxu0 0.0
  %3359 = vmatpush.msra.mxu0 0.0
  %3360 = vmatpush.msra.mxu0 0.0
  %3361 = vmatpush.msra.mxu0 0.0
  %3362 = vmatpush.msra.mxu0 0.0
  %3363 = vmatpush.msra.mxu0 0.0
  %3364 = vmatpush.msra.mxu0 0.0
  %3365 = vmatpush.msra.mxu0 %v3160
  %3366 = vmatpush.msra.mxu0 %v3159
  %3367 = vmatpush.msra.mxu0 %v3158
  %3368 = vmatpush.msra.mxu0 %v3157
  %3369 = vmatmul.f32.gmra.mxu0 %v3162
  %v3370 = vpop.f32.mrf.mxu0
  %v3371 = vadd.f32 0.0, %v3370
  %3372 = vmatmul.f32.gmra.mxu0 %v3165
  %v3373 = vpop.f32.mrf.mxu0
  %v3374 = vadd.f32 0.0, %v3373
  %3375 = vmatmul.f32.gmra.mxu0 %v3168
  %v3376 = vpop.f32.mrf.mxu0
  %v3377 = vadd.f32 0.0, %v3376
  %3378 = vmatmul.f32.gmra.mxu0 %v3171
  %v3379 = vpop.f32.mrf.mxu0
  %v3380 = vadd.f32 0.0, %v3379
  %3381 = vmatmul.f32.gmra.mxu0 %v3174
  %v3382 = vpop.f32.mrf.mxu0
  %v3383 = vadd.f32 0.0, %v3382
  %3384 = vmatmul.f32.gmra.mxu0 %v3177
  %v3385 = vpop.f32.mrf.mxu0
  %v3386 = vadd.f32 0.0, %v3385
  %3387 = vmatmul.f32.gmra.mxu0 %v3180
  %v3388 = vpop.f32.mrf.mxu0
  %v3389 = vadd.f32 0.0, %v3388
  %3390 = vmatmul.f32.gmra.mxu0 %v3183
  %v3391 = vpop.f32.mrf.mxu0
  %v3392 = vadd.f32 0.0, %v3391
  %3393 = vmatmul.f32.gmra.mxu0 %v3186
  %v3394 = vpop.f32.mrf.mxu0
  %v3395 = vadd.f32 0.0, %v3394
  %3396 = vmatmul.f32.gmra.mxu0 %v3189
  %v3397 = vpop.f32.mrf.mxu0
  %v3398 = vadd.f32 0.0, %v3397
  %3399 = vmatmul.f32.gmra.mxu0 %v3192
  %v3400 = vpop.f32.mrf.mxu0
  %v3401 = vadd.f32 0.0, %v3400
  %3402 = vmatmul.f32.gmra.mxu0 %v3195
  %v3403 = vpop.f32.mrf.mxu0
  %v3404 = vadd.f32 0.0, %v3403
  %3405 = vmatmul.f32.gmra.mxu0 %v3198
  %v3406 = vpop.f32.mrf.mxu0
  %v3407 = vadd.f32 0.0, %v3406
  %3408 = vmatmul.f32.gmra.mxu0 %v3201
  %v3409 = vpop.f32.mrf.mxu0
  %v3410 = vadd.f32 0.0, %v3409
  %3411 = vmatmul.f32.gmra.mxu0 %v3204
  %v3412 = vpop.f32.mrf.mxu0
  %v3413 = vadd.f32 0.0, %v3412
  %3414 = vmatmul.f32.gmra.mxu0 %v3207
  %v3415 = vpop.f32.mrf.mxu0
  %v3416 = vadd.f32 0.0, %v3415
  %3417 = vmatmul.f32.gmra.mxu0 %v3210
  %v3418 = vpop.f32.mrf.mxu0
  %v3419 = vadd.f32 0.0, %v3418
  %3420 = vmatmul.f32.gmra.mxu0 %v3213
  %v3421 = vpop.f32.mrf.mxu0
  %v3422 = vadd.f32 0.0, %v3421
  %3423 = vmatmul.f32.gmra.mxu0 %v3216
  %v3424 = vpop.f32.mrf.mxu0
  %v3425 = vadd.f32 0.0, %v3424
  %3426 = vmatmul.f32.gmra.mxu0 %v3219
  %v3427 = vpop.f32.mrf.mxu0
  %v3428 = vadd.f32 0.0, %v3427
  %3429 = vmatmul.f32.gmra.mxu0 %v3222
  %v3430 = vpop.f32.mrf.mxu0
  %v3431 = vadd.f32 0.0, %v3430
  %3432 = vmatmul.f32.gmra.mxu0 %v3225
  %v3433 = vpop.f32.mrf.mxu0
  %v3434 = vadd.f32 0.0, %v3433
  %3435 = vmatmul.f32.gmra.mxu0 %v3228
  %v3436 = vpop.f32.mrf.mxu0
  %v3437 = vadd.f32 0.0, %v3436
  %3438 = vmatmul.f32.gmra.mxu0 %v3231
  %v3439 = vpop.f32.mrf.mxu0
  %v3440 = vadd.f32 0.0, %v3439
  %3441 = vmatmul.f32.gmra.mxu0 %v3234
  %v3442 = vpop.f32.mrf.mxu0
  %v3443 = vadd.f32 0.0, %v3442
  %3444 = vmatmul.f32.gmra.mxu0 %v3237
  %v3445 = vpop.f32.mrf.mxu0
  %v3446 = vadd.f32 0.0, %v3445
  %3447 = vmatmul.f32.gmra.mxu0 %v3240
  %v3448 = vpop.f32.mrf.mxu0
  %v3449 = vadd.f32 0.0, %v3448
  %3450 = vmatmul.f32.gmra.mxu0 %v3243
  %v3451 = vpop.f32.mrf.mxu0
  %v3452 = vadd.f32 0.0, %v3451
  %3453 = vmatmul.f32.gmra.mxu0 %v3246
  %v3454 = vpop.f32.mrf.mxu0
  %v3455 = vadd.f32 0.0, %v3454
  %3456 = vmatmul.f32.gmra.mxu0 %v3249
  %v3457 = vpop.f32.mrf.mxu0
  %v3458 = vadd.f32 0.0, %v3457
  %3459 = vmatmul.f32.gmra.mxu0 %v3252
  %v3460 = vpop.f32.mrf.mxu0
  %v3461 = vadd.f32 0.0, %v3460
  %3462 = vmatmul.f32.gmra.mxu0 %v3255
  %v3463 = vpop.f32.mrf.mxu0
  %v3464 = vadd.f32 0.0, %v3463
  %3465 = vmatmul.f32.gmra.mxu0 %v3258
  %v3466 = vpop.f32.mrf.mxu0
  %v3467 = vadd.f32 0.0, %v3466
  %3468 = vmatmul.f32.gmra.mxu0 %v3261
  %v3469 = vpop.f32.mrf.mxu0
  %v3470 = vadd.f32 0.0, %v3469
  %3471 = vmatmul.f32.gmra.mxu0 %v3264
  %v3472 = vpop.f32.mrf.mxu0
  %v3473 = vadd.f32 0.0, %v3472
  %3474 = vmatmul.f32.gmra.mxu0 %v3267
  %v3475 = vpop.f32.mrf.mxu0
  %v3476 = vadd.f32 0.0, %v3475
  %3477 = vmatmul.f32.gmra.mxu0 %v3270
  %v3478 = vpop.f32.mrf.mxu0
  %v3479 = vadd.f32 0.0, %v3478
  %3480 = vmatmul.f32.gmra.mxu0 %v3273
  %v3481 = vpop.f32.mrf.mxu0
  %v3482 = vadd.f32 0.0, %v3481
  %3483 = vmatmul.f32.gmra.mxu0 %v3276
  %v3484 = vpop.f32.mrf.mxu0
  %v3485 = vadd.f32 0.0, %v3484
  %3486 = vmatmul.f32.gmra.mxu0 %v3279
  %v3487 = vpop.f32.mrf.mxu0
  %v3488 = vadd.f32 0.0, %v3487
  %3489 = vmatmul.f32.gmra.mxu0 %v3282
  %v3490 = vpop.f32.mrf.mxu0
  %v3491 = vadd.f32 0.0, %v3490
  %3492 = vmatmul.f32.gmra.mxu0 %v3285
  %v3493 = vpop.f32.mrf.mxu0
  %v3494 = vadd.f32 0.0, %v3493
  %3495 = vmatmul.f32.gmra.mxu0 %v3288
  %v3496 = vpop.f32.mrf.mxu0
  %v3497 = vadd.f32 0.0, %v3496
  %3498 = vmatmul.f32.gmra.mxu0 %v3291
  %v3499 = vpop.f32.mrf.mxu0
  %v3500 = vadd.f32 0.0, %v3499
  %3501 = vmatmul.f32.gmra.mxu0 %v3294
  %v3502 = vpop.f32.mrf.mxu0
  %v3503 = vadd.f32 0.0, %v3502
  %3504 = vmatmul.f32.gmra.mxu0 %v3297
  %v3505 = vpop.f32.mrf.mxu0
  %v3506 = vadd.f32 0.0, %v3505
  %3507 = vmatmul.f32.gmra.mxu0 %v3300
  %v3508 = vpop.f32.mrf.mxu0
  %v3509 = vadd.f32 0.0, %v3508
  %3510 = vmatmul.f32.gmra.mxu0 %v3303
  %v3511 = vpop.f32.mrf.mxu0
  %v3512 = vadd.f32 0.0, %v3511
  %3513 = vmatmul.f32.gmra.mxu0 %v3306
  %v3514 = vpop.f32.mrf.mxu0
  %v3515 = vadd.f32 0.0, %v3514
  %3516 = vmatmul.f32.gmra.mxu0 %v3309
  %v3517 = vpop.f32.mrf.mxu0
  %v3518 = vadd.f32 0.0, %v3517
  %3519 = vmatmul.f32.gmra.mxu0 %v3312
  %v3520 = vpop.f32.mrf.mxu0
  %v3521 = vadd.f32 0.0, %v3520
  %3522 = vmatmul.f32.gmra.mxu0 %v3315
  %v3523 = vpop.f32.mrf.mxu0
  %v3524 = vadd.f32 0.0, %v3523
  %3525 = vmatmul.f32.gmra.mxu0 %v3318
  %v3526 = vpop.f32.mrf.mxu0
  %v3527 = vadd.f32 0.0, %v3526
  %3528 = vmatmul.f32.gmra.mxu0 %v3321
  %v3529 = vpop.f32.mrf.mxu0
  %v3530 = vadd.f32 0.0, %v3529
  %3531 = vmatmul.f32.gmra.mxu0 %v3324
  %v3532 = vpop.f32.mrf.mxu0
  %v3533 = vadd.f32 0.0, %v3532
  %3534 = vmatmul.f32.gmra.mxu0 %v3327
  %v3535 = vpop.f32.mrf.mxu0
  %v3536 = vadd.f32 0.0, %v3535
  %3537 = vmatmul.f32.gmra.mxu0 %v3330
  %v3538 = vpop.f32.mrf.mxu0
  %v3539 = vadd.f32 0.0, %v3538
  %3540 = vmatmul.f32.gmra.mxu0 %v3333
  %v3541 = vpop.f32.mrf.mxu0
  %v3542 = vadd.f32 0.0, %v3541
  %3543 = vmatmul.f32.gmra.mxu0 %v3336
  %v3544 = vpop.f32.mrf.mxu0
  %v3545 = vadd.f32 0.0, %v3544
  %3546 = vmatmul.f32.gmra.mxu0 %v3339
  %v3547 = vpop.f32.mrf.mxu0
  %v3548 = vadd.f32 0.0, %v3547
  %3549 = vmatmul.f32.gmra.mxu0 %v3342
  %v3550 = vpop.f32.mrf.mxu0
  %v3551 = vadd.f32 0.0, %v3550
  %3552 = vmatmul.f32.gmra.mxu0 %v3345
  %v3553 = vpop.f32.mrf.mxu0
  %v3554 = vadd.f32 0.0, %v3553
  %3555 = vmatmul.f32.gmra.mxu0 %v3348
  %v3556 = vpop.f32.mrf.mxu0
  %v3557 = vadd.f32 0.0, %v3556
  %3558 = vmatmul.f32.gmra.mxu0 %v3351
  %v3559 = vpop.f32.mrf.mxu0
  %v3560 = vadd.f32 0.0, %v3559
  %3561 = vdwg.mxu0
  %v3562 = vadd.f32 %v3027, %v3371
  %v3563 = vadd.f32 %v3028, %v3374
  %v3564 = vadd.f32 %v3029, %v3377
  %v3565 = vadd.f32 %v3030, %v3380
  %v3566 = vadd.f32 %v3031, %v3383
  %v3567 = vadd.f32 %v3032, %v3386
  %v3568 = vadd.f32 %v3033, %v3389
  %v3569 = vadd.f32 %v3034, %v3392
  %v3570 = vadd.f32 %v3035, %v3395
  %v3571 = vadd.f32 %v3036, %v3398
  %v3572 = vadd.f32 %v3037, %v3401
  %v3573 = vadd.f32 %v3038, %v3404
  %v3574 = vadd.f32 %v3039, %v3407
  %v3575 = vadd.f32 %v3040, %v3410
  %v3576 = vadd.f32 %v3041, %v3413
  %v3577 = vadd.f32 %v3042, %v3416
  %v3578 = vadd.f32 %v3043, %v3419
  %v3579 = vadd.f32 %v3044, %v3422
  %v3580 = vadd.f32 %v3045, %v3425
  %v3581 = vadd.f32 %v3046, %v3428
  %v3582 = vadd.f32 %v3047, %v3431
  %v3583 = vadd.f32 %v3048, %v3434
  %v3584 = vadd.f32 %v3049, %v3437
  %v3585 = vadd.f32 %v3050, %v3440
  %v3586 = vadd.f32 %v3051, %v3443
  %v3587 = vadd.f32 %v3052, %v3446
  %v3588 = vadd.f32 %v3053, %v3449
  %v3589 = vadd.f32 %v3054, %v3452
  %v3590 = vadd.f32 %v3055, %v3455
  %v3591 = vadd.f32 %v3056, %v3458
  %v3592 = vadd.f32 %v3057, %v3461
  %v3593 = vadd.f32 %v3058, %v3464
  %v3594 = vadd.f32 %v3059, %v3467
  %v3595 = vadd.f32 %v3060, %v3470
  %v3596 = vadd.f32 %v3061, %v3473
  %v3597 = vadd.f32 %v3062, %v3476
  %v3598 = vadd.f32 %v3063, %v3479
  %v3599 = vadd.f32 %v3064, %v3482
  %v3600 = vadd.f32 %v3065, %v3485
  %v3601 = vadd.f32 %v3066, %v3488
  %v3602 = vadd.f32 %v3067, %v3491
  %v3603 = vadd.f32 %v3068, %v3494
  %v3604 = vadd.f32 %v3069, %v3497
  %v3605 = vadd.f32 %v3070, %v3500
  %v3606 = vadd.f32 %v3071, %v3503
  %v3607 = vadd.f32 %v3072, %v3506
  %v3608 = vadd.f32 %v3073, %v3509
  %v3609 = vadd.f32 %v3074, %v3512
  %v3610 = vadd.f32 %v3075, %v3515
  %v3611 = vadd.f32 %v3076, %v3518
  %v3612 = vadd.f32 %v3077, %v3521
  %v3613 = vadd.f32 %v3078, %v3524
  %v3614 = vadd.f32 %v3079, %v3527
  %v3615 = vadd.f32 %v3080, %v3530
  %v3616 = vadd.f32 %v3081, %v3533
  %v3617 = vadd.f32 %v3082, %v3536
  %v3618 = vadd.f32 %v3083, %v3539
  %v3619 = vadd.f32 %v3084, %v3542
  %v3620 = vadd.f32 %v3085, %v3545
  %v3621 = vadd.f32 %v3086, %v3548
  %v3622 = vadd.f32 %v3087, %v3551
  %v3623 = vadd.f32 %v3088, %v3554
  %v3624 = vadd.f32 %v3089, %v3557
  %v3625 = vadd.f32 %v3090, %v3560
  %v3626 = vld [vmem:[%s3091 + $0x1] sm:$0xff]
  %v3627 = vld [vmem:[%s3091 + $0x9] sm:$0xff]
  %v3628 = vld [vmem:[%s3091 + $0x19] sm:$0xff]
  %v3629 = vld [vmem:[%s3091 + $0x21] sm:$0xff]
  %v3630 = vld [vmem:[%s3091 + $0x31] sm:$0xff]
  %v3631 = vld [vmem:[%s3091 + $0x39] sm:$0xff]
  %v3632 = vld [vmem:[%s3091 + $0x49] sm:$0xff]
  %v3633 = vld [vmem:[%s3091 + $0x51] sm:$0xff]
  %v3634 = vld [vmem:[%s3091 + $0x61] sm:$0xff]
  %v3635 = vld [vmem:[%s3091 + $0x69] sm:$0xff]
  %v3636 = vld [vmem:[%s3091 + $0x79] sm:$0xff]
  %v3637 = vld [vmem:[%s3091 + $0x81] sm:$0xff]
  %v3638 = vld [vmem:[%s3091 + $0x91] sm:$0xff]
  %v3639 = vld [vmem:[%s3091 + $0x99] sm:$0xff]
  %v3640 = vld [vmem:[%s3091 + $0xa9] sm:$0xff]
  %v3641 = vld [vmem:[%s3091 + $0xb1] sm:$0xff]
  %v3642 = vld [vmem:[%s3091 + $0xc1] sm:$0xff]
  %v3643 = vld [vmem:[%s3091 + $0xc9] sm:$0xff]
  %v3644 = vld [vmem:[%s3091 + $0xd9] sm:$0xff]
  %v3645 = vld [vmem:[%s3091 + $0xe1] sm:$0xff]
  %v3646 = vld [vmem:[%s3091 + $0xf1] sm:$0xff]
  %v3647 = vld [vmem:[%s3091 + $0xf9] sm:$0xff]
  %v3648 = vld [vmem:[%s3091 + $0x109] sm:$0xff]
  %v3649 = vld [vmem:[%s3091 + $0x111] sm:$0xff]
  %v3650 = vld [vmem:[%s3091 + $0x121] sm:$0xff]
  %v3651 = vld [vmem:[%s3091 + $0x129] sm:$0xff]
  %v3652 = vld [vmem:[%s3091 + $0x139] sm:$0xff]
  %v3653 = vld [vmem:[%s3091 + $0x141] sm:$0xff]
  %v3654 = vld [vmem:[%s3091 + $0x151] sm:$0xff]
  %v3655 = vld [vmem:[%s3091 + $0x159] sm:$0xff]
  %v3656 = vld [vmem:[%s3091 + $0x169] sm:$0xff]
  %v3657 = vld [vmem:[%s3091 + $0x171] sm:$0xff]
  %v3658 = vld [vmem:[%s3091 + $0x1b1] sm:$0xff]
  %v3659 = vld [vmem:[%s3091 + $0x1b9] sm:$0xff]
  %v3660 = vld [vmem:[%s3091 + $0x1c9] sm:$0xff]
  %v3661 = vld [vmem:[%s3091 + $0x1d1] sm:$0xff]
  %v3662 = vld [vmem:[%s3091 + $0x1e1] sm:$0xff]
  %v3663 = vld [vmem:[%s3091 + $0x1e9] sm:$0xff]
  %v3664 = vld [vmem:[%s3091 + $0x1f9] sm:$0xff]
  %v3665 = vld [vmem:[%s3091 + $0x201] sm:$0xff]
  %v3666 = vld [vmem:[%s3091 + $0x211] sm:$0xff]
  %v3667 = vld [vmem:[%s3091 + $0x219] sm:$0xff]
  %v3668 = vld [vmem:[%s3091 + $0x229] sm:$0xff]
  %v3669 = vld [vmem:[%s3091 + $0x231] sm:$0xff]
  %v3670 = vld [vmem:[%s3091 + $0x241] sm:$0xff]
  %v3671 = vld [vmem:[%s3091 + $0x249] sm:$0xff]
  %v3672 = vld [vmem:[%s3091 + $0x259] sm:$0xff]
  %v3673 = vld [vmem:[%s3091 + $0x261] sm:$0xff]
  %v3674 = vld [vmem:[%s3091 + $0x271] sm:$0xff]
  %v3675 = vld [vmem:[%s3091 + $0x279] sm:$0xff]
  %v3676 = vld [vmem:[%s3091 + $0x289] sm:$0xff]
  %v3677 = vld [vmem:[%s3091 + $0x291] sm:$0xff]
  %v3678 = vld [vmem:[%s3091 + $0x2a1] sm:$0xff]
  %v3679 = vld [vmem:[%s3091 + $0x2a9] sm:$0xff]
  %v3680 = vld [vmem:[%s3091 + $0x2b9] sm:$0xff]
  %v3681 = vld [vmem:[%s3091 + $0x2c1] sm:$0xff]
  %v3682 = vld [vmem:[%s3091 + $0x2d1] sm:$0xff]
  %v3683 = vld [vmem:[%s3091 + $0x2d9] sm:$0xff]
  %v3684 = vld [vmem:[%s3091 + $0x2e9] sm:$0xff]
  %v3685 = vld [vmem:[%s3091 + $0x2f1] sm:$0xff]
  %v3686 = vld [vmem:[%s3091 + $0x301] sm:$0xff]
  %v3687 = vld [vmem:[%s3091 + $0x309] sm:$0xff]
  %v3688 = vld [vmem:[%s3091 + $0x319] sm:$0xff]
  %v3689 = vld [vmem:[%s3091 + $0x321] sm:$0xff]
  %s3690 = scalar_lea.vmem %s1, 224
  %v3691 = vld [vmem:[%s3690] sm:$0xff]
  %v3692 = vld [vmem:[%s3690 + $0x8] sm:$0xff]
  %v3693 = vld [vmem:[%s3690 + $0x10] sm:$0xff]
  %v3694 = vld [vmem:[%s3690 + $0x18] sm:$0xff]
  %v3696 = vsel %vm151, %v3626, 0
  %v3699 = vsel %vm151, %v3627, 0
  %v3702 = vsel %vm151, %v3628, 0
  %v3705 = vsel %vm151, %v3629, 0
  %v3708 = vsel %vm151, %v3630, 0
  %v3711 = vsel %vm151, %v3631, 0
  %v3714 = vsel %vm151, %v3632, 0
  %v3717 = vsel %vm151, %v3633, 0
  %v3720 = vsel %vm151, %v3634, 0
  %v3723 = vsel %vm151, %v3635, 0
  %v3726 = vsel %vm151, %v3636, 0
  %v3729 = vsel %vm151, %v3637, 0
  %v3732 = vsel %vm151, %v3638, 0
  %v3735 = vsel %vm151, %v3639, 0
  %v3738 = vsel %vm151, %v3640, 0
  %v3741 = vsel %vm151, %v3641, 0
  %v3744 = vsel %vm151, %v3642, 0
  %v3747 = vsel %vm151, %v3643, 0
  %v3750 = vsel %vm151, %v3644, 0
  %v3753 = vsel %vm151, %v3645, 0
  %v3756 = vsel %vm151, %v3646, 0
  %v3759 = vsel %vm151, %v3647, 0
  %v3762 = vsel %vm151, %v3648, 0
  %v3765 = vsel %vm151, %v3649, 0
  %v3768 = vsel %vm151, %v3650, 0
  %v3771 = vsel %vm151, %v3651, 0
  %v3774 = vsel %vm151, %v3652, 0
  %v3777 = vsel %vm151, %v3653, 0
  %v3780 = vsel %vm151, %v3654, 0
  %v3783 = vsel %vm151, %v3655, 0
  %v3786 = vsel %vm151, %v3656, 0
  %v3789 = vsel %vm151, %v3657, 0
  %v3792 = vsel %vm151, %v3658, 0
  %v3795 = vsel %vm151, %v3659, 0
  %v3798 = vsel %vm151, %v3660, 0
  %v3801 = vsel %vm151, %v3661, 0
  %v3804 = vsel %vm151, %v3662, 0
  %v3807 = vsel %vm151, %v3663, 0
  %v3810 = vsel %vm151, %v3664, 0
  %v3813 = vsel %vm151, %v3665, 0
  %v3816 = vsel %vm151, %v3666, 0
  %v3819 = vsel %vm151, %v3667, 0
  %v3822 = vsel %vm151, %v3668, 0
  %v3825 = vsel %vm151, %v3669, 0
  %v3828 = vsel %vm151, %v3670, 0
  %v3831 = vsel %vm151, %v3671, 0
  %v3834 = vsel %vm151, %v3672, 0
  %v3837 = vsel %vm151, %v3673, 0
  %v3840 = vsel %vm151, %v3674, 0
  %v3843 = vsel %vm151, %v3675, 0
  %v3846 = vsel %vm151, %v3676, 0
  %v3849 = vsel %vm151, %v3677, 0
  %v3852 = vsel %vm151, %v3678, 0
  %v3855 = vsel %vm151, %v3679, 0
  %v3858 = vsel %vm151, %v3680, 0
  %v3861 = vsel %vm151, %v3681, 0
  %v3864 = vsel %vm151, %v3682, 0
  %v3867 = vsel %vm151, %v3683, 0
  %v3870 = vsel %vm151, %v3684, 0
  %v3873 = vsel %vm151, %v3685, 0
  %v3876 = vsel %vm151, %v3686, 0
  %v3879 = vsel %vm151, %v3687, 0
  %v3882 = vsel %vm151, %v3688, 0
  %v3885 = vsel %vm151, %v3689, 0
  %3887 = vmatpush.msra.mxu0 0.0
  %3888 = vmatpush.msra.mxu0 0.0
  %3889 = vmatpush.msra.mxu0 0.0
  %3890 = vmatpush.msra.mxu0 0.0
  %3891 = vmatpush.msra.mxu0 0.0
  %3892 = vmatpush.msra.mxu0 0.0
  %3893 = vmatpush.msra.mxu0 0.0
  %3894 = vmatpush.msra.mxu0 0.0
  %3895 = vmatpush.msra.mxu0 0.0
  %3896 = vmatpush.msra.mxu0 0.0
  %3897 = vmatpush.msra.mxu0 0.0
  %3898 = vmatpush.msra.mxu0 0.0
  %3899 = vmatpush.msra.mxu0 %v3694
  %3900 = vmatpush.msra.mxu0 %v3693
  %3901 = vmatpush.msra.mxu0 %v3692
  %3902 = vmatpush.msra.mxu0 %v3691
  %3903 = vmatmul.f32.gmra.mxu0 %v3696
  %v3904 = vpop.f32.mrf.mxu0
  %v3905 = vadd.f32 0.0, %v3904
  %3906 = vmatmul.f32.gmra.mxu0 %v3699
  %v3907 = vpop.f32.mrf.mxu0
  %v3908 = vadd.f32 0.0, %v3907
  %3909 = vmatmul.f32.gmra.mxu0 %v3702
  %v3910 = vpop.f32.mrf.mxu0
  %v3911 = vadd.f32 0.0, %v3910
  %3912 = vmatmul.f32.gmra.mxu0 %v3705
  %v3913 = vpop.f32.mrf.mxu0
  %v3914 = vadd.f32 0.0, %v3913
  %3915 = vmatmul.f32.gmra.mxu0 %v3708
  %v3916 = vpop.f32.mrf.mxu0
  %v3917 = vadd.f32 0.0, %v3916
  %3918 = vmatmul.f32.gmra.mxu0 %v3711
  %v3919 = vpop.f32.mrf.mxu0
  %v3920 = vadd.f32 0.0, %v3919
  %3921 = vmatmul.f32.gmra.mxu0 %v3714
  %v3922 = vpop.f32.mrf.mxu0
  %v3923 = vadd.f32 0.0, %v3922
  %3924 = vmatmul.f32.gmra.mxu0 %v3717
  %v3925 = vpop.f32.mrf.mxu0
  %v3926 = vadd.f32 0.0, %v3925
  %3927 = vmatmul.f32.gmra.mxu0 %v3720
  %v3928 = vpop.f32.mrf.mxu0
  %v3929 = vadd.f32 0.0, %v3928
  %3930 = vmatmul.f32.gmra.mxu0 %v3723
  %v3931 = vpop.f32.mrf.mxu0
  %v3932 = vadd.f32 0.0, %v3931
  %3933 = vmatmul.f32.gmra.mxu0 %v3726
  %v3934 = vpop.f32.mrf.mxu0
  %v3935 = vadd.f32 0.0, %v3934
  %3936 = vmatmul.f32.gmra.mxu0 %v3729
  %v3937 = vpop.f32.mrf.mxu0
  %v3938 = vadd.f32 0.0, %v3937
  %3939 = vmatmul.f32.gmra.mxu0 %v3732
  %v3940 = vpop.f32.mrf.mxu0
  %v3941 = vadd.f32 0.0, %v3940
  %3942 = vmatmul.f32.gmra.mxu0 %v3735
  %v3943 = vpop.f32.mrf.mxu0
  %v3944 = vadd.f32 0.0, %v3943
  %3945 = vmatmul.f32.gmra.mxu0 %v3738
  %v3946 = vpop.f32.mrf.mxu0
  %v3947 = vadd.f32 0.0, %v3946
  %3948 = vmatmul.f32.gmra.mxu0 %v3741
  %v3949 = vpop.f32.mrf.mxu0
  %v3950 = vadd.f32 0.0, %v3949
  %3951 = vmatmul.f32.gmra.mxu0 %v3744
  %v3952 = vpop.f32.mrf.mxu0
  %v3953 = vadd.f32 0.0, %v3952
  %3954 = vmatmul.f32.gmra.mxu0 %v3747
  %v3955 = vpop.f32.mrf.mxu0
  %v3956 = vadd.f32 0.0, %v3955
  %3957 = vmatmul.f32.gmra.mxu0 %v3750
  %v3958 = vpop.f32.mrf.mxu0
  %v3959 = vadd.f32 0.0, %v3958
  %3960 = vmatmul.f32.gmra.mxu0 %v3753
  %v3961 = vpop.f32.mrf.mxu0
  %v3962 = vadd.f32 0.0, %v3961
  %3963 = vmatmul.f32.gmra.mxu0 %v3756
  %v3964 = vpop.f32.mrf.mxu0
  %v3965 = vadd.f32 0.0, %v3964
  %3966 = vmatmul.f32.gmra.mxu0 %v3759
  %v3967 = vpop.f32.mrf.mxu0
  %v3968 = vadd.f32 0.0, %v3967
  %3969 = vmatmul.f32.gmra.mxu0 %v3762
  %v3970 = vpop.f32.mrf.mxu0
  %v3971 = vadd.f32 0.0, %v3970
  %3972 = vmatmul.f32.gmra.mxu0 %v3765
  %v3973 = vpop.f32.mrf.mxu0
  %v3974 = vadd.f32 0.0, %v3973
  %3975 = vmatmul.f32.gmra.mxu0 %v3768
  %v3976 = vpop.f32.mrf.mxu0
  %v3977 = vadd.f32 0.0, %v3976
  %3978 = vmatmul.f32.gmra.mxu0 %v3771
  %v3979 = vpop.f32.mrf.mxu0
  %v3980 = vadd.f32 0.0, %v3979
  %3981 = vmatmul.f32.gmra.mxu0 %v3774
  %v3982 = vpop.f32.mrf.mxu0
  %v3983 = vadd.f32 0.0, %v3982
  %3984 = vmatmul.f32.gmra.mxu0 %v3777
  %v3985 = vpop.f32.mrf.mxu0
  %v3986 = vadd.f32 0.0, %v3985
  %3987 = vmatmul.f32.gmra.mxu0 %v3780
  %v3988 = vpop.f32.mrf.mxu0
  %v3989 = vadd.f32 0.0, %v3988
  %3990 = vmatmul.f32.gmra.mxu0 %v3783
  %v3991 = vpop.f32.mrf.mxu0
  %v3992 = vadd.f32 0.0, %v3991
  %3993 = vmatmul.f32.gmra.mxu0 %v3786
  %v3994 = vpop.f32.mrf.mxu0
  %v3995 = vadd.f32 0.0, %v3994
  %3996 = vmatmul.f32.gmra.mxu0 %v3789
  %v3997 = vpop.f32.mrf.mxu0
  %v3998 = vadd.f32 0.0, %v3997
  %3999 = vmatmul.f32.gmra.mxu0 %v3792
  %v4000 = vpop.f32.mrf.mxu0
  %v4001 = vadd.f32 0.0, %v4000
  %4002 = vmatmul.f32.gmra.mxu0 %v3795
  %v4003 = vpop.f32.mrf.mxu0
  %v4004 = vadd.f32 0.0, %v4003
  %4005 = vmatmul.f32.gmra.mxu0 %v3798
  %v4006 = vpop.f32.mrf.mxu0
  %v4007 = vadd.f32 0.0, %v4006
  %4008 = vmatmul.f32.gmra.mxu0 %v3801
  %v4009 = vpop.f32.mrf.mxu0
  %v4010 = vadd.f32 0.0, %v4009
  %4011 = vmatmul.f32.gmra.mxu0 %v3804
  %v4012 = vpop.f32.mrf.mxu0
  %v4013 = vadd.f32 0.0, %v4012
  %4014 = vmatmul.f32.gmra.mxu0 %v3807
  %v4015 = vpop.f32.mrf.mxu0
  %v4016 = vadd.f32 0.0, %v4015
  %4017 = vmatmul.f32.gmra.mxu0 %v3810
  %v4018 = vpop.f32.mrf.mxu0
  %v4019 = vadd.f32 0.0, %v4018
  %4020 = vmatmul.f32.gmra.mxu0 %v3813
  %v4021 = vpop.f32.mrf.mxu0
  %v4022 = vadd.f32 0.0, %v4021
  %4023 = vmatmul.f32.gmra.mxu0 %v3816
  %v4024 = vpop.f32.mrf.mxu0
  %v4025 = vadd.f32 0.0, %v4024
  %4026 = vmatmul.f32.gmra.mxu0 %v3819
  %v4027 = vpop.f32.mrf.mxu0
  %v4028 = vadd.f32 0.0, %v4027
  %4029 = vmatmul.f32.gmra.mxu0 %v3822
  %v4030 = vpop.f32.mrf.mxu0
  %v4031 = vadd.f32 0.0, %v4030
  %4032 = vmatmul.f32.gmra.mxu0 %v3825
  %v4033 = vpop.f32.mrf.mxu0
  %v4034 = vadd.f32 0.0, %v4033
  %4035 = vmatmul.f32.gmra.mxu0 %v3828
  %v4036 = vpop.f32.mrf.mxu0
  %v4037 = vadd.f32 0.0, %v4036
  %4038 = vmatmul.f32.gmra.mxu0 %v3831
  %v4039 = vpop.f32.mrf.mxu0
  %v4040 = vadd.f32 0.0, %v4039
  %4041 = vmatmul.f32.gmra.mxu0 %v3834
  %v4042 = vpop.f32.mrf.mxu0
  %v4043 = vadd.f32 0.0, %v4042
  %4044 = vmatmul.f32.gmra.mxu0 %v3837
  %v4045 = vpop.f32.mrf.mxu0
  %v4046 = vadd.f32 0.0, %v4045
  %4047 = vmatmul.f32.gmra.mxu0 %v3840
  %v4048 = vpop.f32.mrf.mxu0
  %v4049 = vadd.f32 0.0, %v4048
  %4050 = vmatmul.f32.gmra.mxu0 %v3843
  %v4051 = vpop.f32.mrf.mxu0
  %v4052 = vadd.f32 0.0, %v4051
  %4053 = vmatmul.f32.gmra.mxu0 %v3846
  %v4054 = vpop.f32.mrf.mxu0
  %v4055 = vadd.f32 0.0, %v4054
  %4056 = vmatmul.f32.gmra.mxu0 %v3849
  %v4057 = vpop.f32.mrf.mxu0
  %v4058 = vadd.f32 0.0, %v4057
  %4059 = vmatmul.f32.gmra.mxu0 %v3852
  %v4060 = vpop.f32.mrf.mxu0
  %v4061 = vadd.f32 0.0, %v4060
  %4062 = vmatmul.f32.gmra.mxu0 %v3855
  %v4063 = vpop.f32.mrf.mxu0
  %v4064 = vadd.f32 0.0, %v4063
  %4065 = vmatmul.f32.gmra.mxu0 %v3858
  %v4066 = vpop.f32.mrf.mxu0
  %v4067 = vadd.f32 0.0, %v4066
  %4068 = vmatmul.f32.gmra.mxu0 %v3861
  %v4069 = vpop.f32.mrf.mxu0
  %v4070 = vadd.f32 0.0, %v4069
  %4071 = vmatmul.f32.gmra.mxu0 %v3864
  %v4072 = vpop.f32.mrf.mxu0
  %v4073 = vadd.f32 0.0, %v4072
  %4074 = vmatmul.f32.gmra.mxu0 %v3867
  %v4075 = vpop.f32.mrf.mxu0
  %v4076 = vadd.f32 0.0, %v4075
  %4077 = vmatmul.f32.gmra.mxu0 %v3870
  %v4078 = vpop.f32.mrf.mxu0
  %v4079 = vadd.f32 0.0, %v4078
  %4080 = vmatmul.f32.gmra.mxu0 %v3873
  %v4081 = vpop.f32.mrf.mxu0
  %v4082 = vadd.f32 0.0, %v4081
  %4083 = vmatmul.f32.gmra.mxu0 %v3876
  %v4084 = vpop.f32.mrf.mxu0
  %v4085 = vadd.f32 0.0, %v4084
  %4086 = vmatmul.f32.gmra.mxu0 %v3879
  %v4087 = vpop.f32.mrf.mxu0
  %v4088 = vadd.f32 0.0, %v4087
  %4089 = vmatmul.f32.gmra.mxu0 %v3882
  %v4090 = vpop.f32.mrf.mxu0
  %v4091 = vadd.f32 0.0, %v4090
  %4092 = vmatmul.f32.gmra.mxu0 %v3885
  %v4093 = vpop.f32.mrf.mxu0
  %v4094 = vadd.f32 0.0, %v4093
  %4095 = vdwg.mxu0
  %v4096 = vadd.f32 %v3562, %v3905
  %v4097 = vadd.f32 %v3563, %v3908
  %v4098 = vadd.f32 %v3564, %v3911
  %v4099 = vadd.f32 %v3565, %v3914
  %v4100 = vadd.f32 %v3566, %v3917
  %v4101 = vadd.f32 %v3567, %v3920
  %v4102 = vadd.f32 %v3568, %v3923
  %v4103 = vadd.f32 %v3569, %v3926
  %v4104 = vadd.f32 %v3570, %v3929
  %v4105 = vadd.f32 %v3571, %v3932
  %v4106 = vadd.f32 %v3572, %v3935
  %v4107 = vadd.f32 %v3573, %v3938
  %v4108 = vadd.f32 %v3574, %v3941
  %v4109 = vadd.f32 %v3575, %v3944
  %v4110 = vadd.f32 %v3576, %v3947
  %v4111 = vadd.f32 %v3577, %v3950
  %v4112 = vadd.f32 %v3578, %v3953
  %v4113 = vadd.f32 %v3579, %v3956
  %v4114 = vadd.f32 %v3580, %v3959
  %v4115 = vadd.f32 %v3581, %v3962
  %v4116 = vadd.f32 %v3582, %v3965
  %v4117 = vadd.f32 %v3583, %v3968
  %v4118 = vadd.f32 %v3584, %v3971
  %v4119 = vadd.f32 %v3585, %v3974
  %v4120 = vadd.f32 %v3586, %v3977
  %v4121 = vadd.f32 %v3587, %v3980
  %v4122 = vadd.f32 %v3588, %v3983
  %v4123 = vadd.f32 %v3589, %v3986
  %v4124 = vadd.f32 %v3590, %v3989
  %v4125 = vadd.f32 %v3591, %v3992
  %v4126 = vadd.f32 %v3592, %v3995
  %v4127 = vadd.f32 %v3593, %v3998
  %v4128 = vadd.f32 %v3594, %v4001
  %v4129 = vadd.f32 %v3595, %v4004
  %v4130 = vadd.f32 %v3596, %v4007
  %v4131 = vadd.f32 %v3597, %v4010
  %v4132 = vadd.f32 %v3598, %v4013
  %v4133 = vadd.f32 %v3599, %v4016
  %v4134 = vadd.f32 %v3600, %v4019
  %v4135 = vadd.f32 %v3601, %v4022
  %v4136 = vadd.f32 %v3602, %v4025
  %v4137 = vadd.f32 %v3603, %v4028
  %v4138 = vadd.f32 %v3604, %v4031
  %v4139 = vadd.f32 %v3605, %v4034
  %v4140 = vadd.f32 %v3606, %v4037
  %v4141 = vadd.f32 %v3607, %v4040
  %v4142 = vadd.f32 %v3608, %v4043
  %v4143 = vadd.f32 %v3609, %v4046
  %v4144 = vadd.f32 %v3610, %v4049
  %v4145 = vadd.f32 %v3611, %v4052
  %v4146 = vadd.f32 %v3612, %v4055
  %v4147 = vadd.f32 %v3613, %v4058
  %v4148 = vadd.f32 %v3614, %v4061
  %v4149 = vadd.f32 %v3615, %v4064
  %v4150 = vadd.f32 %v3616, %v4067
  %v4151 = vadd.f32 %v3617, %v4070
  %v4152 = vadd.f32 %v3618, %v4073
  %v4153 = vadd.f32 %v3619, %v4076
  %v4154 = vadd.f32 %v3620, %v4079
  %v4155 = vadd.f32 %v3621, %v4082
  %v4156 = vadd.f32 %v3622, %v4085
  %v4157 = vadd.f32 %v3623, %v4088
  %v4158 = vadd.f32 %v3624, %v4091
  %v4159 = vadd.f32 %v3625, %v4094
  %v4160 = vld [vmem:[%s3091 + $0x2] sm:$0xff]
  %v4161 = vld [vmem:[%s3091 + $0xa] sm:$0xff]
  %v4162 = vld [vmem:[%s3091 + $0x1a] sm:$0xff]
  %v4163 = vld [vmem:[%s3091 + $0x22] sm:$0xff]
  %v4164 = vld [vmem:[%s3091 + $0x32] sm:$0xff]
  %v4165 = vld [vmem:[%s3091 + $0x3a] sm:$0xff]
  %v4166 = vld [vmem:[%s3091 + $0x4a] sm:$0xff]
  %v4167 = vld [vmem:[%s3091 + $0x52] sm:$0xff]
  %v4168 = vld [vmem:[%s3091 + $0x62] sm:$0xff]
  %v4169 = vld [vmem:[%s3091 + $0x6a] sm:$0xff]
  %v4170 = vld [vmem:[%s3091 + $0x7a] sm:$0xff]
  %v4171 = vld [vmem:[%s3091 + $0x82] sm:$0xff]
  %v4172 = vld [vmem:[%s3091 + $0x92] sm:$0xff]
  %v4173 = vld [vmem:[%s3091 + $0x9a] sm:$0xff]
  %v4174 = vld [vmem:[%s3091 + $0xaa] sm:$0xff]
  %v4175 = vld [vmem:[%s3091 + $0xb2] sm:$0xff]
  %v4176 = vld [vmem:[%s3091 + $0xc2] sm:$0xff]
  %v4177 = vld [vmem:[%s3091 + $0xca] sm:$0xff]
  %v4178 = vld [vmem:[%s3091 + $0xda] sm:$0xff]
  %v4179 = vld [vmem:[%s3091 + $0xe2] sm:$0xff]
  %v4180 = vld [vmem:[%s3091 + $0xf2] sm:$0xff]
  %v4181 = vld [vmem:[%s3091 + $0xfa] sm:$0xff]
  %v4182 = vld [vmem:[%s3091 + $0x10a] sm:$0xff]
  %v4183 = vld [vmem:[%s3091 + $0x112] sm:$0xff]
  %v4184 = vld [vmem:[%s3091 + $0x122] sm:$0xff]
  %v4185 = vld [vmem:[%s3091 + $0x12a] sm:$0xff]
  %v4186 = vld [vmem:[%s3091 + $0x13a] sm:$0xff]
  %v4187 = vld [vmem:[%s3091 + $0x142] sm:$0xff]
  %v4188 = vld [vmem:[%s3091 + $0x152] sm:$0xff]
  %v4189 = vld [vmem:[%s3091 + $0x15a] sm:$0xff]
  %v4190 = vld [vmem:[%s3091 + $0x16a] sm:$0xff]
  %v4191 = vld [vmem:[%s3091 + $0x172] sm:$0xff]
  %v4192 = vld [vmem:[%s3091 + $0x1b2] sm:$0xff]
  %v4193 = vld [vmem:[%s3091 + $0x1ba] sm:$0xff]
  %v4194 = vld [vmem:[%s3091 + $0x1ca] sm:$0xff]
  %v4195 = vld [vmem:[%s3091 + $0x1d2] sm:$0xff]
  %v4196 = vld [vmem:[%s3091 + $0x1e2] sm:$0xff]
  %v4197 = vld [vmem:[%s3091 + $0x1ea] sm:$0xff]
  %v4198 = vld [vmem:[%s3091 + $0x1fa] sm:$0xff]
  %v4199 = vld [vmem:[%s3091 + $0x202] sm:$0xff]
  %v4200 = vld [vmem:[%s3091 + $0x212] sm:$0xff]
  %v4201 = vld [vmem:[%s3091 + $0x21a] sm:$0xff]
  %v4202 = vld [vmem:[%s3091 + $0x22a] sm:$0xff]
  %v4203 = vld [vmem:[%s3091 + $0x232] sm:$0xff]
  %v4204 = vld [vmem:[%s3091 + $0x242] sm:$0xff]
  %v4205 = vld [vmem:[%s3091 + $0x24a] sm:$0xff]
  %v4206 = vld [vmem:[%s3091 + $0x25a] sm:$0xff]
  %v4207 = vld [vmem:[%s3091 + $0x262] sm:$0xff]
  %v4208 = vld [vmem:[%s3091 + $0x272] sm:$0xff]
  %v4209 = vld [vmem:[%s3091 + $0x27a] sm:$0xff]
  %v4210 = vld [vmem:[%s3091 + $0x28a] sm:$0xff]
  %v4211 = vld [vmem:[%s3091 + $0x292] sm:$0xff]
  %v4212 = vld [vmem:[%s3091 + $0x2a2] sm:$0xff]
  %v4213 = vld [vmem:[%s3091 + $0x2aa] sm:$0xff]
  %v4214 = vld [vmem:[%s3091 + $0x2ba] sm:$0xff]
  %v4215 = vld [vmem:[%s3091 + $0x2c2] sm:$0xff]
  %v4216 = vld [vmem:[%s3091 + $0x2d2] sm:$0xff]
  %v4217 = vld [vmem:[%s3091 + $0x2da] sm:$0xff]
  %v4218 = vld [vmem:[%s3091 + $0x2ea] sm:$0xff]
  %v4219 = vld [vmem:[%s3091 + $0x2f2] sm:$0xff]
  %v4220 = vld [vmem:[%s3091 + $0x302] sm:$0xff]
  %v4221 = vld [vmem:[%s3091 + $0x30a] sm:$0xff]
  %v4222 = vld [vmem:[%s3091 + $0x31a] sm:$0xff]
  %v4223 = vld [vmem:[%s3091 + $0x322] sm:$0xff]
  %s4224 = scalar_lea.vmem %s1, 256
  %v4225 = vld [vmem:[%s4224] sm:$0xff]
  %v4226 = vld [vmem:[%s4224 + $0x8] sm:$0xff]
  %v4227 = vld [vmem:[%s4224 + $0x10] sm:$0xff]
  %v4228 = vld [vmem:[%s4224 + $0x18] sm:$0xff]
  %v4230 = vsel %vm151, %v4160, 0
  %v4233 = vsel %vm151, %v4161, 0
  %v4236 = vsel %vm151, %v4162, 0
  %v4239 = vsel %vm151, %v4163, 0
  %v4242 = vsel %vm151, %v4164, 0
  %v4245 = vsel %vm151, %v4165, 0
  %v4248 = vsel %vm151, %v4166, 0
  %v4251 = vsel %vm151, %v4167, 0
  %v4254 = vsel %vm151, %v4168, 0
  %v4257 = vsel %vm151, %v4169, 0
  %v4260 = vsel %vm151, %v4170, 0
  %v4263 = vsel %vm151, %v4171, 0
  %v4266 = vsel %vm151, %v4172, 0
  %v4269 = vsel %vm151, %v4173, 0
  %v4272 = vsel %vm151, %v4174, 0
  %v4275 = vsel %vm151, %v4175, 0
  %v4278 = vsel %vm151, %v4176, 0
  %v4281 = vsel %vm151, %v4177, 0
  %v4284 = vsel %vm151, %v4178, 0
  %v4287 = vsel %vm151, %v4179, 0
  %v4290 = vsel %vm151, %v4180, 0
  %v4293 = vsel %vm151, %v4181, 0
  %v4296 = vsel %vm151, %v4182, 0
  %v4299 = vsel %vm151, %v4183, 0
  %v4302 = vsel %vm151, %v4184, 0
  %v4305 = vsel %vm151, %v4185, 0
  %v4308 = vsel %vm151, %v4186, 0
  %v4311 = vsel %vm151, %v4187, 0
  %v4314 = vsel %vm151, %v4188, 0
  %v4317 = vsel %vm151, %v4189, 0
  %v4320 = vsel %vm151, %v4190, 0
  %v4323 = vsel %vm151, %v4191, 0
  %v4326 = vsel %vm151, %v4192, 0
  %v4329 = vsel %vm151, %v4193, 0
  %v4332 = vsel %vm151, %v4194, 0
  %v4335 = vsel %vm151, %v4195, 0
  %v4338 = vsel %vm151, %v4196, 0
  %v4341 = vsel %vm151, %v4197, 0
  %v4344 = vsel %vm151, %v4198, 0
  %v4347 = vsel %vm151, %v4199, 0
  %v4350 = vsel %vm151, %v4200, 0
  %v4353 = vsel %vm151, %v4201, 0
  %v4356 = vsel %vm151, %v4202, 0
  %v4359 = vsel %vm151, %v4203, 0
  %v4362 = vsel %vm151, %v4204, 0
  %v4365 = vsel %vm151, %v4205, 0
  %v4368 = vsel %vm151, %v4206, 0
  %v4371 = vsel %vm151, %v4207, 0
  %v4374 = vsel %vm151, %v4208, 0
  %v4377 = vsel %vm151, %v4209, 0
  %v4380 = vsel %vm151, %v4210, 0
  %v4383 = vsel %vm151, %v4211, 0
  %v4386 = vsel %vm151, %v4212, 0
  %v4389 = vsel %vm151, %v4213, 0
  %v4392 = vsel %vm151, %v4214, 0
  %v4395 = vsel %vm151, %v4215, 0
  %v4398 = vsel %vm151, %v4216, 0
  %v4401 = vsel %vm151, %v4217, 0
  %v4404 = vsel %vm151, %v4218, 0
  %v4407 = vsel %vm151, %v4219, 0
  %v4410 = vsel %vm151, %v4220, 0
  %v4413 = vsel %vm151, %v4221, 0
  %v4416 = vsel %vm151, %v4222, 0
  %v4419 = vsel %vm151, %v4223, 0
  %4421 = vmatpush.msra.mxu0 0.0
  %4422 = vmatpush.msra.mxu0 0.0
  %4423 = vmatpush.msra.mxu0 0.0
  %4424 = vmatpush.msra.mxu0 0.0
  %4425 = vmatpush.msra.mxu0 0.0
  %4426 = vmatpush.msra.mxu0 0.0
  %4427 = vmatpush.msra.mxu0 0.0
  %4428 = vmatpush.msra.mxu0 0.0
  %4429 = vmatpush.msra.mxu0 0.0
  %4430 = vmatpush.msra.mxu0 0.0
  %4431 = vmatpush.msra.mxu0 0.0
  %4432 = vmatpush.msra.mxu0 0.0
  %4433 = vmatpush.msra.mxu0 %v4228
  %4434 = vmatpush.msra.mxu0 %v4227
  %4435 = vmatpush.msra.mxu0 %v4226
  %4436 = vmatpush.msra.mxu0 %v4225
  %4437 = vmatmul.f32.gmra.mxu0 %v4230
  %v4438 = vpop.f32.mrf.mxu0
  %v4439 = vadd.f32 0.0, %v4438
  %4440 = vmatmul.f32.gmra.mxu0 %v4233
  %v4441 = vpop.f32.mrf.mxu0
  %v4442 = vadd.f32 0.0, %v4441
  %4443 = vmatmul.f32.gmra.mxu0 %v4236
  %v4444 = vpop.f32.mrf.mxu0
  %v4445 = vadd.f32 0.0, %v4444
  %4446 = vmatmul.f32.gmra.mxu0 %v4239
  %v4447 = vpop.f32.mrf.mxu0
  %v4448 = vadd.f32 0.0, %v4447
  %4449 = vmatmul.f32.gmra.mxu0 %v4242
  %v4450 = vpop.f32.mrf.mxu0
  %v4451 = vadd.f32 0.0, %v4450
  %4452 = vmatmul.f32.gmra.mxu0 %v4245
  %v4453 = vpop.f32.mrf.mxu0
  %v4454 = vadd.f32 0.0, %v4453
  %4455 = vmatmul.f32.gmra.mxu0 %v4248
  %v4456 = vpop.f32.mrf.mxu0
  %v4457 = vadd.f32 0.0, %v4456
  %4458 = vmatmul.f32.gmra.mxu0 %v4251
  %v4459 = vpop.f32.mrf.mxu0
  %v4460 = vadd.f32 0.0, %v4459
  %4461 = vmatmul.f32.gmra.mxu0 %v4254
  %v4462 = vpop.f32.mrf.mxu0
  %v4463 = vadd.f32 0.0, %v4462
  %4464 = vmatmul.f32.gmra.mxu0 %v4257
  %v4465 = vpop.f32.mrf.mxu0
  %v4466 = vadd.f32 0.0, %v4465
  %4467 = vmatmul.f32.gmra.mxu0 %v4260
  %v4468 = vpop.f32.mrf.mxu0
  %v4469 = vadd.f32 0.0, %v4468
  %4470 = vmatmul.f32.gmra.mxu0 %v4263
  %v4471 = vpop.f32.mrf.mxu0
  %v4472 = vadd.f32 0.0, %v4471
  %4473 = vmatmul.f32.gmra.mxu0 %v4266
  %v4474 = vpop.f32.mrf.mxu0
  %v4475 = vadd.f32 0.0, %v4474
  %4476 = vmatmul.f32.gmra.mxu0 %v4269
  %v4477 = vpop.f32.mrf.mxu0
  %v4478 = vadd.f32 0.0, %v4477
  %4479 = vmatmul.f32.gmra.mxu0 %v4272
  %v4480 = vpop.f32.mrf.mxu0
  %v4481 = vadd.f32 0.0, %v4480
  %4482 = vmatmul.f32.gmra.mxu0 %v4275
  %v4483 = vpop.f32.mrf.mxu0
  %v4484 = vadd.f32 0.0, %v4483
  %4485 = vmatmul.f32.gmra.mxu0 %v4278
  %v4486 = vpop.f32.mrf.mxu0
  %v4487 = vadd.f32 0.0, %v4486
  %4488 = vmatmul.f32.gmra.mxu0 %v4281
  %v4489 = vpop.f32.mrf.mxu0
  %v4490 = vadd.f32 0.0, %v4489
  %4491 = vmatmul.f32.gmra.mxu0 %v4284
  %v4492 = vpop.f32.mrf.mxu0
  %v4493 = vadd.f32 0.0, %v4492
  %4494 = vmatmul.f32.gmra.mxu0 %v4287
  %v4495 = vpop.f32.mrf.mxu0
  %v4496 = vadd.f32 0.0, %v4495
  %4497 = vmatmul.f32.gmra.mxu0 %v4290
  %v4498 = vpop.f32.mrf.mxu0
  %v4499 = vadd.f32 0.0, %v4498
  %4500 = vmatmul.f32.gmra.mxu0 %v4293
  %v4501 = vpop.f32.mrf.mxu0
  %v4502 = vadd.f32 0.0, %v4501
  %4503 = vmatmul.f32.gmra.mxu0 %v4296
  %v4504 = vpop.f32.mrf.mxu0
  %v4505 = vadd.f32 0.0, %v4504
  %4506 = vmatmul.f32.gmra.mxu0 %v4299
  %v4507 = vpop.f32.mrf.mxu0
  %v4508 = vadd.f32 0.0, %v4507
  %4509 = vmatmul.f32.gmra.mxu0 %v4302
  %v4510 = vpop.f32.mrf.mxu0
  %v4511 = vadd.f32 0.0, %v4510
  %4512 = vmatmul.f32.gmra.mxu0 %v4305
  %v4513 = vpop.f32.mrf.mxu0
  %v4514 = vadd.f32 0.0, %v4513
  %4515 = vmatmul.f32.gmra.mxu0 %v4308
  %v4516 = vpop.f32.mrf.mxu0
  %v4517 = vadd.f32 0.0, %v4516
  %4518 = vmatmul.f32.gmra.mxu0 %v4311
  %v4519 = vpop.f32.mrf.mxu0
  %v4520 = vadd.f32 0.0, %v4519
  %4521 = vmatmul.f32.gmra.mxu0 %v4314
  %v4522 = vpop.f32.mrf.mxu0
  %v4523 = vadd.f32 0.0, %v4522
  %4524 = vmatmul.f32.gmra.mxu0 %v4317
  %v4525 = vpop.f32.mrf.mxu0
  %v4526 = vadd.f32 0.0, %v4525
  %4527 = vmatmul.f32.gmra.mxu0 %v4320
  %v4528 = vpop.f32.mrf.mxu0
  %v4529 = vadd.f32 0.0, %v4528
  %4530 = vmatmul.f32.gmra.mxu0 %v4323
  %v4531 = vpop.f32.mrf.mxu0
  %v4532 = vadd.f32 0.0, %v4531
  %4533 = vmatmul.f32.gmra.mxu0 %v4326
  %v4534 = vpop.f32.mrf.mxu0
  %v4535 = vadd.f32 0.0, %v4534
  %4536 = vmatmul.f32.gmra.mxu0 %v4329
  %v4537 = vpop.f32.mrf.mxu0
  %v4538 = vadd.f32 0.0, %v4537
  %4539 = vmatmul.f32.gmra.mxu0 %v4332
  %v4540 = vpop.f32.mrf.mxu0
  %v4541 = vadd.f32 0.0, %v4540
  %4542 = vmatmul.f32.gmra.mxu0 %v4335
  %v4543 = vpop.f32.mrf.mxu0
  %v4544 = vadd.f32 0.0, %v4543
  %4545 = vmatmul.f32.gmra.mxu0 %v4338
  %v4546 = vpop.f32.mrf.mxu0
  %v4547 = vadd.f32 0.0, %v4546
  %4548 = vmatmul.f32.gmra.mxu0 %v4341
  %v4549 = vpop.f32.mrf.mxu0
  %v4550 = vadd.f32 0.0, %v4549
  %4551 = vmatmul.f32.gmra.mxu0 %v4344
  %v4552 = vpop.f32.mrf.mxu0
  %v4553 = vadd.f32 0.0, %v4552
  %4554 = vmatmul.f32.gmra.mxu0 %v4347
  %v4555 = vpop.f32.mrf.mxu0
  %v4556 = vadd.f32 0.0, %v4555
  %4557 = vmatmul.f32.gmra.mxu0 %v4350
  %v4558 = vpop.f32.mrf.mxu0
  %v4559 = vadd.f32 0.0, %v4558
  %4560 = vmatmul.f32.gmra.mxu0 %v4353
  %v4561 = vpop.f32.mrf.mxu0
  %v4562 = vadd.f32 0.0, %v4561
  %4563 = vmatmul.f32.gmra.mxu0 %v4356
  %v4564 = vpop.f32.mrf.mxu0
  %v4565 = vadd.f32 0.0, %v4564
  %4566 = vmatmul.f32.gmra.mxu0 %v4359
  %v4567 = vpop.f32.mrf.mxu0
  %v4568 = vadd.f32 0.0, %v4567
  %4569 = vmatmul.f32.gmra.mxu0 %v4362
  %v4570 = vpop.f32.mrf.mxu0
  %v4571 = vadd.f32 0.0, %v4570
  %4572 = vmatmul.f32.gmra.mxu0 %v4365
  %v4573 = vpop.f32.mrf.mxu0
  %v4574 = vadd.f32 0.0, %v4573
  %4575 = vmatmul.f32.gmra.mxu0 %v4368
  %v4576 = vpop.f32.mrf.mxu0
  %v4577 = vadd.f32 0.0, %v4576
  %4578 = vmatmul.f32.gmra.mxu0 %v4371
  %v4579 = vpop.f32.mrf.mxu0
  %v4580 = vadd.f32 0.0, %v4579
  %4581 = vmatmul.f32.gmra.mxu0 %v4374
  %v4582 = vpop.f32.mrf.mxu0
  %v4583 = vadd.f32 0.0, %v4582
  %4584 = vmatmul.f32.gmra.mxu0 %v4377
  %v4585 = vpop.f32.mrf.mxu0
  %v4586 = vadd.f32 0.0, %v4585
  %4587 = vmatmul.f32.gmra.mxu0 %v4380
  %v4588 = vpop.f32.mrf.mxu0
  %v4589 = vadd.f32 0.0, %v4588
  %4590 = vmatmul.f32.gmra.mxu0 %v4383
  %v4591 = vpop.f32.mrf.mxu0
  %v4592 = vadd.f32 0.0, %v4591
  %4593 = vmatmul.f32.gmra.mxu0 %v4386
  %v4594 = vpop.f32.mrf.mxu0
  %v4595 = vadd.f32 0.0, %v4594
  %4596 = vmatmul.f32.gmra.mxu0 %v4389
  %v4597 = vpop.f32.mrf.mxu0
  %v4598 = vadd.f32 0.0, %v4597
  %4599 = vmatmul.f32.gmra.mxu0 %v4392
  %v4600 = vpop.f32.mrf.mxu0
  %v4601 = vadd.f32 0.0, %v4600
  %4602 = vmatmul.f32.gmra.mxu0 %v4395
  %v4603 = vpop.f32.mrf.mxu0
  %v4604 = vadd.f32 0.0, %v4603
  %4605 = vmatmul.f32.gmra.mxu0 %v4398
  %v4606 = vpop.f32.mrf.mxu0
  %v4607 = vadd.f32 0.0, %v4606
  %4608 = vmatmul.f32.gmra.mxu0 %v4401
  %v4609 = vpop.f32.mrf.mxu0
  %v4610 = vadd.f32 0.0, %v4609
  %4611 = vmatmul.f32.gmra.mxu0 %v4404
  %v4612 = vpop.f32.mrf.mxu0
  %v4613 = vadd.f32 0.0, %v4612
  %4614 = vmatmul.f32.gmra.mxu0 %v4407
  %v4615 = vpop.f32.mrf.mxu0
  %v4616 = vadd.f32 0.0, %v4615
  %4617 = vmatmul.f32.gmra.mxu0 %v4410
  %v4618 = vpop.f32.mrf.mxu0
  %v4619 = vadd.f32 0.0, %v4618
  %4620 = vmatmul.f32.gmra.mxu0 %v4413
  %v4621 = vpop.f32.mrf.mxu0
  %v4622 = vadd.f32 0.0, %v4621
  %4623 = vmatmul.f32.gmra.mxu0 %v4416
  %v4624 = vpop.f32.mrf.mxu0
  %v4625 = vadd.f32 0.0, %v4624
  %4626 = vmatmul.f32.gmra.mxu0 %v4419
  %v4627 = vpop.f32.mrf.mxu0
  %v4628 = vadd.f32 0.0, %v4627
  %4629 = vdwg.mxu0
  %v4630 = vadd.f32 %v4096, %v4439
  %v4631 = vadd.f32 %v4097, %v4442
  %v4632 = vadd.f32 %v4098, %v4445
  %v4633 = vadd.f32 %v4099, %v4448
  %v4634 = vadd.f32 %v4100, %v4451
  %v4635 = vadd.f32 %v4101, %v4454
  %v4636 = vadd.f32 %v4102, %v4457
  %v4637 = vadd.f32 %v4103, %v4460
  %v4638 = vadd.f32 %v4104, %v4463
  %v4639 = vadd.f32 %v4105, %v4466
  %v4640 = vadd.f32 %v4106, %v4469
  %v4641 = vadd.f32 %v4107, %v4472
  %v4642 = vadd.f32 %v4108, %v4475
  %v4643 = vadd.f32 %v4109, %v4478
  %v4644 = vadd.f32 %v4110, %v4481
  %v4645 = vadd.f32 %v4111, %v4484
  %v4646 = vadd.f32 %v4112, %v4487
  %v4647 = vadd.f32 %v4113, %v4490
  %v4648 = vadd.f32 %v4114, %v4493
  %v4649 = vadd.f32 %v4115, %v4496
  %v4650 = vadd.f32 %v4116, %v4499
  %v4651 = vadd.f32 %v4117, %v4502
  %v4652 = vadd.f32 %v4118, %v4505
  %v4653 = vadd.f32 %v4119, %v4508
  %v4654 = vadd.f32 %v4120, %v4511
  %v4655 = vadd.f32 %v4121, %v4514
  %v4656 = vadd.f32 %v4122, %v4517
  %v4657 = vadd.f32 %v4123, %v4520
  %v4658 = vadd.f32 %v4124, %v4523
  %v4659 = vadd.f32 %v4125, %v4526
  %v4660 = vadd.f32 %v4126, %v4529
  %v4661 = vadd.f32 %v4127, %v4532
  %v4662 = vadd.f32 %v4128, %v4535
  %v4663 = vadd.f32 %v4129, %v4538
  %v4664 = vadd.f32 %v4130, %v4541
  %v4665 = vadd.f32 %v4131, %v4544
  %v4666 = vadd.f32 %v4132, %v4547
  %v4667 = vadd.f32 %v4133, %v4550
  %v4668 = vadd.f32 %v4134, %v4553
  %v4669 = vadd.f32 %v4135, %v4556
  %v4670 = vadd.f32 %v4136, %v4559
  %v4671 = vadd.f32 %v4137, %v4562
  %v4672 = vadd.f32 %v4138, %v4565
  %v4673 = vadd.f32 %v4139, %v4568
  %v4674 = vadd.f32 %v4140, %v4571
  %v4675 = vadd.f32 %v4141, %v4574
  %v4676 = vadd.f32 %v4142, %v4577
  %v4677 = vadd.f32 %v4143, %v4580
  %v4678 = vadd.f32 %v4144, %v4583
  %v4679 = vadd.f32 %v4145, %v4586
  %v4680 = vadd.f32 %v4146, %v4589
  %v4681 = vadd.f32 %v4147, %v4592
  %v4682 = vadd.f32 %v4148, %v4595
  %v4683 = vadd.f32 %v4149, %v4598
  %v4684 = vadd.f32 %v4150, %v4601
  %v4685 = vadd.f32 %v4151, %v4604
  %v4686 = vadd.f32 %v4152, %v4607
  %v4687 = vadd.f32 %v4153, %v4610
  %v4688 = vadd.f32 %v4154, %v4613
  %v4689 = vadd.f32 %v4155, %v4616
  %v4690 = vadd.f32 %v4156, %v4619
  %v4691 = vadd.f32 %v4157, %v4622
  %v4692 = vadd.f32 %v4158, %v4625
  %v4693 = vadd.f32 %v4159, %v4628
  %v4694 = vld [vmem:[%s2] sm:$0x1]
  %v4696 = vperm.slane %v4694, 0
  %v4698 = vadd.f32 %v4630, %v4696
  %v4699 = vadd.f32 %v4631, %v4696
  %v4700 = vadd.f32 %v4632, %v4696
  %v4701 = vadd.f32 %v4633, %v4696
  %v4702 = vadd.f32 %v4634, %v4696
  %v4703 = vadd.f32 %v4635, %v4696
  %v4704 = vadd.f32 %v4636, %v4696
  %v4705 = vadd.f32 %v4637, %v4696
  %v4706 = vadd.f32 %v4638, %v4696
  %v4707 = vadd.f32 %v4639, %v4696
  %v4708 = vadd.f32 %v4640, %v4696
  %v4709 = vadd.f32 %v4641, %v4696
  %v4710 = vadd.f32 %v4642, %v4696
  %v4711 = vadd.f32 %v4643, %v4696
  %v4712 = vadd.f32 %v4644, %v4696
  %v4713 = vadd.f32 %v4645, %v4696
  %v4714 = vadd.f32 %v4646, %v4696
  %v4715 = vadd.f32 %v4647, %v4696
  %v4716 = vadd.f32 %v4648, %v4696
  %v4717 = vadd.f32 %v4649, %v4696
  %v4718 = vadd.f32 %v4650, %v4696
  %v4719 = vadd.f32 %v4651, %v4696
  %v4720 = vadd.f32 %v4652, %v4696
  %v4721 = vadd.f32 %v4653, %v4696
  %v4722 = vadd.f32 %v4654, %v4696
  %v4723 = vadd.f32 %v4655, %v4696
  %v4724 = vadd.f32 %v4656, %v4696
  %v4725 = vadd.f32 %v4657, %v4696
  %v4726 = vadd.f32 %v4658, %v4696
  %v4727 = vadd.f32 %v4659, %v4696
  %v4728 = vadd.f32 %v4660, %v4696
  %v4729 = vadd.f32 %v4661, %v4696
  %v4730 = vadd.f32 %v4662, %v4696
  %v4731 = vadd.f32 %v4663, %v4696
  %v4732 = vadd.f32 %v4664, %v4696
  %v4733 = vadd.f32 %v4665, %v4696
  %v4734 = vadd.f32 %v4666, %v4696
  %v4735 = vadd.f32 %v4667, %v4696
  %v4736 = vadd.f32 %v4668, %v4696
  %v4737 = vadd.f32 %v4669, %v4696
  %v4738 = vadd.f32 %v4670, %v4696
  %v4739 = vadd.f32 %v4671, %v4696
  %v4740 = vadd.f32 %v4672, %v4696
  %v4741 = vadd.f32 %v4673, %v4696
  %v4742 = vadd.f32 %v4674, %v4696
  %v4743 = vadd.f32 %v4675, %v4696
  %v4744 = vadd.f32 %v4676, %v4696
  %v4745 = vadd.f32 %v4677, %v4696
  %v4746 = vadd.f32 %v4678, %v4696
  %v4747 = vadd.f32 %v4679, %v4696
  %v4748 = vadd.f32 %v4680, %v4696
  %v4749 = vadd.f32 %v4681, %v4696
  %v4750 = vadd.f32 %v4682, %v4696
  %v4751 = vadd.f32 %v4683, %v4696
  %v4752 = vadd.f32 %v4684, %v4696
  %v4753 = vadd.f32 %v4685, %v4696
  %v4754 = vadd.f32 %v4686, %v4696
  %v4755 = vadd.f32 %v4687, %v4696
  %v4756 = vadd.f32 %v4688, %v4696
  %v4757 = vadd.f32 %v4689, %v4696
  %v4758 = vadd.f32 %v4690, %v4696
  %v4759 = vadd.f32 %v4691, %v4696
  %v4760 = vadd.f32 %v4692, %v4696
  %v4761 = vadd.f32 %v4693, %v4696
  %vm4762 = vcmask 64512
  %4763 = vst.msk [vmem:[%s3] sm:$0xff] %vm4762, %v4698
  %4764 = vst.msk [vmem:[%s3 + $0x8] sm:$0xff] %vm4762, %v4699
  %4765 = vst.msk [vmem:[%s3 + $0x10] sm:$0xff] %vm4762, %v4700
  %4766 = vst.msk [vmem:[%s3 + $0x18] sm:$0xff] %vm4762, %v4701
  %4767 = vst.msk [vmem:[%s3 + $0x20] sm:$0xff] %vm4762, %v4702
  %4768 = vst.msk [vmem:[%s3 + $0x28] sm:$0xff] %vm4762, %v4703
  %4769 = vst.msk [vmem:[%s3 + $0x30] sm:$0xff] %vm4762, %v4704
  %4770 = vst.msk [vmem:[%s3 + $0x38] sm:$0xff] %vm4762, %v4705
  %4771 = vst.msk [vmem:[%s3 + $0x40] sm:$0xff] %vm4762, %v4706
  %4772 = vst.msk [vmem:[%s3 + $0x48] sm:$0xff] %vm4762, %v4707
  %4773 = vst.msk [vmem:[%s3 + $0x50] sm:$0xff] %vm4762, %v4708
  %4774 = vst.msk [vmem:[%s3 + $0x58] sm:$0xff] %vm4762, %v4709
  %4775 = vst.msk [vmem:[%s3 + $0x60] sm:$0xff] %vm4762, %v4710
  %4776 = vst.msk [vmem:[%s3 + $0x68] sm:$0xff] %vm4762, %v4711
  %4777 = vst.msk [vmem:[%s3 + $0x70] sm:$0xff] %vm4762, %v4712
  %4778 = vst.msk [vmem:[%s3 + $0x78] sm:$0xff] %vm4762, %v4713
  %4779 = vst.msk [vmem:[%s3 + $0x80] sm:$0xff] %vm4762, %v4714
  %4780 = vst.msk [vmem:[%s3 + $0x88] sm:$0xff] %vm4762, %v4715
  %4781 = vst.msk [vmem:[%s3 + $0x90] sm:$0xff] %vm4762, %v4716
  %4782 = vst.msk [vmem:[%s3 + $0x98] sm:$0xff] %vm4762, %v4717
  %4783 = vst.msk [vmem:[%s3 + $0xa0] sm:$0xff] %vm4762, %v4718
  %4784 = vst.msk [vmem:[%s3 + $0xa8] sm:$0xff] %vm4762, %v4719
  %4785 = vst.msk [vmem:[%s3 + $0xb0] sm:$0xff] %vm4762, %v4720
  %4786 = vst.msk [vmem:[%s3 + $0xb8] sm:$0xff] %vm4762, %v4721
  %4787 = vst.msk [vmem:[%s3 + $0xc0] sm:$0xff] %vm4762, %v4722
  %4788 = vst.msk [vmem:[%s3 + $0xc8] sm:$0xff] %vm4762, %v4723
  %4789 = vst.msk [vmem:[%s3 + $0xd0] sm:$0xff] %vm4762, %v4724
  %4790 = vst.msk [vmem:[%s3 + $0xd8] sm:$0xff] %vm4762, %v4725
  %4791 = vst.msk [vmem:[%s3 + $0xe0] sm:$0xff] %vm4762, %v4726
  %4792 = vst.msk [vmem:[%s3 + $0xe8] sm:$0xff] %vm4762, %v4727
  %4793 = vst.msk [vmem:[%s3 + $0xf0] sm:$0xff] %vm4762, %v4728
  %4794 = vst.msk [vmem:[%s3 + $0xf8] sm:$0xff] %vm4762, %v4729
  %4795 = vst.msk [vmem:[%s3 + $0x100] sm:$0xff] %vm4762, %v4730
  %4796 = vst.msk [vmem:[%s3 + $0x108] sm:$0xff] %vm4762, %v4731
  %4797 = vst.msk [vmem:[%s3 + $0x110] sm:$0xff] %vm4762, %v4732
  %4798 = vst.msk [vmem:[%s3 + $0x118] sm:$0xff] %vm4762, %v4733
  %4799 = vst.msk [vmem:[%s3 + $0x120] sm:$0xff] %vm4762, %v4734
  %4800 = vst.msk [vmem:[%s3 + $0x128] sm:$0xff] %vm4762, %v4735
  %4801 = vst.msk [vmem:[%s3 + $0x130] sm:$0xff] %vm4762, %v4736
  %4802 = vst.msk [vmem:[%s3 + $0x138] sm:$0xff] %vm4762, %v4737
  %4803 = vst.msk [vmem:[%s3 + $0x140] sm:$0xff] %vm4762, %v4738
  %4804 = vst.msk [vmem:[%s3 + $0x148] sm:$0xff] %vm4762, %v4739
  %4805 = vst.msk [vmem:[%s3 + $0x150] sm:$0xff] %vm4762, %v4740
  %4806 = vst.msk [vmem:[%s3 + $0x158] sm:$0xff] %vm4762, %v4741
  %4807 = vst.msk [vmem:[%s3 + $0x160] sm:$0xff] %vm4762, %v4742
  %4808 = vst.msk [vmem:[%s3 + $0x168] sm:$0xff] %vm4762, %v4743
  %4809 = vst.msk [vmem:[%s3 + $0x170] sm:$0xff] %vm4762, %v4744
  %4810 = vst.msk [vmem:[%s3 + $0x178] sm:$0xff] %vm4762, %v4745
  %4811 = vst.msk [vmem:[%s3 + $0x180] sm:$0xff] %vm4762, %v4746
  %4812 = vst.msk [vmem:[%s3 + $0x188] sm:$0xff] %vm4762, %v4747
  %4813 = vst.msk [vmem:[%s3 + $0x190] sm:$0xff] %vm4762, %v4748
  %4814 = vst.msk [vmem:[%s3 + $0x198] sm:$0xff] %vm4762, %v4749
  %4815 = vst.msk [vmem:[%s3 + $0x1a0] sm:$0xff] %vm4762, %v4750
  %4816 = vst.msk [vmem:[%s3 + $0x1a8] sm:$0xff] %vm4762, %v4751
  %4817 = vst.msk [vmem:[%s3 + $0x1b0] sm:$0xff] %vm4762, %v4752
  %4818 = vst.msk [vmem:[%s3 + $0x1b8] sm:$0xff] %vm4762, %v4753
  %4819 = vst.msk [vmem:[%s3 + $0x1c0] sm:$0xff] %vm4762, %v4754
  %4820 = vst.msk [vmem:[%s3 + $0x1c8] sm:$0xff] %vm4762, %v4755
  %4821 = vst.msk [vmem:[%s3 + $0x1d0] sm:$0xff] %vm4762, %v4756
  %4822 = vst.msk [vmem:[%s3 + $0x1d8] sm:$0xff] %vm4762, %v4757
  %4823 = vst.msk [vmem:[%s3 + $0x1e0] sm:$0xff] %vm4762, %v4758
  %4824 = vst.msk [vmem:[%s3 + $0x1e8] sm:$0xff] %vm4762, %v4759
  %4825 = vst.msk [vmem:[%s3 + $0x1f0] sm:$0xff] %vm4762, %v4760
  %4826 = vst.msk [vmem:[%s3 + $0x1f8] sm:$0xff] %vm4762, %v4761
  // Predicated region
  $region14: #{tpu_custom_call.1} parent=0 // pred_check
    _
  $region15: #{tpu_custom_call.1} parent=0 // pred_check_branch
    %4828 = sbr.rel (0) target = $region17
  $region16: #{tpu_custom_call.1} parent=0 // pred_region
    _
  $region17: #{tpu_custom_call.1} parent=0 // pred_fallthru
    _
  // Predicated region
  $region18: #{tpu_custom_call.1} parent=0 // pred_check
    _
  $region19: #{tpu_custom_call.1} parent=0 // pred_check_branch
    %4830 = sbr.rel (0) target = $region21
  $region20: #{tpu_custom_call.1} parent=0 // pred_region
    _
  $region21: #{tpu_custom_call.1} parent=0 // pred_fallthru
    _

</llo_original>
